<compile_context>
chip_gen: v7x
topology: tpu7x:2x2x1
jax: 0.10.0
libtpu: 0.0.40
codegen_flags: <defaults>
</compile_context>

<pallas_src>
import numpy as np
import jax
import jax.numpy as jnp
from jax import lax
from jax.experimental import pallas as pl
from jax.experimental.pallas import tpu as pltpu

LOG2PI = 1.8378770664093453
NEG_INF = -1e20   # finite sentinel: NEG_INF - NEG_INF == 0 -> exp(0)=1, never NaN


# -----------------------------------------------------------------------------
# Pallas kernel: one (batch b, packed lower-triangular tile s) grid step.
# -----------------------------------------------------------------------------
def _combined_kernel(
    # scalar prefetch (SMEM)
    params_ref,            # (10,) f32 fused constants
    t0_ref,                # (N,)  f32
    t1_ref,                # (N,)  f32
    qof_ref,               # (n_pairs,) i32  query-tile index of packed step s
    kof_ref,               # (n_pairs,) i32  history-tile index of packed step s
    # tensor inputs (VMEM blocks)
    etq_ref,               # (1, TQ, 1)  event times, query layout (sublane)
    etk_ref,               # (1, 1, TK)  event times, history layout (lane)
    maskq_ref,             # (1, TQ, 1)
    maskk_ref,             # (1, 1, TK)
    slq_ref,               # (D, TQ, 1)  spatial locations, query layout
    slk_ref,               # (D, 1, TK)  spatial locations, history layout
    # outputs (VMEM blocks)
    space_ref,             # (1, 1, 1)  per-(b, q) spatial partial
    time_ref,              # (1, 1, 1)  per-(b, q) temporal partial
    # scratch (persist across the packed history steps of one q tile)
    m_ref,                 # (TQ, 1) shared running max of the decay stream
    s_a_ref,               # (TQ, 1) running sum exp(decay - m) * exp(-h*sq)
    s_b_ref,               # (TQ, 1) running sum exp(decay - m)
    ex_ref,                # (TQ, 1) running Hawkes excitation sum
):
    b = pl.program_id(0)
    s = pl.program_id(1)
    q = qof_ref[s]
    k = kof_ref[s]

    TQ = etq_ref.shape[1]
    TK = etk_ref.shape[2]
    D = slq_ref.shape[0]

    mu0           = params_ref[0]
    inv_std0      = params_ref[1]
    base_const    = params_ref[2]   # D * (logstd0 + 0.5*log(2*pi))
    neg_half_ivar = params_ref[3]   # -0.5 / sigma_sp^2
    sp_const      = params_ref[4]   # D * (sp_logstd + 0.5*log(2*pi))
    neg_inv_tau   = params_ref[5]
    mu            = params_ref[6]
    alpha         = params_ref[7]
    neg_beta      = params_ref[8]
    alpha_beta    = params_ref[9]
    t0v = t0_ref[b]
    t1v = t1_ref[b]

    # Packed pair bookkeeping (pure scalar int math, no extra prefetch arrays):
    #   first history tile of this q   <=> k == 0
    #   last (diagonal) tile of this q <=> (k+1)*TK >= (q+1)*TQ
    #   interior tile (fully below the diagonal, no triangle mask needed)
    #                                  <=> (k+1)*TK <= q*TQ
    is_first = k == 0
    is_last = (k + 1) * TK >= (q + 1) * TQ
    is_interior = (k + 1) * TK <= q * TQ

    # ---- per-(b, q) init at the first history tile ---------------------------
    @pl.when(is_first)
    def _init():
        m_ref[...] = jnp.full((TQ, 1), NEG_INF, jnp.float32)
        s_a_ref[...] = jnp.zeros((TQ, 1), jnp.float32)
        s_b_ref[...] = jnp.zeros((TQ, 1), jnp.float32)
        ex_ref[...] = jnp.zeros((TQ, 1), jnp.float32)
        space_ref[0] = jnp.zeros((1, 1), jnp.float32)
        time_ref[0] = jnp.zeros((1, 1), jnp.float32)

    # ---- batch-level constant terms, added once into the q == 0 partial ------
    @pl.when(jnp.logical_and(is_first, q == 0))
    def _base():
        # base density of the first event ~ N(mu0, exp(logstd0) I)
        x0 = slq_ref[:, 0, :]                                       # (D, 1)
        z = (x0 - mu0) * inv_std0
        ll0 = jnp.sum(-0.5 * z * z, axis=0, keepdims=True) - base_const
        space_ref[0] += ll0
        # constant part of the Hawkes compensator
        time_ref[0] += jnp.full((1, 1), -(mu * (t1v - t0v)), jnp.float32)

    et_q = etq_ref[0]                                               # (TQ, 1)
    et_k = etk_ref[0]                                               # (1, TK)
    mk_row = maskk_ref[0]                                           # (1, TK)

    # ---- heavy (TQ, TK) tile body (shared by interior / diagonal paths) ------
    def _accumulate(validb):
        dt = et_q - et_k                                            # (TQ, TK)

        # shared-max online logsumexp:
        #   stream B (normalizer): decay only
        #   stream A (numerator) : decay * exp(-h*sq); exp(-h*sq) in (0,1] so it
        #   can ride stream B's running max; exp(-sp_const) folded in at finalize
        bdec = jnp.where(validb, dt * neg_inv_tau, NEG_INF)
        m_old = m_ref[...]
        m_new = jnp.maximum(m_old, jnp.max(bdec, axis=-1, keepdims=True))
        scale = jnp.exp(m_old - m_new)                              # (TQ, 1)
        eb = jnp.exp(bdec - m_new)                                  # (TQ, TK)

        # pairwise squared distance (D is tiny -> keep it on the VPU)
        diff = slq_ref[0] - slk_ref[0]                              # (TQ, TK)
        sq = diff * diff
        for d in range(1, D):
            diff = slq_ref[d] - slk_ref[d]
            sq = sq + diff * diff
        w = jnp.exp(sq * neg_half_ivar)                             # in (0, 1]

        s_b_ref[...] = s_b_ref[...] * scale + jnp.sum(eb, axis=-1, keepdims=True)
        s_a_ref[...] = s_a_ref[...] * scale + jnp.sum(eb * w, axis=-1, keepdims=True)
        m_ref[...] = m_new

        # Hawkes excitation (clamp exponent, select instead of cast+multiply)
        excite = jnp.where(validb, jnp.exp(jnp.minimum(dt * neg_beta, 0.0)), 0.0)
        ex_ref[...] = ex_ref[...] + jnp.sum(excite, axis=-1, keepdims=True)

    @pl.when(is_interior)
    def _interior():
        # Tile is fully below the diagonal: only the history-valid mask matters.
        _accumulate(mk_row > 0.5)                                   # (1, TK) bcast

    @pl.when(jnp.logical_not(is_interior))
    def _diag():
        # Diagonal / partial tile: build the strictly-lower-triangular mask.
        row = lax.broadcasted_iota(jnp.int32, (TQ, TK), 0)
        col = lax.broadcasted_iota(jnp.int32, (TQ, TK), 1)
        offset = q * TQ - k * TK
        lower = (col - row) < offset
        _accumulate(jnp.logical_and(lower, mk_row > 0.5))

    # ---- finalize this query tile after its last (diagonal) history tile -----
    @pl.when(is_last)
    def _finalize():
        mq = maskq_ref[0]                                           # (TQ, 1)

        # spatial: loglik_ev = LSE(pair + decay) - LSE(decay); the shared max
        # cancels, exp(-sp_const) was factored out of stream A.
        gidx = q * TQ + lax.broadcasted_iota(jnp.int32, (TQ, 1), 0)
        ev_valid = jnp.logical_and(mq > 0.5, gidx >= 1)
        loglik_ev = (jnp.log(jnp.maximum(s_a_ref[...], 1e-37))
                     - jnp.log(s_b_ref[...]) - sp_const)
        # select (not multiply): masked rows may carry huge-negative values
        space_ref[0] += jnp.sum(jnp.where(ev_valid, loglik_ev, 0.0),
                                axis=0, keepdims=True)

        # temporal: Hawkes intensity at events + survival part of compensator
        lamb = mu + alpha_beta * ex_ref[...]                        # > 0 always
        t_ev = jnp.sum(jnp.log(lamb + 1e-8) * mq, axis=0, keepdims=True)
        expo = jnp.minimum((t1v - et_q) * neg_beta, 0.0) * mq       # masked pre-exp
        surv = jnp.sum(1.0 - jnp.exp(expo), axis=0, keepdims=True)
        time_ref[0] += t_ev - alpha * surv


# -----------------------------------------------------------------------------
# Wrapper: tile selection, padding, packed pair tables, pallas_call, reduce.
# -----------------------------------------------------------------------------
def _round_up(x, m):
    return ((x + m - 1) // m) * m


@jax.jit
def combined_spatiotemporal_forward(params, event_times, spatial_locations,
                                    input_mask, t0, t1):
    N, T = event_times.shape
    D = spatial_locations.shape[-1]

    # ---- tile selection: biggest tiles that make sense for this T ------------
    # (large tiles amortize the ~0.35us per-grid-step overhead; the (TQ,TK) f32
    #  temporaries at 256x512 are ~0.5 MiB each, far under every generation's
    #  VMEM including v7x's 64 MiB.)
    T128 = _round_up(max(T, 1), 128)
    if T128 <= 256:
        TQ = TK = T128
    else:
        TQ, TK = 256, 512
    T_pad = _round_up(T128, max(TQ, TK))
    NQ = T_pad // TQ
    NK = T_pad // TK

    # ---- packed lower-block-triangular pair list (static, host-side) ---------
    pairs = [(qi, ki) for qi in range(NQ) for ki in range(NK)
             if ki * TK < (qi + 1) * TQ]
    n_pairs = len(pairs)
    qof = jnp.asarray(np.array([p[0] for p in pairs], dtype=np.int32))
    kof = jnp.asarray(np.array([p[1] for p in pairs], dtype=np.int32))

    # ---- fused scalar constants (host/XLA-side folding) ----------------------
    p = params.astype(jnp.float32)
    kp = jnp.stack([
        p[0],                            # mu0
        p[2],                            # inv_std0
        D * (p[1] + 0.5 * LOG2PI),       # base_const
        -0.5 * p[4] * p[4],              # neg_half_inv_var_sp
        D * (p[3] + 0.5 * LOG2PI),       # sp_const
        -p[5],                           # neg_inv_tau
        p[6],                            # mu
        p[7],                            # alpha
        -p[8],                           # neg_beta
        p[7] * p[8],                     # alpha * beta
    ])

    pad = T_pad - T
    et = jnp.pad(event_times.astype(jnp.float32), ((0, 0), (0, pad)))
    mk = jnp.pad(input_mask.astype(jnp.float32), ((0, 0), (0, pad)))
    sl = jnp.pad(spatial_locations.astype(jnp.float32), ((0, 0), (0, pad), (0, 0)))

    etq = et[:, :, None]                          # (N, T_pad, 1)
    etk = et[:, None, :]                          # (N, 1, T_pad)
    maskq = mk[:, :, None]
    maskk = mk[:, None, :]
    sl_t = jnp.transpose(sl, (0, 2, 1))           # (N, D, T_pad)
    slq = sl_t.reshape(N * D, T_pad)[:, :, None]  # (N*D, T_pad, 1)
    slk = sl_t.reshape(N * D, 1, T_pad)           # (N*D, 1, T_pad)

    t0v = jnp.broadcast_to(jnp.asarray(t0, jnp.float32).reshape(-1), (N,))
    t1v = jnp.broadcast_to(jnp.asarray(t1, jnp.float32).reshape(-1), (N,))

    # Advisory cost: only the packed (lower-triangular) tiles are executed.
    tile_elems = N * n_pairs * TQ * TK
    cost = pl.CostEstimate(
        flops=int(tile_elems * (3 * D + 14)),
        transcendentals=int(3 * tile_elems),
        bytes_accessed=int(4 * N * n_pairs * (2 + D) * (TQ + TK)
                           + 4 * N * T_pad * (2 + D) + 8 * N * NQ),
    )

    space_parts, time_parts = pl.pallas_call(
        _combined_kernel,
        out_shape=(jax.ShapeDtypeStruct((N * NQ, 1, 1), jnp.float32),
                   jax.ShapeDtypeStruct((N * NQ, 1, 1), jnp.float32)),
        grid_spec=pltpu.PrefetchScalarGridSpec(
            num_scalar_prefetch=5,
            grid=(N, n_pairs),
            in_specs=[
                pl.BlockSpec((1, TQ, 1), lambda b, s, kp, t0, t1, qo, ko: (b, qo[s], 0)),   # etq
                pl.BlockSpec((1, 1, TK), lambda b, s, kp, t0, t1, qo, ko: (b, 0, ko[s])),   # etk
                pl.BlockSpec((1, TQ, 1), lambda b, s, kp, t0, t1, qo, ko: (b, qo[s], 0)),   # maskq
                pl.BlockSpec((1, 1, TK), lambda b, s, kp, t0, t1, qo, ko: (b, 0, ko[s])),   # maskk
                pl.BlockSpec((D, TQ, 1), lambda b, s, kp, t0, t1, qo, ko: (b, qo[s], 0)),   # slq
                pl.BlockSpec((D, 1, TK), lambda b, s, kp, t0, t1, qo, ko: (b, 0, ko[s])),   # slk
            ],
            out_specs=(
                pl.BlockSpec((1, 1, 1),
                             lambda b, s, kp, t0, t1, qo, ko: (b * NQ + qo[s], 0, 0)),
                pl.BlockSpec((1, 1, 1),
                             lambda b, s, kp, t0, t1, qo, ko: (b * NQ + qo[s], 0, 0)),
            ),
            scratch_shapes=[pltpu.VMEM((TQ, 1), jnp.float32)] * 4,
        ),
        compiler_params=pltpu.CompilerParams(
            # batch axis stays parallel so a v7x megacore still gets both TCs
            # busy when N >= 2; the packed pair axis carries the accumulators.
            dimension_semantics=("parallel", "arbitrary"),
            vmem_limit_bytes=32 * 1024 * 1024,
        ),
        cost_estimate=cost,
    )(kp, t0v, t1v, qof, kof, etq, etk, maskq, maskk, slq, slk)

    space = jnp.sum(space_parts.reshape(N, NQ), axis=1)
    time = jnp.sum(time_parts.reshape(N, NQ), axis=1)
    return space, time


# -----------------------------------------------------------------------------
# Pure-JAX reference (same math) for correctness checks.
# -----------------------------------------------------------------------------
def reference(params, et, sl, mask, t0, t1):
    pv = [float(v) for v in np.asarray(params)]
    mu0, logstd0, inv_std0, sp_logstd, inv_std_sp, inv_tau, mu, alpha, beta = pv
    et = jnp.asarray(et, jnp.float32)
    sl = jnp.asarray(sl, jnp.float32)
    mask = jnp.asarray(mask, jnp.float32)
    N, T = et.shape
    D = sl.shape[-1]
    t0 = jnp.broadcast_to(jnp.asarray(t0, jnp.float32).reshape(-1, 1), (N, 1))
    t1 = jnp.broadcast_to(jnp.asarray(t1, jnp.float32).reshape(-1, 1), (N, 1))

    lower = (jnp.arange(T)[None, :] < jnp.arange(T)[:, None])[None]
    dt = et[:, :, None] - et[:, None, :]
    valid = lower & (mask[:, None, :] > 0.5)

    diff = sl[:, :, None, :] - sl[:, None, :, :]
    sq = jnp.sum(diff * diff, -1)
    pair_ll = -0.5 * sq * inv_std_sp ** 2 - D * (sp_logstd + 0.5 * LOG2PI)
    dec = -dt * inv_tau
    lse_a = jax.scipy.special.logsumexp(jnp.where(valid, pair_ll + dec, NEG_INF), axis=-1)
    lse_b = jax.scipy.special.logsumexp(jnp.where(valid, dec, NEG_INF), axis=-1)
    loglik_ev = lse_a - lse_b
    ev_mask = (mask > 0.5) & (jnp.arange(T)[None, :] >= 1)
    space_hist = jnp.sum(jnp.where(ev_mask, loglik_ev, 0.0), -1)
    z = (sl[:, 0, :] - mu0) * inv_std0
    ll0 = jnp.sum(-0.5 * z * z, -1) - D * (logstd0 + 0.5 * LOG2PI)
    space = ll0 + space_hist

    excite = jnp.where(valid, jnp.exp(-beta * jnp.where(valid, dt, 0.0)), 0.0)
    lamb = mu + alpha * beta * jnp.sum(excite, -1)
    ll_ev = jnp.sum(jnp.log(lamb + 1e-8) * mask, -1)
    surv = (1.0 - jnp.exp(-beta * (t1 - et))) * mask
    comp = (mu * (t1 - t0))[:, 0] + alpha * jnp.sum(surv, -1)
    return space, ll_ev - comp


if __name__ == "__main__":
    def softplus(x):
        return float(np.log1p(np.exp(x)))

    # Deterministic parameters (matching the sub-models' __init__ shapes).
    mu0, logstd0 = 0.0, 0.0
    coeff_decay_raw, spatial_logstd = 0.1, 0.1
    mu_raw, alpha_raw, beta_raw = -1.75, -2.75, 0.25

    params = jnp.array([
        mu0,
        logstd0,
        float(np.exp(-logstd0)),            # inv_std0
        spatial_logstd,
        float(np.exp(-spatial_logstd)),     # inv_std_sp
        1.0 / softplus(coeff_decay_raw),    # inv_tau
        softplus(mu_raw),
        softplus(alpha_raw),
        softplus(beta_raw),
    ], dtype=jnp.float32)

    def run_case(key, N, T, D, n_valid, t_max, t1_val, rtol, atol):
        k1, k2 = jax.random.split(key)
        event_times = jnp.sort(
            jax.random.uniform(k1, (N, T), jnp.float32) * t_max, axis=-1)
        spatial_locations = jax.random.normal(k2, (N, T, D), jnp.float32)
        cols = jnp.arange(T)[None, :]
        input_mask = (cols < jnp.asarray(n_valid)[:, None]).astype(jnp.float32)
        t0 = jnp.zeros((N,), jnp.float32)
        t1 = jnp.full((N,), t1_val, jnp.float32)

        space_ll, time_ll = combined_spatiotemporal_forward(
            params, event_times, spatial_locations, input_mask, t0, t1)
        jax.block_until_ready((space_ll, time_ll))

        ref_space, ref_time = reference(params, event_times, spatial_locations,
                                        input_mask, t0, t1)
        np.testing.assert_allclose(np.asarray(space_ll), np.asarray(ref_space),
                                   rtol=rtol, atol=atol)
        np.testing.assert_allclose(np.asarray(time_ll), np.asarray(ref_time),
                                   rtol=rtol, atol=atol)

    key = jax.random.PRNGKey(0)
    ka, kb = jax.random.split(key)
    # small shape (single 128x128 diagonal tile path)
    run_case(ka, N=2, T=8, D=2, n_valid=[8, 5], t_max=10.0, t1_val=10.0,
             rtol=1e-4, atol=1e-4)
    # larger shape: T_pad=1024 -> TQ=256/TK=512, packed pair list of 6 tiles,
    # exercises the interior fast path, diagonal triangle path, multi-k online
    # LSE accumulation and the per-(b, q) partial outputs.
    run_case(kb, N=2, T=520, D=2, n_valid=[520, 300], t_max=50.0, t1_val=60.0,
             rtol=1e-3, atol=1e-3)

    print("KERNEL_OK")
</pallas_src>

<mosaic_0001>
module attributes {stable_mosaic.version = 11 : i64} {
  func.func @_combined_kernel(%arg0: i32, %arg1: i32, %arg2: memref<10xf32, #tpu.memory_space<smem>>, %arg3: memref<2xf32, #tpu.memory_space<smem>>, %arg4: memref<2xf32, #tpu.memory_space<smem>>, %arg5: memref<1xi32, #tpu.memory_space<smem>>, %arg6: memref<1xi32, #tpu.memory_space<smem>>, %arg7: memref<1x128x1xf32, #tpu.memory_space<vmem>>, %arg8: memref<1x1x128xf32, #tpu.memory_space<vmem>>, %arg9: memref<1x128x1xf32, #tpu.memory_space<vmem>>, %arg10: memref<1x1x128xf32, #tpu.memory_space<vmem>>, %arg11: memref<2x128x1xf32, #tpu.memory_space<vmem>>, %arg12: memref<2x1x128xf32, #tpu.memory_space<vmem>>, %arg13: memref<1x1x1xf32, #tpu.memory_space<vmem>>, %arg14: memref<1x1x1xf32, #tpu.memory_space<vmem>>, %arg15: memref<128x1xf32, #tpu.memory_space<vmem>>, %arg16: memref<128x1xf32, #tpu.memory_space<vmem>>, %arg17: memref<128x1xf32, #tpu.memory_space<vmem>>, %arg18: memref<128x1xf32, #tpu.memory_space<vmem>>) attributes {dimension_semantics = [#tpu.dimension_semantics<parallel>, #tpu.dimension_semantics<arbitrary>], iteration_bounds = array<i64: 2, 1>, scalar_prefetch = 5 : i64, scratch_operands = 4 : i64, tpu.core_type = #tpu.core_type<tc>, window_params = [{transform_indices = @transform_0, window_bounds = array<i64: 1, 128, 1>}, {transform_indices = @transform_1, window_bounds = array<i64: 1, 1, 128>}, {transform_indices = @transform_2, window_bounds = array<i64: 1, 128, 1>}, {transform_indices = @transform_3, window_bounds = array<i64: 1, 1, 128>}, {transform_indices = @transform_4, window_bounds = array<i64: 2, 128, 1>}, {transform_indices = @transform_5, window_bounds = array<i64: 2, 1, 128>}, {transform_indices = @transform_6, window_bounds = array<i64: 1, 1, 1>}, {transform_indices = @transform_7, window_bounds = array<i64: 1, 1, 1>}]} {
    %0 = arith.index_cast %arg1 : i32 to index
    %1 = memref.load %arg5[%0] : memref<1xi32, #tpu.memory_space<smem>>
    %2 = arith.index_cast %arg1 : i32 to index
    %3 = memref.load %arg6[%2] : memref<1xi32, #tpu.memory_space<smem>>
    %c0 = arith.constant 0 : index
    %4 = memref.load %arg2[%c0] : memref<10xf32, #tpu.memory_space<smem>>
    %c1 = arith.constant 1 : index
    %5 = memref.load %arg2[%c1] : memref<10xf32, #tpu.memory_space<smem>>
    %c2 = arith.constant 2 : index
    %6 = memref.load %arg2[%c2] : memref<10xf32, #tpu.memory_space<smem>>
    %c3 = arith.constant 3 : index
    %7 = memref.load %arg2[%c3] : memref<10xf32, #tpu.memory_space<smem>>
    %c4 = arith.constant 4 : index
    %8 = memref.load %arg2[%c4] : memref<10xf32, #tpu.memory_space<smem>>
    %c5 = arith.constant 5 : index
    %9 = memref.load %arg2[%c5] : memref<10xf32, #tpu.memory_space<smem>>
    %c6 = arith.constant 6 : index
    %10 = memref.load %arg2[%c6] : memref<10xf32, #tpu.memory_space<smem>>
    %c7 = arith.constant 7 : index
    %11 = memref.load %arg2[%c7] : memref<10xf32, #tpu.memory_space<smem>>
    %c8 = arith.constant 8 : index
    %12 = memref.load %arg2[%c8] : memref<10xf32, #tpu.memory_space<smem>>
    %c9 = arith.constant 9 : index
    %13 = memref.load %arg2[%c9] : memref<10xf32, #tpu.memory_space<smem>>
    %14 = arith.index_cast %arg0 : i32 to index
    %15 = memref.load %arg3[%14] : memref<2xf32, #tpu.memory_space<smem>>
    %16 = arith.index_cast %arg0 : i32 to index
    %17 = memref.load %arg4[%16] : memref<2xf32, #tpu.memory_space<smem>>
    %c0_i32 = arith.constant 0 : i32
    %18 = arith.cmpi eq, %3, %c0_i32 : i32
    %c1_i32 = arith.constant 1 : i32
    %19 = arith.addi %3, %c1_i32 : i32
    %c128_i32 = arith.constant 128 : i32
    %20 = arith.muli %19, %c128_i32 : i32
    %c1_i32_0 = arith.constant 1 : i32
    %21 = arith.addi %1, %c1_i32_0 : i32
    %c128_i32_1 = arith.constant 128 : i32
    %22 = arith.muli %21, %c128_i32_1 : i32
    %23 = arith.cmpi sge, %20, %22 : i32
    %c1_i32_2 = arith.constant 1 : i32
    %24 = arith.addi %3, %c1_i32_2 : i32
    %c128_i32_3 = arith.constant 128 : i32
    %25 = arith.muli %24, %c128_i32_3 : i32
    %c128_i32_4 = arith.constant 128 : i32
    %26 = arith.muli %1, %c128_i32_4 : i32
    %27 = arith.cmpi sle, %25, %26 : i32
    %28 = arith.extui %18 : i1 to i32
    %c0_i32_5 = arith.constant 0 : i32
    %29 = arith.cmpi ne, %28, %c0_i32_5 : i32
    scf.if %29 {
      %cst = arith.constant -1.000000e+20 : f32
      %47 = vector.broadcast %cst : f32 to vector<128x1xf32>
      %c0_20 = arith.constant 0 : index
      %c0_21 = arith.constant 0 : index
      %48 = vector.load %arg15[%c0_20, %c0_21] : memref<128x1xf32, #tpu.memory_space<vmem>>, vector<128x1xf32>
      tpu.vector_store %arg15[%c0_20, %c0_21], %47 {strides = array<i32>} : memref<128x1xf32, #tpu.memory_space<vmem>>, vector<128x1xf32>,
      %cst_22 = arith.constant 0.000000e+00 : f32
      %49 = vector.broadcast %cst_22 : f32 to vector<128x1xf32>
      %c0_23 = arith.constant 0 : index
      %c0_24 = arith.constant 0 : index
      %50 = vector.load %arg16[%c0_23, %c0_24] : memref<128x1xf32, #tpu.memory_space<vmem>>, vector<128x1xf32>
      tpu.vector_store %arg16[%c0_23, %c0_24], %49 {strides = array<i32>} : memref<128x1xf32, #tpu.memory_space<vmem>>, vector<128x1xf32>,
      %cst_25 = arith.constant 0.000000e+00 : f32
      %51 = vector.broadcast %cst_25 : f32 to vector<128x1xf32>
      %c0_26 = arith.constant 0 : index
      %c0_27 = arith.constant 0 : index
      %52 = vector.load %arg17[%c0_26, %c0_27] : memref<128x1xf32, #tpu.memory_space<vmem>>, vector<128x1xf32>
      tpu.vector_store %arg17[%c0_26, %c0_27], %51 {strides = array<i32>} : memref<128x1xf32, #tpu.memory_space<vmem>>, vector<128x1xf32>,
      %cst_28 = arith.constant 0.000000e+00 : f32
      %53 = vector.broadcast %cst_28 : f32 to vector<128x1xf32>
      %c0_29 = arith.constant 0 : index
      %c0_30 = arith.constant 0 : index
      %54 = vector.load %arg18[%c0_29, %c0_30] : memref<128x1xf32, #tpu.memory_space<vmem>>, vector<128x1xf32>
      tpu.vector_store %arg18[%c0_29, %c0_30], %53 {strides = array<i32>} : memref<128x1xf32, #tpu.memory_space<vmem>>, vector<128x1xf32>,
      %cst_31 = arith.constant 0.000000e+00 : f32
      %55 = vector.broadcast %cst_31 : f32 to vector<1x1xf32>
      %c0_32 = arith.constant 0 : index
      %c0_33 = arith.constant 0 : index
      %c0_34 = arith.constant 0 : index
      %56 = vector.load %arg13[%c0_32, %c0_33, %c0_34] : memref<1x1x1xf32, #tpu.memory_space<vmem>>, vector<1x1x1xf32>
      %57 = vector.shape_cast %56 : vector<1x1x1xf32> to vector<1x1xf32>
      %58 = vector.shape_cast %55 : vector<1x1xf32> to vector<1x1x1xf32>
      tpu.vector_store %arg13[%c0_32, %c0_33, %c0_34], %58 {strides = array<i32>} : memref<1x1x1xf32, #tpu.memory_space<vmem>>, vector<1x1x1xf32>,
      %cst_35 = arith.constant 0.000000e+00 : f32
      %59 = vector.broadcast %cst_35 : f32 to vector<1x1xf32>
      %c0_36 = arith.constant 0 : index
      %c0_37 = arith.constant 0 : index
      %c0_38 = arith.constant 0 : index
      %60 = vector.load %arg14[%c0_36, %c0_37, %c0_38] : memref<1x1x1xf32, #tpu.memory_space<vmem>>, vector<1x1x1xf32>
      %61 = vector.shape_cast %60 : vector<1x1x1xf32> to vector<1x1xf32>
      %62 = vector.shape_cast %59 : vector<1x1xf32> to vector<1x1x1xf32>
      tpu.vector_store %arg14[%c0_36, %c0_37, %c0_38], %62 {strides = array<i32>} : memref<1x1x1xf32, #tpu.memory_space<vmem>>, vector<1x1x1xf32>,
    } else {
    }
    %c0_i32_6 = arith.constant 0 : i32
    %30 = arith.cmpi eq, %1, %c0_i32_6 : i32
    %31 = arith.andi %18, %30 : i1
    %32 = arith.extui %31 : i1 to i32
    %c0_i32_7 = arith.constant 0 : i32
    %33 = arith.cmpi ne, %32, %c0_i32_7 : i32
    scf.if %33 {
      %c0_20 = arith.constant 0 : index
      %c0_21 = arith.constant 0 : index
      %c0_22 = arith.constant 0 : index
      %47 = vector.load %arg11[%c0_20, %c0_21, %c0_22] : memref<2x128x1xf32, #tpu.memory_space<vmem>>, vector<2x1x1xf32>
      %48 = vector.shape_cast %47 : vector<2x1x1xf32> to vector<2x1xf32>
      %49 = vector.broadcast %4 : f32 to vector<2x1xf32>
      %50 = arith.subf %48, %49 : vector<2x1xf32>
      %51 = vector.broadcast %5 : f32 to vector<2x1xf32>
      %52 = arith.mulf %50, %51 : vector<2x1xf32>
      %cst = arith.constant -5.000000e-01 : f32
      %53 = vector.broadcast %cst : f32 to vector<2x1xf32>
      %54 = arith.mulf %53, %52 : vector<2x1xf32>
      %55 = arith.mulf %54, %52 : vector<2x1xf32>
      %cst_23 = arith.constant dense<0.000000e+00> : vector<1xf32>
      %56 = vector.multi_reduction <add>, %55, %cst_23 [0] : vector<2x1xf32> to vector<1xf32>
      %57 = vector.shape_cast %56 : vector<1xf32> to vector<1x1xf32>
      %58 = vector.broadcast %6 : f32 to vector<1x1xf32>
      %59 = arith.subf %57, %58 : vector<1x1xf32>
      %c0_24 = arith.constant 0 : index
      %c0_25 = arith.constant 0 : index
      %c0_26 = arith.constant 0 : index
      %60 = vector.load %arg13[%c0_24, %c0_25, %c0_26] : memref<1x1x1xf32, #tpu.memory_space<vmem>>, vector<1x1x1xf32>
      %61 = vector.shape_cast %60 : vector<1x1x1xf32> to vector<1x1xf32>
      %62 = arith.addf %61, %59 : vector<1x1xf32>
      %c0_27 = arith.constant 0 : index
      %c0_28 = arith.constant 0 : index
      %c0_29 = arith.constant 0 : index
      %63 = vector.load %arg13[%c0_27, %c0_28, %c0_29] : memref<1x1x1xf32, #tpu.memory_space<vmem>>, vector<1x1x1xf32>
      %64 = vector.shape_cast %63 : vector<1x1x1xf32> to vector<1x1xf32>
      %65 = vector.shape_cast %62 : vector<1x1xf32> to vector<1x1x1xf32>
      tpu.vector_store %arg13[%c0_27, %c0_28, %c0_29], %65 {strides = array<i32>} : memref<1x1x1xf32, #tpu.memory_space<vmem>>, vector<1x1x1xf32>,
      %c0_30 = arith.constant 0 : index
      %c0_31 = arith.constant 0 : index
      %c0_32 = arith.constant 0 : index
      %66 = vector.load %arg14[%c0_30, %c0_31, %c0_32] : memref<1x1x1xf32, #tpu.memory_space<vmem>>, vector<1x1x1xf32>
      %67 = vector.shape_cast %66 : vector<1x1x1xf32> to vector<1x1xf32>
      %68 = arith.subf %17, %15 : f32
      %69 = arith.mulf %10, %68 : f32
      %cst_33 = arith.constant 0.000000e+00 : f32
      %70 = arith.subf %cst_33, %69 : f32
      %71 = vector.broadcast %70 : f32 to vector<1x1xf32>
      %72 = arith.addf %67, %71 : vector<1x1xf32>
      %c0_34 = arith.constant 0 : index
      %c0_35 = arith.constant 0 : index
      %c0_36 = arith.constant 0 : index
      %73 = vector.load %arg14[%c0_34, %c0_35, %c0_36] : memref<1x1x1xf32, #tpu.memory_space<vmem>>, vector<1x1x1xf32>
      %74 = vector.shape_cast %73 : vector<1x1x1xf32> to vector<1x1xf32>
      %75 = vector.shape_cast %72 : vector<1x1xf32> to vector<1x1x1xf32>
      tpu.vector_store %arg14[%c0_34, %c0_35, %c0_36], %75 {strides = array<i32>} : memref<1x1x1xf32, #tpu.memory_space<vmem>>, vector<1x1x1xf32>,
    } else {
    }
    %c0_8 = arith.constant 0 : index
    %c0_9 = arith.constant 0 : index
    %c0_10 = arith.constant 0 : index
    %34 = vector.load %arg7[%c0_8, %c0_9, %c0_10] : memref<1x128x1xf32, #tpu.memory_space<vmem>>, vector<1x128x1xf32>
    %35 = vector.shape_cast %34 : vector<1x128x1xf32> to vector<128x1xf32>
    %c0_11 = arith.constant 0 : index
    %c0_12 = arith.constant 0 : index
    %c0_13 = arith.constant 0 : index
    %36 = vector.load %arg8[%c0_11, %c0_12, %c0_13] : memref<1x1x128xf32, #tpu.memory_space<vmem>>, vector<1x1x128xf32>
    %37 = vector.shape_cast %36 : vector<1x1x128xf32> to vector<1x128xf32>
    %c0_14 = arith.constant 0 : index
    %c0_15 = arith.constant 0 : index
    %c0_16 = arith.constant 0 : index
    %38 = vector.load %arg10[%c0_14, %c0_15, %c0_16] : memref<1x1x128xf32, #tpu.memory_space<vmem>>, vector<1x1x128xf32>
    %39 = vector.shape_cast %38 : vector<1x1x128xf32> to vector<1x128xf32>
    %40 = arith.extui %27 : i1 to i32
    %c0_i32_17 = arith.constant 0 : i32
    %41 = arith.cmpi ne, %40, %c0_i32_17 : i32
    scf.if %41 {
      %cst = arith.constant 5.000000e-01 : f32
      %47 = vector.broadcast %cst : f32 to vector<1x128xf32>
      %48 = arith.cmpf ogt, %39, %47 : vector<1x128xf32>
      %49 = vector.broadcast %35 : vector<128x1xf32> to vector<128x128xf32>
      %50 = vector.broadcast %37 : vector<1x128xf32> to vector<128x128xf32>
      %51 = arith.subf %49, %50 : vector<128x128xf32>
      %52 = vector.broadcast %9 : f32 to vector<128x128xf32>
      %53 = arith.mulf %51, %52 : vector<128x128xf32>
      %cst_20 = arith.constant -1.000000e+20 : f32
      %54 = vector.shape_cast %48 : vector<1x128xi1> to vector<1x128xi1>
      %55 = vector.broadcast %54 : vector<1x128xi1> to vector<128x128xi1>
      %56 = vector.broadcast %cst_20 : f32 to vector<128x128xf32>
      %57 = arith.select %55, %53, %56 : vector<128x128xi1>, vector<128x128xf32>
      %c0_21 = arith.constant 0 : index
      %c0_22 = arith.constant 0 : index
      %58 = vector.load %arg15[%c0_21, %c0_22] : memref<128x1xf32, #tpu.memory_space<vmem>>, vector<128x1xf32>
      %cst_23 = arith.constant dense<0xFF800000> : vector<128xf32>
      %59 = vector.multi_reduction <maximumf>, %57, %cst_23 [1] : vector<128x128xf32> to vector<128xf32>
      %60 = vector.shape_cast %59 : vector<128xf32> to vector<128x1xf32>
      %61 = arith.maximumf %58, %60 : vector<128x1xf32>
      %62 = arith.subf %58, %61 : vector<128x1xf32>
      %63 = math.exp %62 : vector<128x1xf32>
      %64 = vector.broadcast %61 : vector<128x1xf32> to vector<128x128xf32>
      %65 = arith.subf %57, %64 : vector<128x128xf32>
      %66 = math.exp %65 : vector<128x128xf32>
      %c0_24 = arith.constant 0 : index
      %c0_25 = arith.constant 0 : index
      %c0_26 = arith.constant 0 : index
      %67 = vector.load %arg11[%c0_24, %c0_25, %c0_26] : memref<2x128x1xf32, #tpu.memory_space<vmem>>, vector<1x128x1xf32>
      %68 = vector.shape_cast %67 : vector<1x128x1xf32> to vector<128x1xf32>
      %c0_27 = arith.constant 0 : index
      %c0_28 = arith.constant 0 : index
      %c0_29 = arith.constant 0 : index
      %69 = vector.load %arg12[%c0_27, %c0_28, %c0_29] : memref<2x1x128xf32, #tpu.memory_space<vmem>>, vector<1x1x128xf32>
      %70 = vector.shape_cast %69 : vector<1x1x128xf32> to vector<1x128xf32>
      %71 = vector.broadcast %68 : vector<128x1xf32> to vector<128x128xf32>
      %72 = vector.broadcast %70 : vector<1x128xf32> to vector<128x128xf32>
      %73 = arith.subf %71, %72 : vector<128x128xf32>
      %74 = arith.mulf %73, %73 : vector<128x128xf32>
      %c1_30 = arith.constant 1 : index
      %c0_31 = arith.constant 0 : index
      %c0_32 = arith.constant 0 : index
      %75 = vector.load %arg11[%c1_30, %c0_31, %c0_32] : memref<2x128x1xf32, #tpu.memory_space<vmem>>, vector<1x128x1xf32>
      %76 = vector.shape_cast %75 : vector<1x128x1xf32> to vector<128x1xf32>
      %c1_33 = arith.constant 1 : index
      %c0_34 = arith.constant 0 : index
      %c0_35 = arith.constant 0 : index
      %77 = vector.load %arg12[%c1_33, %c0_34, %c0_35] : memref<2x1x128xf32, #tpu.memory_space<vmem>>, vector<1x1x128xf32>
      %78 = vector.shape_cast %77 : vector<1x1x128xf32> to vector<1x128xf32>
      %79 = vector.broadcast %76 : vector<128x1xf32> to vector<128x128xf32>
      %80 = vector.broadcast %78 : vector<1x128xf32> to vector<128x128xf32>
      %81 = arith.subf %79, %80 : vector<128x128xf32>
      %82 = arith.mulf %81, %81 : vector<128x128xf32>
      %83 = arith.addf %74, %82 : vector<128x128xf32>
      %84 = vector.broadcast %7 : f32 to vector<128x128xf32>
      %85 = arith.mulf %83, %84 : vector<128x128xf32>
      %86 = math.exp %85 : vector<128x128xf32>
      %c0_36 = arith.constant 0 : index
      %c0_37 = arith.constant 0 : index
      %87 = vector.load %arg17[%c0_36, %c0_37] : memref<128x1xf32, #tpu.memory_space<vmem>>, vector<128x1xf32>
      %88 = arith.mulf %87, %63 : vector<128x1xf32>
      %cst_38 = arith.constant dense<0.000000e+00> : vector<128xf32>
      %89 = vector.multi_reduction <add>, %66, %cst_38 [1] : vector<128x128xf32> to vector<128xf32>
      %90 = vector.shape_cast %89 : vector<128xf32> to vector<128x1xf32>
      %91 = arith.addf %88, %90 : vector<128x1xf32>
      %c0_39 = arith.constant 0 : index
      %c0_40 = arith.constant 0 : index
      %92 = vector.load %arg17[%c0_39, %c0_40] : memref<128x1xf32, #tpu.memory_space<vmem>>, vector<128x1xf32>
      tpu.vector_store %arg17[%c0_39, %c0_40], %91 {strides = array<i32>} : memref<128x1xf32, #tpu.memory_space<vmem>>, vector<128x1xf32>,
      %c0_41 = arith.constant 0 : index
      %c0_42 = arith.constant 0 : index
      %93 = vector.load %arg16[%c0_41, %c0_42] : memref<128x1xf32, #tpu.memory_space<vmem>>, vector<128x1xf32>
      %94 = arith.mulf %93, %63 : vector<128x1xf32>
      %95 = arith.mulf %66, %86 : vector<128x128xf32>
      %cst_43 = arith.constant dense<0.000000e+00> : vector<128xf32>
      %96 = vector.multi_reduction <add>, %95, %cst_43 [1] : vector<128x128xf32> to vector<128xf32>
      %97 = vector.shape_cast %96 : vector<128xf32> to vector<128x1xf32>
      %98 = arith.addf %94, %97 : vector<128x1xf32>
      %c0_44 = arith.constant 0 : index
      %c0_45 = arith.constant 0 : index
      %99 = vector.load %arg16[%c0_44, %c0_45] : memref<128x1xf32, #tpu.memory_space<vmem>>, vector<128x1xf32>
      tpu.vector_store %arg16[%c0_44, %c0_45], %98 {strides = array<i32>} : memref<128x1xf32, #tpu.memory_space<vmem>>, vector<128x1xf32>,
      %c0_46 = arith.constant 0 : index
      %c0_47 = arith.constant 0 : index
      %100 = vector.load %arg15[%c0_46, %c0_47] : memref<128x1xf32, #tpu.memory_space<vmem>>, vector<128x1xf32>
      tpu.vector_store %arg15[%c0_46, %c0_47], %61 {strides = array<i32>} : memref<128x1xf32, #tpu.memory_space<vmem>>, vector<128x1xf32>,
      %101 = vector.broadcast %12 : f32 to vector<128x128xf32>
      %102 = arith.mulf %51, %101 : vector<128x128xf32>
      %cst_48 = arith.constant 0.000000e+00 : f32
      %103 = vector.broadcast %cst_48 : f32 to vector<128x128xf32>
      %104 = arith.minimumf %102, %103 : vector<128x128xf32>
      %105 = math.exp %104 : vector<128x128xf32>
      %cst_49 = arith.constant 0.000000e+00 : f32
      %106 = vector.shape_cast %48 : vector<1x128xi1> to vector<1x128xi1>
      %107 = vector.broadcast %106 : vector<1x128xi1> to vector<128x128xi1>
      %108 = vector.broadcast %cst_49 : f32 to vector<128x128xf32>
      %109 = arith.select %107, %105, %108 : vector<128x128xi1>, vector<128x128xf32>
      %c0_50 = arith.constant 0 : index
      %c0_51 = arith.constant 0 : index
      %110 = vector.load %arg18[%c0_50, %c0_51] : memref<128x1xf32, #tpu.memory_space<vmem>>, vector<128x1xf32>
      %cst_52 = arith.constant dense<0.000000e+00> : vector<128xf32>
      %111 = vector.multi_reduction <add>, %109, %cst_52 [1] : vector<128x128xf32> to vector<128xf32>
      %112 = vector.shape_cast %111 : vector<128xf32> to vector<128x1xf32>
      %113 = arith.addf %110, %112 : vector<128x1xf32>
      %c0_53 = arith.constant 0 : index
      %c0_54 = arith.constant 0 : index
      %114 = vector.load %arg18[%c0_53, %c0_54] : memref<128x1xf32, #tpu.memory_space<vmem>>, vector<128x1xf32>
      tpu.vector_store %arg18[%c0_53, %c0_54], %113 {strides = array<i32>} : memref<128x1xf32, #tpu.memory_space<vmem>>, vector<128x1xf32>,
    } else {
    }
    %true = arith.constant true
    %42 = arith.xori %27, %true : i1
    %43 = arith.extui %42 : i1 to i32
    %c0_i32_18 = arith.constant 0 : i32
    %44 = arith.cmpi ne, %43, %c0_i32_18 : i32
    scf.if %44 {
      %47 = tpu.iota {dimensions = array<i32: 0>} : vector<128x128xi32>
      %48 = tpu.iota {dimensions = array<i32: 1>} : vector<128x128xi32>
      %c128_i32_20 = arith.constant 128 : i32
      %49 = arith.muli %1, %c128_i32_20 : i32
      %c128_i32_21 = arith.constant 128 : i32
      %50 = arith.muli %3, %c128_i32_21 : i32
      %51 = arith.subi %49, %50 : i32
      %52 = arith.subi %48, %47 : vector<128x128xi32>
      %53 = vector.broadcast %51 : i32 to vector<128x128xi32>
      %54 = arith.cmpi slt, %52, %53 : vector<128x128xi32>
      %cst = arith.constant 5.000000e-01 : f32
      %55 = vector.broadcast %cst : f32 to vector<1x128xf32>
      %56 = arith.cmpf ogt, %39, %55 : vector<1x128xf32>
      %57 = vector.broadcast %56 : vector<1x128xi1> to vector<128x128xi1>
      %58 = arith.andi %54, %57 : vector<128x128xi1>
      %59 = vector.broadcast %35 : vector<128x1xf32> to vector<128x128xf32>
      %60 = vector.broadcast %37 : vector<1x128xf32> to vector<128x128xf32>
      %61 = arith.subf %59, %60 : vector<128x128xf32>
      %62 = vector.broadcast %9 : f32 to vector<128x128xf32>
      %63 = arith.mulf %61, %62 : vector<128x128xf32>
      %cst_22 = arith.constant -1.000000e+20 : f32
      %64 = vector.broadcast %cst_22 : f32 to vector<128x128xf32>
      %65 = arith.select %58, %63, %64 : vector<128x128xi1>, vector<128x128xf32>
      %c0_23 = arith.constant 0 : index
      %c0_24 = arith.constant 0 : index
      %66 = vector.load %arg15[%c0_23, %c0_24] : memref<128x1xf32, #tpu.memory_space<vmem>>, vector<128x1xf32>
      %cst_25 = arith.constant dense<0xFF800000> : vector<128xf32>
      %67 = vector.multi_reduction <maximumf>, %65, %cst_25 [1] : vector<128x128xf32> to vector<128xf32>
      %68 = vector.shape_cast %67 : vector<128xf32> to vector<128x1xf32>
      %69 = arith.maximumf %66, %68 : vector<128x1xf32>
      %70 = arith.subf %66, %69 : vector<128x1xf32>
      %71 = math.exp %70 : vector<128x1xf32>
      %72 = vector.broadcast %69 : vector<128x1xf32> to vector<128x128xf32>
      %73 = arith.subf %65, %72 : vector<128x128xf32>
      %74 = math.exp %73 : vector<128x128xf32>
      %c0_26 = arith.constant 0 : index
      %c0_27 = arith.constant 0 : index
      %c0_28 = arith.constant 0 : index
      %75 = vector.load %arg11[%c0_26, %c0_27, %c0_28] : memref<2x128x1xf32, #tpu.memory_space<vmem>>, vector<1x128x1xf32>
      %76 = vector.shape_cast %75 : vector<1x128x1xf32> to vector<128x1xf32>
      %c0_29 = arith.constant 0 : index
      %c0_30 = arith.constant 0 : index
      %c0_31 = arith.constant 0 : index
      %77 = vector.load %arg12[%c0_29, %c0_30, %c0_31] : memref<2x1x128xf32, #tpu.memory_space<vmem>>, vector<1x1x128xf32>
      %78 = vector.shape_cast %77 : vector<1x1x128xf32> to vector<1x128xf32>
      %79 = vector.broadcast %76 : vector<128x1xf32> to vector<128x128xf32>
      %80 = vector.broadcast %78 : vector<1x128xf32> to vector<128x128xf32>
      %81 = arith.subf %79, %80 : vector<128x128xf32>
      %82 = arith.mulf %81, %81 : vector<128x128xf32>
      %c1_32 = arith.constant 1 : index
      %c0_33 = arith.constant 0 : index
      %c0_34 = arith.constant 0 : index
      %83 = vector.load %arg11[%c1_32, %c0_33, %c0_34] : memref<2x128x1xf32, #tpu.memory_space<vmem>>, vector<1x128x1xf32>
      %84 = vector.shape_cast %83 : vector<1x128x1xf32> to vector<128x1xf32>
      %c1_35 = arith.constant 1 : index
      %c0_36 = arith.constant 0 : index
      %c0_37 = arith.constant 0 : index
      %85 = vector.load %arg12[%c1_35, %c0_36, %c0_37] : memref<2x1x128xf32, #tpu.memory_space<vmem>>, vector<1x1x128xf32>
      %86 = vector.shape_cast %85 : vector<1x1x128xf32> to vector<1x128xf32>
      %87 = vector.broadcast %84 : vector<128x1xf32> to vector<128x128xf32>
      %88 = vector.broadcast %86 : vector<1x128xf32> to vector<128x128xf32>
      %89 = arith.subf %87, %88 : vector<128x128xf32>
      %90 = arith.mulf %89, %89 : vector<128x128xf32>
      %91 = arith.addf %82, %90 : vector<128x128xf32>
      %92 = vector.broadcast %7 : f32 to vector<128x128xf32>
      %93 = arith.mulf %91, %92 : vector<128x128xf32>
      %94 = math.exp %93 : vector<128x128xf32>
      %c0_38 = arith.constant 0 : index
      %c0_39 = arith.constant 0 : index
      %95 = vector.load %arg17[%c0_38, %c0_39] : memref<128x1xf32, #tpu.memory_space<vmem>>, vector<128x1xf32>
      %96 = arith.mulf %95, %71 : vector<128x1xf32>
      %cst_40 = arith.constant dense<0.000000e+00> : vector<128xf32>
      %97 = vector.multi_reduction <add>, %74, %cst_40 [1] : vector<128x128xf32> to vector<128xf32>
      %98 = vector.shape_cast %97 : vector<128xf32> to vector<128x1xf32>
      %99 = arith.addf %96, %98 : vector<128x1xf32>
      %c0_41 = arith.constant 0 : index
      %c0_42 = arith.constant 0 : index
      %100 = vector.load %arg17[%c0_41, %c0_42] : memref<128x1xf32, #tpu.memory_space<vmem>>, vector<128x1xf32>
      tpu.vector_store %arg17[%c0_41, %c0_42], %99 {strides = array<i32>} : memref<128x1xf32, #tpu.memory_space<vmem>>, vector<128x1xf32>,
      %c0_43 = arith.constant 0 : index
      %c0_44 = arith.constant 0 : index
      %101 = vector.load %arg16[%c0_43, %c0_44] : memref<128x1xf32, #tpu.memory_space<vmem>>, vector<128x1xf32>
      %102 = arith.mulf %101, %71 : vector<128x1xf32>
      %103 = arith.mulf %74, %94 : vector<128x128xf32>
      %cst_45 = arith.constant dense<0.000000e+00> : vector<128xf32>
      %104 = vector.multi_reduction <add>, %103, %cst_45 [1] : vector<128x128xf32> to vector<128xf32>
      %105 = vector.shape_cast %104 : vector<128xf32> to vector<128x1xf32>
      %106 = arith.addf %102, %105 : vector<128x1xf32>
      %c0_46 = arith.constant 0 : index
      %c0_47 = arith.constant 0 : index
      %107 = vector.load %arg16[%c0_46, %c0_47] : memref<128x1xf32, #tpu.memory_space<vmem>>, vector<128x1xf32>
      tpu.vector_store %arg16[%c0_46, %c0_47], %106 {strides = array<i32>} : memref<128x1xf32, #tpu.memory_space<vmem>>, vector<128x1xf32>,
      %c0_48 = arith.constant 0 : index
      %c0_49 = arith.constant 0 : index
      %108 = vector.load %arg15[%c0_48, %c0_49] : memref<128x1xf32, #tpu.memory_space<vmem>>, vector<128x1xf32>
      tpu.vector_store %arg15[%c0_48, %c0_49], %69 {strides = array<i32>} : memref<128x1xf32, #tpu.memory_space<vmem>>, vector<128x1xf32>,
      %109 = vector.broadcast %12 : f32 to vector<128x128xf32>
      %110 = arith.mulf %61, %109 : vector<128x128xf32>
      %cst_50 = arith.constant 0.000000e+00 : f32
      %111 = vector.broadcast %cst_50 : f32 to vector<128x128xf32>
      %112 = arith.minimumf %110, %111 : vector<128x128xf32>
      %113 = math.exp %112 : vector<128x128xf32>
      %cst_51 = arith.constant 0.000000e+00 : f32
      %114 = vector.broadcast %cst_51 : f32 to vector<128x128xf32>
      %115 = arith.select %58, %113, %114 : vector<128x128xi1>, vector<128x128xf32>
      %c0_52 = arith.constant 0 : index
      %c0_53 = arith.constant 0 : index
      %116 = vector.load %arg18[%c0_52, %c0_53] : memref<128x1xf32, #tpu.memory_space<vmem>>, vector<128x1xf32>
      %cst_54 = arith.constant dense<0.000000e+00> : vector<128xf32>
      %117 = vector.multi_reduction <add>, %115, %cst_54 [1] : vector<128x128xf32> to vector<128xf32>
      %118 = vector.shape_cast %117 : vector<128xf32> to vector<128x1xf32>
      %119 = arith.addf %116, %118 : vector<128x1xf32>
      %c0_55 = arith.constant 0 : index
      %c0_56 = arith.constant 0 : index
      %120 = vector.load %arg18[%c0_55, %c0_56] : memref<128x1xf32, #tpu.memory_space<vmem>>, vector<128x1xf32>
      tpu.vector_store %arg18[%c0_55, %c0_56], %119 {strides = array<i32>} : memref<128x1xf32, #tpu.memory_space<vmem>>, vector<128x1xf32>,
    } else {
    }
    %45 = arith.extui %23 : i1 to i32
    %c0_i32_19 = arith.constant 0 : i32
    %46 = arith.cmpi ne, %45, %c0_i32_19 : i32
    scf.if %46 {
      %c0_20 = arith.constant 0 : index
      %c0_21 = arith.constant 0 : index
      %c0_22 = arith.constant 0 : index
      %47 = vector.load %arg9[%c0_20, %c0_21, %c0_22] : memref<1x128x1xf32, #tpu.memory_space<vmem>>, vector<1x128x1xf32>
      %48 = vector.shape_cast %47 : vector<1x128x1xf32> to vector<128x1xf32>
      %c128_i32_23 = arith.constant 128 : i32
      %49 = arith.muli %1, %c128_i32_23 : i32
      %50 = tpu.iota {dimensions = array<i32: 0>} : vector<128x1xi32>
      %51 = vector.broadcast %49 : i32 to vector<128x1xi32>
      %52 = arith.addi %51, %50 : vector<128x1xi32>
      %cst = arith.constant 5.000000e-01 : f32
      %53 = vector.broadcast %cst : f32 to vector<128x1xf32>
      %54 = arith.cmpf ogt, %48, %53 : vector<128x1xf32>
      %c1_i32_24 = arith.constant 1 : i32
      %55 = vector.broadcast %c1_i32_24 : i32 to vector<128x1xi32>
      %56 = arith.cmpi sge, %52, %55 : vector<128x1xi32>
      %57 = arith.andi %54, %56 : vector<128x1xi1>
      %c0_25 = arith.constant 0 : index
      %c0_26 = arith.constant 0 : index
      %58 = vector.load %arg16[%c0_25, %c0_26] : memref<128x1xf32, #tpu.memory_space<vmem>>, vector<128x1xf32>
      %cst_27 = arith.constant 9.99999991E-38 : f32
      %59 = vector.broadcast %cst_27 : f32 to vector<128x1xf32>
      %60 = arith.maximumf %58, %59 : vector<128x1xf32>
      %61 = math.log %60 : vector<128x1xf32>
      %c0_28 = arith.constant 0 : index
      %c0_29 = arith.constant 0 : index
      %62 = vector.load %arg17[%c0_28, %c0_29] : memref<128x1xf32, #tpu.memory_space<vmem>>, vector<128x1xf32>
      %63 = math.log %62 : vector<128x1xf32>
      %64 = arith.subf %61, %63 : vector<128x1xf32>
      %65 = vector.broadcast %8 : f32 to vector<128x1xf32>
      %66 = arith.subf %64, %65 : vector<128x1xf32>
      %c0_30 = arith.constant 0 : index
      %c0_31 = arith.constant 0 : index
      %c0_32 = arith.constant 0 : index
      %67 = vector.load %arg13[%c0_30, %c0_31, %c0_32] : memref<1x1x1xf32, #tpu.memory_space<vmem>>, vector<1x1x1xf32>
      %68 = vector.shape_cast %67 : vector<1x1x1xf32> to vector<1x1xf32>
      %cst_33 = arith.constant 0.000000e+00 : f32
      %69 = vector.broadcast %cst_33 : f32 to vector<128x1xf32>
      %70 = arith.select %57, %66, %69 : vector<128x1xi1>, vector<128x1xf32>
      %cst_34 = arith.constant dense<0.000000e+00> : vector<1xf32>
      %71 = vector.multi_reduction <add>, %70, %cst_34 [0] : vector<128x1xf32> to vector<1xf32>
      %72 = vector.shape_cast %71 : vector<1xf32> to vector<1x1xf32>
      %73 = arith.addf %68, %72 : vector<1x1xf32>
      %c0_35 = arith.constant 0 : index
      %c0_36 = arith.constant 0 : index
      %c0_37 = arith.constant 0 : index
      %74 = vector.load %arg13[%c0_35, %c0_36, %c0_37] : memref<1x1x1xf32, #tpu.memory_space<vmem>>, vector<1x1x1xf32>
      %75 = vector.shape_cast %74 : vector<1x1x1xf32> to vector<1x1xf32>
      %76 = vector.shape_cast %73 : vector<1x1xf32> to vector<1x1x1xf32>
      tpu.vector_store %arg13[%c0_35, %c0_36, %c0_37], %76 {strides = array<i32>} : memref<1x1x1xf32, #tpu.memory_space<vmem>>, vector<1x1x1xf32>,
      %c0_38 = arith.constant 0 : index
      %c0_39 = arith.constant 0 : index
      %77 = vector.load %arg18[%c0_38, %c0_39] : memref<128x1xf32, #tpu.memory_space<vmem>>, vector<128x1xf32>
      %78 = vector.broadcast %13 : f32 to vector<128x1xf32>
      %79 = arith.mulf %78, %77 : vector<128x1xf32>
      %80 = vector.broadcast %10 : f32 to vector<128x1xf32>
      %81 = arith.addf %80, %79 : vector<128x1xf32>
      %cst_40 = arith.constant 9.99999993E-9 : f32
      %82 = vector.broadcast %cst_40 : f32 to vector<128x1xf32>
      %83 = arith.addf %81, %82 : vector<128x1xf32>
      %84 = math.log %83 : vector<128x1xf32>
      %85 = arith.mulf %84, %48 : vector<128x1xf32>
      %cst_41 = arith.constant dense<0.000000e+00> : vector<1xf32>
      %86 = vector.multi_reduction <add>, %85, %cst_41 [0] : vector<128x1xf32> to vector<1xf32>
      %87 = vector.shape_cast %86 : vector<1xf32> to vector<1x1xf32>
      %88 = vector.broadcast %17 : f32 to vector<128x1xf32>
      %89 = arith.subf %88, %35 : vector<128x1xf32>
      %90 = vector.broadcast %12 : f32 to vector<128x1xf32>
      %91 = arith.mulf %89, %90 : vector<128x1xf32>
      %cst_42 = arith.constant 0.000000e+00 : f32
      %92 = vector.broadcast %cst_42 : f32 to vector<128x1xf32>
      %93 = arith.minimumf %91, %92 : vector<128x1xf32>
      %94 = arith.mulf %93, %48 : vector<128x1xf32>
      %95 = math.exp %94 : vector<128x1xf32>
      %cst_43 = arith.constant 1.000000e+00 : f32
      %96 = vector.broadcast %cst_43 : f32 to vector<128x1xf32>
      %97 = arith.subf %96, %95 : vector<128x1xf32>
      %cst_44 = arith.constant dense<0.000000e+00> : vector<1xf32>
      %98 = vector.multi_reduction <add>, %97, %cst_44 [0] : vector<128x1xf32> to vector<1xf32>
      %99 = vector.shape_cast %98 : vector<1xf32> to vector<1x1xf32>
      %c0_45 = arith.constant 0 : index
      %c0_46 = arith.constant 0 : index
      %c0_47 = arith.constant 0 : index
      %100 = vector.load %arg14[%c0_45, %c0_46, %c0_47] : memref<1x1x1xf32, #tpu.memory_space<vmem>>, vector<1x1x1xf32>
      %101 = vector.shape_cast %100 : vector<1x1x1xf32> to vector<1x1xf32>
      %102 = vector.broadcast %11 : f32 to vector<1x1xf32>
      %103 = arith.mulf %102, %99 : vector<1x1xf32>
      %104 = arith.subf %87, %103 : vector<1x1xf32>
      %105 = arith.addf %101, %104 : vector<1x1xf32>
      %c0_48 = arith.constant 0 : index
      %c0_49 = arith.constant 0 : index
      %c0_50 = arith.constant 0 : index
      %106 = vector.load %arg14[%c0_48, %c0_49, %c0_50] : memref<1x1x1xf32, #tpu.memory_space<vmem>>, vector<1x1x1xf32>
      %107 = vector.shape_cast %106 : vector<1x1x1xf32> to vector<1x1xf32>
      %108 = vector.shape_cast %105 : vector<1x1xf32> to vector<1x1x1xf32>
      tpu.vector_store %arg14[%c0_48, %c0_49, %c0_50], %108 {strides = array<i32>} : memref<1x1x1xf32, #tpu.memory_space<vmem>>, vector<1x1x1xf32>,
    } else {
    }
    return
  }
  func.func @transform_0(%arg0: i32, %arg1: i32, %arg2: memref<10xf32, #tpu.memory_space<smem>>, %arg3: memref<2xf32, #tpu.memory_space<smem>>, %arg4: memref<2xf32, #tpu.memory_space<smem>>, %arg5: memref<1xi32, #tpu.memory_space<smem>>, %arg6: memref<1xi32, #tpu.memory_space<smem>>) -> (i32, i32, i32) {
    %0 = arith.index_cast %arg1 : i32 to index
    %1 = memref.load %arg5[%0] : memref<1xi32, #tpu.memory_space<smem>>
    %c0_i32 = arith.constant 0 : i32
    %c0_i32_0 = arith.constant 0 : i32
    return %arg0, %1, %c0_i32 : i32, i32, i32
  }
  func.func @transform_1(%arg0: i32, %arg1: i32, %arg2: memref<10xf32, #tpu.memory_space<smem>>, %arg3: memref<2xf32, #tpu.memory_space<smem>>, %arg4: memref<2xf32, #tpu.memory_space<smem>>, %arg5: memref<1xi32, #tpu.memory_space<smem>>, %arg6: memref<1xi32, #tpu.memory_space<smem>>) -> (i32, i32, i32) {
    %0 = arith.index_cast %arg1 : i32 to index
    %1 = memref.load %arg6[%0] : memref<1xi32, #tpu.memory_space<smem>>
    %c0_i32 = arith.constant 0 : i32
    %c0_i32_0 = arith.constant 0 : i32
    return %arg0, %c0_i32, %1 : i32, i32, i32
  }
  func.func @transform_2(%arg0: i32, %arg1: i32, %arg2: memref<10xf32, #tpu.memory_space<smem>>, %arg3: memref<2xf32, #tpu.memory_space<smem>>, %arg4: memref<2xf32, #tpu.memory_space<smem>>, %arg5: memref<1xi32, #tpu.memory_space<smem>>, %arg6: memref<1xi32, #tpu.memory_space<smem>>) -> (i32, i32, i32) {
    %0 = arith.index_cast %arg1 : i32 to index
    %1 = memref.load %arg5[%0] : memref<1xi32, #tpu.memory_space<smem>>
    %c0_i32 = arith.constant 0 : i32
    %c0_i32_0 = arith.constant 0 : i32
    return %arg0, %1, %c0_i32 : i32, i32, i32
  }
  func.func @transform_3(%arg0: i32, %arg1: i32, %arg2: memref<10xf32, #tpu.memory_space<smem>>, %arg3: memref<2xf32, #tpu.memory_space<smem>>, %arg4: memref<2xf32, #tpu.memory_space<smem>>, %arg5: memref<1xi32, #tpu.memory_space<smem>>, %arg6: memref<1xi32, #tpu.memory_space<smem>>) -> (i32, i32, i32) {
    %0 = arith.index_cast %arg1 : i32 to index
    %1 = memref.load %arg6[%0] : memref<1xi32, #tpu.memory_space<smem>>
    %c0_i32 = arith.constant 0 : i32
    %c0_i32_0 = arith.constant 0 : i32
    return %arg0, %c0_i32, %1 : i32, i32, i32
  }
  func.func @transform_4(%arg0: i32, %arg1: i32, %arg2: memref<10xf32, #tpu.memory_space<smem>>, %arg3: memref<2xf32, #tpu.memory_space<smem>>, %arg4: memref<2xf32, #tpu.memory_space<smem>>, %arg5: memref<1xi32, #tpu.memory_space<smem>>, %arg6: memref<1xi32, #tpu.memory_space<smem>>) -> (i32, i32, i32) {
    %0 = arith.index_cast %arg1 : i32 to index
    %1 = memref.load %arg5[%0] : memref<1xi32, #tpu.memory_space<smem>>
    %c0_i32 = arith.constant 0 : i32
    %c0_i32_0 = arith.constant 0 : i32
    return %arg0, %1, %c0_i32 : i32, i32, i32
  }
  func.func @transform_5(%arg0: i32, %arg1: i32, %arg2: memref<10xf32, #tpu.memory_space<smem>>, %arg3: memref<2xf32, #tpu.memory_space<smem>>, %arg4: memref<2xf32, #tpu.memory_space<smem>>, %arg5: memref<1xi32, #tpu.memory_space<smem>>, %arg6: memref<1xi32, #tpu.memory_space<smem>>) -> (i32, i32, i32) {
    %0 = arith.index_cast %arg1 : i32 to index
    %1 = memref.load %arg6[%0] : memref<1xi32, #tpu.memory_space<smem>>
    %c0_i32 = arith.constant 0 : i32
    %c0_i32_0 = arith.constant 0 : i32
    return %arg0, %c0_i32, %1 : i32, i32, i32
  }
  func.func @transform_6(%arg0: i32, %arg1: i32, %arg2: memref<10xf32, #tpu.memory_space<smem>>, %arg3: memref<2xf32, #tpu.memory_space<smem>>, %arg4: memref<2xf32, #tpu.memory_space<smem>>, %arg5: memref<1xi32, #tpu.memory_space<smem>>, %arg6: memref<1xi32, #tpu.memory_space<smem>>) -> (i32, i32, i32) {
    %c1_i32 = arith.constant 1 : i32
    %0 = arith.muli %arg0, %c1_i32 : i32
    %1 = arith.index_cast %arg1 : i32 to index
    %2 = memref.load %arg5[%1] : memref<1xi32, #tpu.memory_space<smem>>
    %3 = arith.addi %0, %2 : i32
    %c0_i32 = arith.constant 0 : i32
    %c0_i32_0 = arith.constant 0 : i32
    %c0_i32_1 = arith.constant 0 : i32
    return %3, %c0_i32, %c0_i32_0 : i32, i32, i32
  }
  func.func @transform_7(%arg0: i32, %arg1: i32, %arg2: memref<10xf32, #tpu.memory_space<smem>>, %arg3: memref<2xf32, #tpu.memory_space<smem>>, %arg4: memref<2xf32, #tpu.memory_space<smem>>, %arg5: memref<1xi32, #tpu.memory_space<smem>>, %arg6: memref<1xi32, #tpu.memory_space<smem>>) -> (i32, i32, i32) {
    %c1_i32 = arith.constant 1 : i32
    %0 = arith.muli %arg0, %c1_i32 : i32
    %1 = arith.index_cast %arg1 : i32 to index
    %2 = memref.load %arg5[%1] : memref<1xi32, #tpu.memory_space<smem>>
    %3 = arith.addi %0, %2 : i32
    %c0_i32 = arith.constant 0 : i32
    %c0_i32_0 = arith.constant 0 : i32
    %c0_i32_1 = arith.constant 0 : i32
    return %3, %c0_i32, %c0_i32_0 : i32, i32, i32
  }
}

</mosaic_0001>

<llo_original>
// kernel: combined_spatiotemporal_forward.1
$region0: #{combined_spatiotemporal_forward.1}
  #allocation0 [shape = 'u32[]', space=smem, size = 0x4, offset = 0x4, fixed_abs, tag = 'smem constant byte address 0x4 - core index']
  #allocation1 [shape = 'u32[144,128]{1,0:T(1,128)}', space=vmem, size = 0x12000, scoped, tag = 'internal scratch']
  #allocation2 [shape = 'f32[128,1]{1,0:T(8,128)}', space=vmem, size = 0x10000, scoped, tag = 'scratch operand']
  #allocation3 [shape = 'f32[128,1]{1,0:T(8,128)}', space=vmem, size = 0x10000, scoped, tag = 'scratch operand']
  #allocation4 [shape = 'f32[128,1]{1,0:T(8,128)}', space=vmem, size = 0x10000, scoped, tag = 'scratch operand']
  #allocation5 [shape = 'f32[128,1]{1,0:T(8,128)}', space=vmem, size = 0x10000, scoped, tag = 'scratch operand']
  #allocation6 [shape = 's32[1]{0}', space=sflag, size = 0x4, scoped, tag = 'scoped memory for combined_spatiotemporal_forward.1']
  #allocation7 [shape = 'u8[512]{0}', space=smem, size = 0x200, scoped, tag = 'prefetched SMEM operand 0']
  #allocation8 [shape = 'u8[512]{0}', space=smem, size = 0x200, scoped, tag = 'prefetched SMEM operand 1']
  #allocation9 [shape = 'u8[512]{0}', space=smem, size = 0x200, scoped, tag = 'prefetched SMEM operand 2']
  #allocation10 [shape = 's32[1]{0:T(128)S(6)}', space=smem, size = 0x200, scoped, tag = 'prefetched SMEM operand 3']
  #allocation11 [shape = 's32[1]{0:T(128)S(6)}', space=smem, size = 0x200, scoped, tag = 'prefetched SMEM operand 4']
  %s0 = inlined_call_operand.vmem [shape: f32[10], index: 0, kind: input, shape index: {}]
  %s1 = inlined_call_operand.vmem [shape: f32[2], index: 1, kind: input, shape index: {}]
  %s2 = inlined_call_operand.vmem [shape: f32[2], index: 2, kind: input, shape index: {}]
  %s3 = inlined_call_operand.<no memory space> [shape: s32[1], index: 3, kind: input, shape index: {}, may-alias: {3,4}]
  %s4 = inlined_call_operand.<no memory space> [shape: s32[1], index: 4, kind: input, shape index: {}, may-alias: {3,4}]
  %s5 = inlined_call_operand.vmem [shape: f32[2,128,1], index: 5, kind: input, shape index: {}]
  %s6 = inlined_call_operand.vmem [shape: f32[2,1,128], index: 6, kind: input, shape index: {}]
  %s7 = inlined_call_operand.vmem [shape: f32[2,128,1], index: 7, kind: input, shape index: {}]
  %s8 = inlined_call_operand.vmem [shape: f32[2,1,128], index: 8, kind: input, shape index: {}]
  %s9 = inlined_call_operand.vmem [shape: f32[4,128,1], index: 9, kind: input, shape index: {}]
  %s10 = inlined_call_operand.vmem [shape: f32[4,1,128], index: 10, kind: input, shape index: {}]
  %s11 = inlined_call_operand.vmem [shape: f32[2,1,1], index: 11, kind: output, shape index: {0}]
  %s12 = inlined_call_operand.vmem [shape: f32[2,1,1], index: 12, kind: output, shape index: {1}]
  %13 = xla_tuple %s11, %s12
  %s14 = sld [smem:[#allocation0]]
  $region85: #{combined_spatiotemporal_forward.1} parent=0
    _
  %s16 = ssub.s32 1, %s14
  %s17 = scalar_select 0, %s16, %s14
  %s18 = sshll.u32 %s0, 4
  %s19 = int_to_ptr.vmem [resolvable:$true] %s18
  %21 = dma.vmem_to_smem %s19, 16, [#allocation7], [#allocation6]
  %s22 = sshll.u32 %s1, 4
  %s23 = int_to_ptr.vmem [resolvable:$true] %s22
  %25 = dma.vmem_to_smem %s23, 16, [#allocation8], [#allocation6]
  %s26 = sshll.u32 %s2, 4
  %s27 = int_to_ptr.vmem [resolvable:$true] %s26
  %29 = dma.vmem_to_smem %s27, 16, [#allocation9], [#allocation6]
  %30 = sst [smem:[#allocation10]] %s3
  %31 = sst [smem:[#allocation11]] %s4
  %32 = dma.done [#allocation6], 48
  %33 = sfence
  loop: start=0, step=1, limit=4
  $region2: #{combined_spatiotemporal_forward.1} parent=0 // loop_pre_header
    _
  $region3: #{combined_spatiotemporal_forward.1} parent=0 // loop_header
    %s35 = sphi 0, %s39
    %p36 = scmp.ge.s32.totalorder %s35, 4
    %s42 = sphi 0, %s54
    %s43 = sphi 0, %s50
    %s44 = sphi 0, %s42
    %s45 = sphi 0, %s43
    %s46 = sphi 0, %s44
    %s47 = sphi 0, %s45
    %s61 = sphi 0, %s63
    %s64 = sphi 0, %s61
    %s65 = sphi 0, %s64
    %s81 = sphi 0, %s65
    %s91 = sphi 0, %s93
    %s94 = sphi 0, %s91
    %s95 = sphi 0, %s94
    %s111 = sphi 0, %s95
    %s121 = sphi 0, %s123
    %s124 = sphi 0, %s121
    %s125 = sphi 0, %s124
    %s141 = sphi 0, %s125
    %s151 = sphi 0, %s153
    %s154 = sphi 0, %s151
    %s155 = sphi 0, %s154
    %s171 = sphi 0, %s155
    %s181 = sphi 0, %s183
    %s184 = sphi 0, %s181
    %s185 = sphi 0, %s184
    %s201 = sphi 0, %s185
    %s211 = sphi 0, %s213
    %s214 = sphi 0, %s211
    %s215 = sphi 0, %s214
    %s231 = sphi 0, %s215
    %s241 = sphi 0, %s243
    %s244 = sphi 0, %s241
    %s245 = sphi 0, %s244
    %s261 = sphi 0, %s245
    %s271 = sphi 0, %s273
    %s274 = sphi 0, %s271
    %s275 = sphi 0, %s274
    %s291 = sphi 0, %s275
  $region4: #{combined_spatiotemporal_forward.1} parent=0 // loop_header_branch
    %38 = sbr.rel (%p36) target = $region8
  $region5: #{combined_spatiotemporal_forward.1} parent=0 // loop_body
    %s40 = ssub.s32 %s35, 1
    %s41 = ssub.s32 %s35, 2
    %s48 = sadd.s32 1, %s43
    %p49 = scmp.ge.s32.totalorder %s48, 1
    %s50 = scalar_select %p49, 0, %s48
    %s51 = sadd.s32 1, %s42
    %s52 = scalar_select %p49, %s51, %s42
    %p53 = scmp.ge.s32.totalorder %s52, 2
    %s54 = scalar_select %p53, 0, %s52
    %s55 = sld [smem:[#allocation10 + %s43]]
    %s56 = sld [smem:[#allocation10 + %s50]]
    %s57 = ssub.s32 %s42, %s54
    %s58 = ssub.s32 %s55, %s56
    %s59 = sor.u32 %s57, %s58
    %p60 = scmp.eq.s32.totalorder %s59, 0
    %s62 = sadd.s32 %s61, 1
    %s63 = scalar_select %p60, %s61, %s62
    %p66 = pneg %p60
    %p67 = scmp.eq.s32.totalorder %s35, 1
    %p68 = por %p66, %p67
    %p69 = scmp.ne.s32.totalorder %s61, %s64
    %p70 = scmp.eq.s32.totalorder %s35, 0
    %p71 = por %p69, %p70
    %p72 = scmp.ne.s32.totalorder %s61, %s64
    %p73 = scmp.eq.s32.totalorder %s40, 1
    %p74 = por %p72, %p73
    %p75 = scmp.ne.s32.totalorder %s64, %s65
    %p76 = scmp.eq.s32.totalorder %s40, 0
    %p77 = por %p75, %p76
    %p78 = scmp.ne.s32.totalorder %s64, %s65
    %p79 = scmp.eq.s32.totalorder %s41, 1
    %p80 = por %p78, %p79
    %p82 = scmp.ne.s32.totalorder %s65, %s81
    %p83 = scmp.eq.s32.totalorder %s41, 0
    %p84 = por %p82, %p83
    %s85 = sld [smem:[#allocation11 + %s43]]
    %s86 = sld [smem:[#allocation11 + %s50]]
    %s87 = ssub.s32 %s42, %s54
    %s88 = ssub.s32 %s85, %s86
    %s89 = sor.u32 %s87, %s88
    %p90 = scmp.eq.s32.totalorder %s89, 0
    %s92 = sadd.s32 %s91, 1
    %s93 = scalar_select %p90, %s91, %s92
    %p96 = pneg %p90
    %p97 = scmp.eq.s32.totalorder %s35, 1
    %p98 = por %p96, %p97
    %p99 = scmp.ne.s32.totalorder %s91, %s94
    %p100 = scmp.eq.s32.totalorder %s35, 0
    %p101 = por %p99, %p100
    %p102 = scmp.ne.s32.totalorder %s91, %s94
    %p103 = scmp.eq.s32.totalorder %s40, 1
    %p104 = por %p102, %p103
    %p105 = scmp.ne.s32.totalorder %s94, %s95
    %p106 = scmp.eq.s32.totalorder %s40, 0
    %p107 = por %p105, %p106
    %p108 = scmp.ne.s32.totalorder %s94, %s95
    %p109 = scmp.eq.s32.totalorder %s41, 1
    %p110 = por %p108, %p109
    %p112 = scmp.ne.s32.totalorder %s95, %s111
    %p113 = scmp.eq.s32.totalorder %s41, 0
    %p114 = por %p112, %p113
    %s115 = sld [smem:[#allocation10 + %s43]]
    %s116 = sld [smem:[#allocation10 + %s50]]
    %s117 = ssub.s32 %s42, %s54
    %s118 = ssub.s32 %s115, %s116
    %s119 = sor.u32 %s117, %s118
    %p120 = scmp.eq.s32.totalorder %s119, 0
    %s122 = sadd.s32 %s121, 1
    %s123 = scalar_select %p120, %s121, %s122
    %p126 = pneg %p120
    %p127 = scmp.eq.s32.totalorder %s35, 1
    %p128 = por %p126, %p127
    %p129 = scmp.ne.s32.totalorder %s121, %s124
    %p130 = scmp.eq.s32.totalorder %s35, 0
    %p131 = por %p129, %p130
    %p132 = scmp.ne.s32.totalorder %s121, %s124
    %p133 = scmp.eq.s32.totalorder %s40, 1
    %p134 = por %p132, %p133
    %p135 = scmp.ne.s32.totalorder %s124, %s125
    %p136 = scmp.eq.s32.totalorder %s40, 0
    %p137 = por %p135, %p136
    %p138 = scmp.ne.s32.totalorder %s124, %s125
    %p139 = scmp.eq.s32.totalorder %s41, 1
    %p140 = por %p138, %p139
    %p142 = scmp.ne.s32.totalorder %s125, %s141
    %p143 = scmp.eq.s32.totalorder %s41, 0
    %p144 = por %p142, %p143
    %s145 = sld [smem:[#allocation11 + %s43]]
    %s146 = sld [smem:[#allocation11 + %s50]]
    %s147 = ssub.s32 %s42, %s54
    %s148 = ssub.s32 %s145, %s146
    %s149 = sor.u32 %s147, %s148
    %p150 = scmp.eq.s32.totalorder %s149, 0
    %s152 = sadd.s32 %s151, 1
    %s153 = scalar_select %p150, %s151, %s152
    %p156 = pneg %p150
    %p157 = scmp.eq.s32.totalorder %s35, 1
    %p158 = por %p156, %p157
    %p159 = scmp.ne.s32.totalorder %s151, %s154
    %p160 = scmp.eq.s32.totalorder %s35, 0
    %p161 = por %p159, %p160
    %p162 = scmp.ne.s32.totalorder %s151, %s154
    %p163 = scmp.eq.s32.totalorder %s40, 1
    %p164 = por %p162, %p163
    %p165 = scmp.ne.s32.totalorder %s154, %s155
    %p166 = scmp.eq.s32.totalorder %s40, 0
    %p167 = por %p165, %p166
    %p168 = scmp.ne.s32.totalorder %s154, %s155
    %p169 = scmp.eq.s32.totalorder %s41, 1
    %p170 = por %p168, %p169
    %p172 = scmp.ne.s32.totalorder %s155, %s171
    %p173 = scmp.eq.s32.totalorder %s41, 0
    %p174 = por %p172, %p173
    %s175 = sld [smem:[#allocation10 + %s43]]
    %s176 = sld [smem:[#allocation10 + %s50]]
    %s177 = ssub.s32 %s42, %s54
    %s178 = ssub.s32 %s175, %s176
    %s179 = sor.u32 %s177, %s178
    %p180 = scmp.eq.s32.totalorder %s179, 0
    %s182 = sadd.s32 %s181, 1
    %s183 = scalar_select %p180, %s181, %s182
    %p186 = pneg %p180
    %p187 = scmp.eq.s32.totalorder %s35, 1
    %p188 = por %p186, %p187
    %p189 = scmp.ne.s32.totalorder %s181, %s184
    %p190 = scmp.eq.s32.totalorder %s35, 0
    %p191 = por %p189, %p190
    %p192 = scmp.ne.s32.totalorder %s181, %s184
    %p193 = scmp.eq.s32.totalorder %s40, 1
    %p194 = por %p192, %p193
    %p195 = scmp.ne.s32.totalorder %s184, %s185
    %p196 = scmp.eq.s32.totalorder %s40, 0
    %p197 = por %p195, %p196
    %p198 = scmp.ne.s32.totalorder %s184, %s185
    %p199 = scmp.eq.s32.totalorder %s41, 1
    %p200 = por %p198, %p199
    %p202 = scmp.ne.s32.totalorder %s185, %s201
    %p203 = scmp.eq.s32.totalorder %s41, 0
    %p204 = por %p202, %p203
    %s205 = sld [smem:[#allocation11 + %s43]]
    %s206 = sld [smem:[#allocation11 + %s50]]
    %s207 = ssub.s32 %s42, %s54
    %s208 = ssub.s32 %s205, %s206
    %s209 = sor.u32 %s207, %s208
    %p210 = scmp.eq.s32.totalorder %s209, 0
    %s212 = sadd.s32 %s211, 1
    %s213 = scalar_select %p210, %s211, %s212
    %p216 = pneg %p210
    %p217 = scmp.eq.s32.totalorder %s35, 1
    %p218 = por %p216, %p217
    %p219 = scmp.ne.s32.totalorder %s211, %s214
    %p220 = scmp.eq.s32.totalorder %s35, 0
    %p221 = por %p219, %p220
    %p222 = scmp.ne.s32.totalorder %s211, %s214
    %p223 = scmp.eq.s32.totalorder %s40, 1
    %p224 = por %p222, %p223
    %p225 = scmp.ne.s32.totalorder %s214, %s215
    %p226 = scmp.eq.s32.totalorder %s40, 0
    %p227 = por %p225, %p226
    %p228 = scmp.ne.s32.totalorder %s214, %s215
    %p229 = scmp.eq.s32.totalorder %s41, 1
    %p230 = por %p228, %p229
    %p232 = scmp.ne.s32.totalorder %s215, %s231
    %p233 = scmp.eq.s32.totalorder %s41, 0
    %p234 = por %p232, %p233
    %s235 = sld [smem:[#allocation10 + %s43]]
    %s236 = sadd.s32 %s42, %s235
    %s237 = sld [smem:[#allocation10 + %s50]]
    %s238 = sadd.s32 %s54, %s237
    %s239 = ssub.s32 %s236, %s238
    %p240 = scmp.eq.s32.totalorder %s239, 0
    %s242 = sadd.s32 %s241, 1
    %s243 = scalar_select %p240, %s241, %s242
    %p246 = pneg %p240
    %p247 = scmp.eq.s32.totalorder %s35, 1
    %p248 = por %p246, %p247
    %p249 = scmp.ne.s32.totalorder %s241, %s244
    %p250 = scmp.eq.s32.totalorder %s35, 0
    %p251 = por %p249, %p250
    %p252 = scmp.ne.s32.totalorder %s241, %s244
    %p253 = scmp.eq.s32.totalorder %s40, 1
    %p254 = por %p252, %p253
    %p255 = scmp.ne.s32.totalorder %s244, %s245
    %p256 = scmp.eq.s32.totalorder %s40, 0
    %p257 = por %p255, %p256
    %p258 = scmp.ne.s32.totalorder %s244, %s245
    %p259 = scmp.eq.s32.totalorder %s41, 1
    %p260 = por %p258, %p259
    %p262 = scmp.ne.s32.totalorder %s245, %s261
    %p263 = scmp.eq.s32.totalorder %s41, 0
    %p264 = por %p262, %p263
    %s265 = sld [smem:[#allocation10 + %s43]]
    %s266 = sadd.s32 %s42, %s265
    %s267 = sld [smem:[#allocation10 + %s50]]
    %s268 = sadd.s32 %s54, %s267
    %s269 = ssub.s32 %s266, %s268
    %p270 = scmp.eq.s32.totalorder %s269, 0
    %s272 = sadd.s32 %s271, 1
    %s273 = scalar_select %p270, %s271, %s272
    %p276 = pneg %p270
    %p277 = scmp.eq.s32.totalorder %s35, 1
    %p278 = por %p276, %p277
    %p279 = scmp.ne.s32.totalorder %s271, %s274
    %p280 = scmp.eq.s32.totalorder %s35, 0
    %p281 = por %p279, %p280
    %p282 = scmp.ne.s32.totalorder %s271, %s274
    %p283 = scmp.eq.s32.totalorder %s40, 1
    %p284 = por %p282, %p283
    %p285 = scmp.ne.s32.totalorder %s274, %s275
    %p286 = scmp.eq.s32.totalorder %s40, 0
    %p287 = por %p285, %p286
    %p288 = scmp.ne.s32.totalorder %s274, %s275
    %p289 = scmp.eq.s32.totalorder %s41, 1
    %p290 = por %p288, %p289
    %p292 = scmp.ne.s32.totalorder %s275, %s291
    %p293 = scmp.eq.s32.totalorder %s41, 0
    %p294 = por %p292, %p293
    %p295 = scmp.le.s32.totalorder 1, %s35
    %p296 = scmp.lt.s32.totalorder %s35, 3
    %p297 = pnand %p295, %p296
    %p298 = pneg %p297
    // Predicated region
    $region9: #{combined_spatiotemporal_forward.1} parent=5 // pred_check
      _
    $region10: #{combined_spatiotemporal_forward.1} parent=5 // pred_check_branch
      %300 = sbr.rel (%p297) target = $region12
    $region11: #{combined_spatiotemporal_forward.1} parent=5 // pred_region
      %s301 = ssub.s32 %s35, 1
    $region12: #{combined_spatiotemporal_forward.1} parent=5 // pred_fallthru
      _
    %p302 = scmp.lt.s32.totalorder %s35, 2
    // Predicated region
    $region13: #{combined_spatiotemporal_forward.1} parent=5 // pred_check
      %p303 = pneg %p302
    $region14: #{combined_spatiotemporal_forward.1} parent=5 // pred_check_branch
      %305 = sbr.rel (%p303) target = $region16
    $region15: #{combined_spatiotemporal_forward.1} parent=5 // pred_region
      // Predicated region
      $region17: #{combined_spatiotemporal_forward.1} parent=15 // pred_check
        %p306 = pneg %p71
      $region18: #{combined_spatiotemporal_forward.1} parent=15 // pred_check_branch
        %308 = sbr.rel (%p306) target = $region20
      $region19: #{combined_spatiotemporal_forward.1} parent=15 // pred_region
        %s309 = sld [smem:[#allocation10 + %s43]]
        %s310 = smul.u32 16, %s309
        %p311 = scmp.lt.s32.totalorder %s42, 1
        %s312 = scalar_select %p311, %s42, 1
        %p313 = scmp.lt.s32.totalorder %s310, 15
        %s314 = scalar_select %p313, %s310, 15
        %s315 = smul.addr %s312, 16
        %s316 = sadd.s32 %s314, %s315
        %s317 = smul.addr %s316, 8
        %s318 = scalar_lea.vmem %s5, %s317
        %s319 = sld [smem:[#allocation10 + %s43]]
        %s320 = smul.u32 16, %s319
      $region20: #{combined_spatiotemporal_forward.1} parent=15 // pred_fallthru
        _
      // Predicated region
      $region21: #{combined_spatiotemporal_forward.1} parent=15 // pred_check
        %p321 = pneg %p101
      $region22: #{combined_spatiotemporal_forward.1} parent=15 // pred_check_branch
        %323 = sbr.rel (%p321) target = $region24
      $region23: #{combined_spatiotemporal_forward.1} parent=15 // pred_region
        %s324 = sld [smem:[#allocation11 + %s43]]
        %p325 = scmp.lt.s32.totalorder %s42, 1
        %s326 = scalar_select %p325, %s42, 1
        %p327 = scmp.lt.s32.totalorder %s324, 0
        %s328 = scalar_select %p327, %s324, 0
        %s329 = sadd.s32 %s328, %s326
        %s330 = scalar_lea.vmem %s6, %s329
        %s331 = sld [smem:[#allocation11 + %s43]]
      $region24: #{combined_spatiotemporal_forward.1} parent=15 // pred_fallthru
        _
      // Predicated region
      $region25: #{combined_spatiotemporal_forward.1} parent=15 // pred_check
        %p332 = pneg %p131
      $region26: #{combined_spatiotemporal_forward.1} parent=15 // pred_check_branch
        %334 = sbr.rel (%p332) target = $region28
      $region27: #{combined_spatiotemporal_forward.1} parent=15 // pred_region
        %s335 = sld [smem:[#allocation10 + %s43]]
        %s336 = smul.u32 16, %s335
        %p337 = scmp.lt.s32.totalorder %s42, 1
        %s338 = scalar_select %p337, %s42, 1
        %p339 = scmp.lt.s32.totalorder %s336, 15
        %s340 = scalar_select %p339, %s336, 15
        %s341 = smul.addr %s338, 16
        %s342 = sadd.s32 %s340, %s341
        %s343 = smul.addr %s342, 8
        %s344 = scalar_lea.vmem %s7, %s343
        %s345 = sld [smem:[#allocation10 + %s43]]
        %s346 = smul.u32 16, %s345
      $region28: #{combined_spatiotemporal_forward.1} parent=15 // pred_fallthru
        _
      // Predicated region
      $region29: #{combined_spatiotemporal_forward.1} parent=15 // pred_check
        %p347 = pneg %p161
      $region30: #{combined_spatiotemporal_forward.1} parent=15 // pred_check_branch
        %349 = sbr.rel (%p347) target = $region32
      $region31: #{combined_spatiotemporal_forward.1} parent=15 // pred_region
        %s350 = sld [smem:[#allocation11 + %s43]]
        %p351 = scmp.lt.s32.totalorder %s42, 1
        %s352 = scalar_select %p351, %s42, 1
        %p353 = scmp.lt.s32.totalorder %s350, 0
        %s354 = scalar_select %p353, %s350, 0
        %s355 = sadd.s32 %s354, %s352
        %s356 = scalar_lea.vmem %s8, %s355
        %s357 = sld [smem:[#allocation11 + %s43]]
      $region32: #{combined_spatiotemporal_forward.1} parent=15 // pred_fallthru
        _
      // Predicated region
      $region33: #{combined_spatiotemporal_forward.1} parent=15 // pred_check
        %p358 = pneg %p191
      $region34: #{combined_spatiotemporal_forward.1} parent=15 // pred_check_branch
        %360 = sbr.rel (%p358) target = $region36
      $region35: #{combined_spatiotemporal_forward.1} parent=15 // pred_region
        %s361 = sld [smem:[#allocation10 + %s43]]
        %s362 = smul.u32 2, %s42
        %s363 = smul.u32 16, %s361
        %p364 = scmp.lt.s32.totalorder %s362, 3
        %s365 = scalar_select %p364, %s362, 3
        %p366 = scmp.lt.s32.totalorder %s363, 15
        %s367 = scalar_select %p366, %s363, 15
        %s368 = smul.addr %s365, 16
        %s369 = sadd.s32 %s367, %s368
        %s370 = smul.addr %s369, 8
        %s371 = scalar_lea.vmem %s9, %s370
        %s372 = sld [smem:[#allocation10 + %s43]]
        %s373 = smul.u32 2, %s42
        %s374 = smul.u32 16, %s372
      $region36: #{combined_spatiotemporal_forward.1} parent=15 // pred_fallthru
        _
      // Predicated region
      $region37: #{combined_spatiotemporal_forward.1} parent=15 // pred_check
        %p375 = pneg %p221
      $region38: #{combined_spatiotemporal_forward.1} parent=15 // pred_check_branch
        %377 = sbr.rel (%p375) target = $region40
      $region39: #{combined_spatiotemporal_forward.1} parent=15 // pred_region
        %s378 = sld [smem:[#allocation11 + %s43]]
        %s379 = smul.u32 2, %s42
        %p380 = scmp.lt.s32.totalorder %s379, 3
        %s381 = scalar_select %p380, %s379, 3
        %p382 = scmp.lt.s32.totalorder %s378, 0
        %s383 = scalar_select %p382, %s378, 0
        %s384 = sadd.s32 %s383, %s381
        %s385 = scalar_lea.vmem %s10, %s384
        %s386 = sld [smem:[#allocation11 + %s43]]
        %s387 = smul.u32 2, %s42
      $region40: #{combined_spatiotemporal_forward.1} parent=15 // pred_fallthru
        _
    $region16: #{combined_spatiotemporal_forward.1} parent=5 // pred_fallthru
      _
    %p388 = scmp.le.s32.totalorder 1, %s35
    %p389 = scmp.lt.s32.totalorder %s35, 3
    %p390 = pnand %p388, %p389
    %p391 = pneg %p390
    // Predicated region
    $region41: #{combined_spatiotemporal_forward.1} parent=5 // pred_check
      _
    $region42: #{combined_spatiotemporal_forward.1} parent=5 // pred_check_branch
      %393 = sbr.rel (%p390) target = $region44
    $region43: #{combined_spatiotemporal_forward.1} parent=5 // pred_region
      %s394 = ssub.s32 %s35, 1
      %s395 = sld [smem:[#allocation10 + %s45]]
      %s396 = smul.u32 16, %s395
      %p397 = scmp.lt.s32.totalorder %s44, 1
      %s398 = scalar_select %p397, %s44, 1
      %p399 = scmp.lt.s32.totalorder %s396, 15
      %s400 = scalar_select %p399, %s396, 15
      %s401 = smul.addr %s398, 16
      %s402 = sadd.s32 %s400, %s401
      %s403 = smul.addr %s402, 8
      %s404 = scalar_lea.vmem %s5, %s403
      %p405 = pneg %p77
      %p406 = pneg %p74
      %s407 = sld [smem:[#allocation11 + %s45]]
      %p408 = scmp.lt.s32.totalorder %s44, 1
      %s409 = scalar_select %p408, %s44, 1
      %p410 = scmp.lt.s32.totalorder %s407, 0
      %s411 = scalar_select %p410, %s407, 0
      %s412 = sadd.s32 %s411, %s409
      %s413 = scalar_lea.vmem %s6, %s412
      %p414 = pneg %p107
      %p415 = pneg %p104
      %s416 = sld [smem:[#allocation10 + %s45]]
      %s417 = smul.u32 16, %s416
      %p418 = scmp.lt.s32.totalorder %s44, 1
      %s419 = scalar_select %p418, %s44, 1
      %p420 = scmp.lt.s32.totalorder %s417, 15
      %s421 = scalar_select %p420, %s417, 15
      %s422 = smul.addr %s419, 16
      %s423 = sadd.s32 %s421, %s422
      %s424 = smul.addr %s423, 8
      %s425 = scalar_lea.vmem %s7, %s424
      %p426 = pneg %p137
      %p427 = pneg %p134
      %s428 = sld [smem:[#allocation11 + %s45]]
      %p429 = scmp.lt.s32.totalorder %s44, 1
      %s430 = scalar_select %p429, %s44, 1
      %p431 = scmp.lt.s32.totalorder %s428, 0
      %s432 = scalar_select %p431, %s428, 0
      %s433 = sadd.s32 %s432, %s430
      %s434 = scalar_lea.vmem %s8, %s433
      %p435 = pneg %p167
      %p436 = pneg %p164
      %s437 = sld [smem:[#allocation10 + %s45]]
      %s438 = smul.u32 2, %s44
      %s439 = smul.u32 16, %s437
      %p440 = scmp.lt.s32.totalorder %s438, 3
      %s441 = scalar_select %p440, %s438, 3
      %p442 = scmp.lt.s32.totalorder %s439, 15
      %s443 = scalar_select %p442, %s439, 15
      %s444 = smul.addr %s441, 16
      %s445 = sadd.s32 %s443, %s444
      %s446 = smul.addr %s445, 8
      %s447 = scalar_lea.vmem %s9, %s446
      %p448 = pneg %p197
      %p449 = pneg %p194
      %s450 = sld [smem:[#allocation11 + %s45]]
      %s451 = smul.u32 2, %s44
      %p452 = scmp.lt.s32.totalorder %s451, 3
      %s453 = scalar_select %p452, %s451, 3
      %p454 = scmp.lt.s32.totalorder %s450, 0
      %s455 = scalar_select %p454, %s450, 0
      %s456 = sadd.s32 %s455, %s453
      %s457 = scalar_lea.vmem %s10, %s456
      %p458 = pneg %p227
      %p459 = pneg %p224
      %p460 = pneg %p257
      %p461 = pneg %p254
      %s462 = sld [smem:[#allocation10 + %s45]]
      %s463 = sadd.s32 %s44, %s462
      %p464 = scmp.lt.s32.totalorder %s463, 1
      %s465 = scalar_select %p464, %s463, 1
      %s466 = scalar_lea.vmem %s11, %s465
      %p467 = pneg %p287
      %p468 = pneg %p284
      %s469 = sld [smem:[#allocation10 + %s45]]
      %s470 = sadd.s32 %s44, %s469
      %p471 = scmp.lt.s32.totalorder %s470, 1
      %s472 = scalar_select %p471, %s470, 1
      %s473 = scalar_lea.vmem %s12, %s472
      %s474 = sld [smem:[#allocation10 + %s45]]
      %s475 = smul.u32 16, %s474
      %p476 = scmp.lt.s32.totalorder %s44, 1
      %s477 = scalar_select %p476, %s44, 1
      %p478 = scmp.lt.s32.totalorder %s475, 15
      %s479 = scalar_select %p478, %s475, 15
      %s480 = smul.addr %s477, 16
      %s481 = sadd.s32 %s479, %s480
      %s482 = smul.addr %s481, 8
      %s483 = scalar_lea.vmem %s5, %s482
      %s484 = sld [smem:[#allocation10 + %s45]]
      %s485 = smul.u32 16, %s484
      %s486 = sld [smem:[#allocation11 + %s45]]
      %p487 = scmp.lt.s32.totalorder %s44, 1
      %s488 = scalar_select %p487, %s44, 1
      %p489 = scmp.lt.s32.totalorder %s486, 0
      %s490 = scalar_select %p489, %s486, 0
      %s491 = sadd.s32 %s490, %s488
      %s492 = scalar_lea.vmem %s6, %s491
      %s493 = sld [smem:[#allocation11 + %s45]]
      %s494 = sld [smem:[#allocation10 + %s45]]
      %s495 = smul.u32 16, %s494
      %p496 = scmp.lt.s32.totalorder %s44, 1
      %s497 = scalar_select %p496, %s44, 1
      %p498 = scmp.lt.s32.totalorder %s495, 15
      %s499 = scalar_select %p498, %s495, 15
      %s500 = smul.addr %s497, 16
      %s501 = sadd.s32 %s499, %s500
      %s502 = smul.addr %s501, 8
      %s503 = scalar_lea.vmem %s7, %s502
      %s504 = sld [smem:[#allocation10 + %s45]]
      %s505 = smul.u32 16, %s504
      %s506 = sld [smem:[#allocation11 + %s45]]
      %p507 = scmp.lt.s32.totalorder %s44, 1
      %s508 = scalar_select %p507, %s44, 1
      %p509 = scmp.lt.s32.totalorder %s506, 0
      %s510 = scalar_select %p509, %s506, 0
      %s511 = sadd.s32 %s510, %s508
      %s512 = scalar_lea.vmem %s8, %s511
      %s513 = sld [smem:[#allocation11 + %s45]]
      %s514 = sld [smem:[#allocation10 + %s45]]
      %s515 = smul.u32 2, %s44
      %s516 = smul.u32 16, %s514
      %p517 = scmp.lt.s32.totalorder %s515, 3
      %s518 = scalar_select %p517, %s515, 3
      %p519 = scmp.lt.s32.totalorder %s516, 15
      %s520 = scalar_select %p519, %s516, 15
      %s521 = smul.addr %s518, 16
      %s522 = sadd.s32 %s520, %s521
      %s523 = smul.addr %s522, 8
      %s524 = scalar_lea.vmem %s9, %s523
      %s525 = sld [smem:[#allocation10 + %s45]]
      %s526 = smul.u32 2, %s44
      %s527 = smul.u32 16, %s525
      %s528 = sld [smem:[#allocation11 + %s45]]
      %s529 = smul.u32 2, %s44
      %p530 = scmp.lt.s32.totalorder %s529, 3
      %s531 = scalar_select %p530, %s529, 3
      %p532 = scmp.lt.s32.totalorder %s528, 0
      %s533 = scalar_select %p532, %s528, 0
      %s534 = sadd.s32 %s533, %s531
      %s535 = scalar_lea.vmem %s10, %s534
      %s536 = sld [smem:[#allocation11 + %s45]]
      %s537 = smul.u32 2, %s44
      %s538 = sld [smem:[#allocation10 + %s45]]
      %s539 = sadd.s32 %s44, %s538
      %p540 = scmp.lt.s32.totalorder %s539, 1
      %s541 = scalar_select %p540, %s539, 1
      %s542 = scalar_lea.vmem %s11, %s541
      %s543 = sld [smem:[#allocation10 + %s45]]
      %s544 = sadd.s32 %s44, %s543
      %s545 = sld [smem:[#allocation10 + %s45]]
      %s546 = sadd.s32 %s44, %s545
      %p547 = scmp.lt.s32.totalorder %s546, 1
      %s548 = scalar_select %p547, %s546, 1
      %s549 = scalar_lea.vmem %s12, %s548
      %s550 = sld [smem:[#allocation10 + %s45]]
      %s551 = sadd.s32 %s44, %s550
      %s552 = sld [smem:[#allocation10 + %s45]]
      %s553 = sld [smem:[#allocation11 + %s45]]
      %s554 = sld [smem:[#allocation7]]
      %s555 = sld [smem:[#allocation7 + $0x1]]
      %s556 = sld [smem:[#allocation7 + $0x2]]
      %s557 = sld [smem:[#allocation7 + $0x3]]
      %s558 = sld [smem:[#allocation7 + $0x4]]
      %s559 = sld [smem:[#allocation7 + $0x5]]
      %s560 = sld [smem:[#allocation7 + $0x6]]
      %s561 = sld [smem:[#allocation7 + $0x7]]
      %s562 = sld [smem:[#allocation7 + $0x8]]
      %s563 = sld [smem:[#allocation7 + $0x9]]
      %s564 = sld [smem:[#allocation8 + %s44]]
      %s565 = sld [smem:[#allocation9 + %s44]]
      %p566 = scmp.eq.s32.totalorder %s553, 0
      %s567 = sadd.s32 %s553, 1
      %s568 = smul.u32 %s567, 128
      %s569 = sadd.s32 %s552, 1
      %s570 = smul.u32 %s569, 128
      %p571 = scmp.ge.s32.totalorder %s568, %s570
      %s572 = smul.u32 %s552, 128
      %p573 = scmp.le.s32.totalorder %s568, %s572
      // Predicated region
      $region45: #{combined_spatiotemporal_forward.1} parent=43 // pred_check
        %p574 = pneg %p566
      $region46: #{combined_spatiotemporal_forward.1} parent=43 // pred_check_branch
        %576 = sbr.rel (%p574) target = $region48
      $region47: #{combined_spatiotemporal_forward.1} parent=43 // pred_region
        %vm577 = vcmask 7168
        %578 = vst.msk [vmem:[#allocation2] sm:$0xff] %vm577, -1e+20
        %579 = vst.msk [vmem:[#allocation2 + $0x8] sm:$0xff] %vm577, -1e+20
        %580 = vst.msk [vmem:[#allocation2 + $0x10] sm:$0xff] %vm577, -1e+20
        %581 = vst.msk [vmem:[#allocation2 + $0x18] sm:$0xff] %vm577, -1e+20
        %582 = vst.msk [vmem:[#allocation2 + $0x20] sm:$0xff] %vm577, -1e+20
        %583 = vst.msk [vmem:[#allocation2 + $0x28] sm:$0xff] %vm577, -1e+20
        %584 = vst.msk [vmem:[#allocation2 + $0x30] sm:$0xff] %vm577, -1e+20
        %585 = vst.msk [vmem:[#allocation2 + $0x38] sm:$0xff] %vm577, -1e+20
        %586 = vst.msk [vmem:[#allocation2 + $0x40] sm:$0xff] %vm577, -1e+20
        %587 = vst.msk [vmem:[#allocation2 + $0x48] sm:$0xff] %vm577, -1e+20
        %588 = vst.msk [vmem:[#allocation2 + $0x50] sm:$0xff] %vm577, -1e+20
        %589 = vst.msk [vmem:[#allocation2 + $0x58] sm:$0xff] %vm577, -1e+20
        %590 = vst.msk [vmem:[#allocation2 + $0x60] sm:$0xff] %vm577, -1e+20
        %591 = vst.msk [vmem:[#allocation2 + $0x68] sm:$0xff] %vm577, -1e+20
        %592 = vst.msk [vmem:[#allocation2 + $0x70] sm:$0xff] %vm577, -1e+20
        %593 = vst.msk [vmem:[#allocation2 + $0x78] sm:$0xff] %vm577, -1e+20
        %594 = vst.msk [vmem:[#allocation3] sm:$0xff] %vm577, 0.0
        %595 = vst.msk [vmem:[#allocation3 + $0x8] sm:$0xff] %vm577, 0.0
        %596 = vst.msk [vmem:[#allocation3 + $0x10] sm:$0xff] %vm577, 0.0
        %597 = vst.msk [vmem:[#allocation3 + $0x18] sm:$0xff] %vm577, 0.0
        %598 = vst.msk [vmem:[#allocation3 + $0x20] sm:$0xff] %vm577, 0.0
        %599 = vst.msk [vmem:[#allocation3 + $0x28] sm:$0xff] %vm577, 0.0
        %600 = vst.msk [vmem:[#allocation3 + $0x30] sm:$0xff] %vm577, 0.0
        %601 = vst.msk [vmem:[#allocation3 + $0x38] sm:$0xff] %vm577, 0.0
        %602 = vst.msk [vmem:[#allocation3 + $0x40] sm:$0xff] %vm577, 0.0
        %603 = vst.msk [vmem:[#allocation3 + $0x48] sm:$0xff] %vm577, 0.0
        %604 = vst.msk [vmem:[#allocation3 + $0x50] sm:$0xff] %vm577, 0.0
        %605 = vst.msk [vmem:[#allocation3 + $0x58] sm:$0xff] %vm577, 0.0
        %606 = vst.msk [vmem:[#allocation3 + $0x60] sm:$0xff] %vm577, 0.0
        %607 = vst.msk [vmem:[#allocation3 + $0x68] sm:$0xff] %vm577, 0.0
        %608 = vst.msk [vmem:[#allocation3 + $0x70] sm:$0xff] %vm577, 0.0
        %609 = vst.msk [vmem:[#allocation3 + $0x78] sm:$0xff] %vm577, 0.0
        %610 = vst.msk [vmem:[#allocation4] sm:$0xff] %vm577, 0.0
        %611 = vst.msk [vmem:[#allocation4 + $0x8] sm:$0xff] %vm577, 0.0
        %612 = vst.msk [vmem:[#allocation4 + $0x10] sm:$0xff] %vm577, 0.0
        %613 = vst.msk [vmem:[#allocation4 + $0x18] sm:$0xff] %vm577, 0.0
        %614 = vst.msk [vmem:[#allocation4 + $0x20] sm:$0xff] %vm577, 0.0
        %615 = vst.msk [vmem:[#allocation4 + $0x28] sm:$0xff] %vm577, 0.0
        %616 = vst.msk [vmem:[#allocation4 + $0x30] sm:$0xff] %vm577, 0.0
        %617 = vst.msk [vmem:[#allocation4 + $0x38] sm:$0xff] %vm577, 0.0
        %618 = vst.msk [vmem:[#allocation4 + $0x40] sm:$0xff] %vm577, 0.0
        %619 = vst.msk [vmem:[#allocation4 + $0x48] sm:$0xff] %vm577, 0.0
        %620 = vst.msk [vmem:[#allocation4 + $0x50] sm:$0xff] %vm577, 0.0
        %621 = vst.msk [vmem:[#allocation4 + $0x58] sm:$0xff] %vm577, 0.0
        %622 = vst.msk [vmem:[#allocation4 + $0x60] sm:$0xff] %vm577, 0.0
        %623 = vst.msk [vmem:[#allocation4 + $0x68] sm:$0xff] %vm577, 0.0
        %624 = vst.msk [vmem:[#allocation4 + $0x70] sm:$0xff] %vm577, 0.0
        %625 = vst.msk [vmem:[#allocation4 + $0x78] sm:$0xff] %vm577, 0.0
        %626 = vst.msk [vmem:[#allocation5] sm:$0xff] %vm577, 0.0
        %627 = vst.msk [vmem:[#allocation5 + $0x8] sm:$0xff] %vm577, 0.0
        %628 = vst.msk [vmem:[#allocation5 + $0x10] sm:$0xff] %vm577, 0.0
        %629 = vst.msk [vmem:[#allocation5 + $0x18] sm:$0xff] %vm577, 0.0
        %630 = vst.msk [vmem:[#allocation5 + $0x20] sm:$0xff] %vm577, 0.0
        %631 = vst.msk [vmem:[#allocation5 + $0x28] sm:$0xff] %vm577, 0.0
        %632 = vst.msk [vmem:[#allocation5 + $0x30] sm:$0xff] %vm577, 0.0
        %633 = vst.msk [vmem:[#allocation5 + $0x38] sm:$0xff] %vm577, 0.0
        %634 = vst.msk [vmem:[#allocation5 + $0x40] sm:$0xff] %vm577, 0.0
        %635 = vst.msk [vmem:[#allocation5 + $0x48] sm:$0xff] %vm577, 0.0
        %636 = vst.msk [vmem:[#allocation5 + $0x50] sm:$0xff] %vm577, 0.0
        %637 = vst.msk [vmem:[#allocation5 + $0x58] sm:$0xff] %vm577, 0.0
        %638 = vst.msk [vmem:[#allocation5 + $0x60] sm:$0xff] %vm577, 0.0
        %639 = vst.msk [vmem:[#allocation5 + $0x68] sm:$0xff] %vm577, 0.0
        %640 = vst.msk [vmem:[#allocation5 + $0x70] sm:$0xff] %vm577, 0.0
        %641 = vst.msk [vmem:[#allocation5 + $0x78] sm:$0xff] %vm577, 0.0
        %vm642 = vcmask 0
        %643 = vst.msk [vmem:[%s542] sm:$0x1] %vm642, 0.0
        %644 = vst.msk [vmem:[%s549] sm:$0x1] %vm642, 0.0
      $region48: #{combined_spatiotemporal_forward.1} parent=43 // pred_fallthru
        _
      %p645 = scmp.eq.s32.totalorder %s552, 0
      %p646 = pnand %p566, %p645
      %p647 = pneg %p646
      // Predicated region
      $region49: #{combined_spatiotemporal_forward.1} parent=43 // pred_check
        _
      $region50: #{combined_spatiotemporal_forward.1} parent=43 // pred_check_branch
        %649 = sbr.rel (%p646) target = $region52
      $region51: #{combined_spatiotemporal_forward.1} parent=43 // pred_region
        %v650 = vld [vmem:[%s524] sm:$0x1]
        %v651 = vld [vmem:[%s524 + $0x80] sm:$0x1]
        %v652 = vstv %s554
        %v653 = vsub.f32 %v650, %v652
        %v654 = vsub.f32 %v651, %v652
        %v655 = vstv %s555
        %v656 = vmul.f32 %v653, %v655
        %v657 = vmul.f32 %v654, %v655
        %v658 = vmul.f32 %v656, -0.5
        %v659 = vmul.f32 %v657, -0.5
        %v660 = vmul.f32 %v658, %v656
        %v661 = vmul.f32 %v659, %v657
        %v664 = vrot.slane %v661, 7
        %vm665 = vcmask 1041409
        %v666 = vsel %vm665, %v664, %v660
        %vm668 = vcmask 1024
        %v669 = vsel %vm668, %v666, 0.0
        %v670 = vrot.slane %v669, 4
        %v671 = vadd.f32 %v669, %v670
        %v672 = vrot.slane %v671, 2
        %v673 = vadd.f32 %v671, %v672
        %v674 = vrot.slane %v673, 1
        %v675 = vadd.f32 %v673, %v674
        %v676 = vstv %s556
        %v677 = vsub.f32 %v675, %v676
        %v678 = vld [vmem:[%s542] sm:$0x1]
        %v679 = vadd.f32 %v678, %v677
        %vm680 = vcmask 0
        %681 = vst.msk [vmem:[%s542] sm:$0x1] %vm680, %v679
        %v682 = vld [vmem:[%s549] sm:$0x1]
        %s683 = ssub.f32 %s565, %s564
        %s684 = smul.f32 %s560, %s683
        %s685 = ssub.f32 0.0, %s684
        %v686 = vstv %s685
        %v687 = vadd.f32 %v682, %v686
        %688 = vst.msk [vmem:[%s549] sm:$0x1] %vm680, %v687
      $region52: #{combined_spatiotemporal_forward.1} parent=43 // pred_fallthru
        _
      %v689 = vld [vmem:[%s483] sm:$0xff]
      %v690 = vld [vmem:[%s483 + $0x8] sm:$0xff]
      %v691 = vld [vmem:[%s483 + $0x10] sm:$0xff]
      %v692 = vld [vmem:[%s483 + $0x18] sm:$0xff]
      %v693 = vld [vmem:[%s483 + $0x20] sm:$0xff]
      %v694 = vld [vmem:[%s483 + $0x28] sm:$0xff]
      %v695 = vld [vmem:[%s483 + $0x30] sm:$0xff]
      %v696 = vld [vmem:[%s483 + $0x38] sm:$0xff]
      %v697 = vld [vmem:[%s483 + $0x40] sm:$0xff]
      %v698 = vld [vmem:[%s483 + $0x48] sm:$0xff]
      %v699 = vld [vmem:[%s483 + $0x50] sm:$0xff]
      %v700 = vld [vmem:[%s483 + $0x58] sm:$0xff]
      %v701 = vld [vmem:[%s483 + $0x60] sm:$0xff]
      %v702 = vld [vmem:[%s483 + $0x68] sm:$0xff]
      %v703 = vld [vmem:[%s483 + $0x70] sm:$0xff]
      %v704 = vld [vmem:[%s483 + $0x78] sm:$0xff]
      %v705 = vld [vmem:[%s492] sm:$0x1]
      %v706 = vld [vmem:[%s512] sm:$0x1]
      // Predicated region
      $region53: #{combined_spatiotemporal_forward.1} parent=43 // pred_check
        %p707 = pneg %p573
      $region54: #{combined_spatiotemporal_forward.1} parent=43 // pred_check_branch
        %709 = sbr.rel (%p707) target = $region56
      $region55: #{combined_spatiotemporal_forward.1} parent=43 // pred_region
        %vm710 = vcmp.gt.f32.partialorder %v706, 0.5
        %712 = vset.pattern.permute.xlu0 0
        %713 = vperm.xlu0 %712, %v689
        %v714 = vpop.permute.xlu0 %713
        %717 = vset.pattern.permute.xlu0 0
        %718 = vperm.xlu0 %717, %v690
        %v719 = vpop.permute.xlu0 %718
        %722 = vset.pattern.permute.xlu0 0
        %723 = vperm.xlu0 %722, %v691
        %v724 = vpop.permute.xlu0 %723
        %727 = vset.pattern.permute.xlu0 0
        %728 = vperm.xlu0 %727, %v692
        %v729 = vpop.permute.xlu0 %728
        %732 = vset.pattern.permute.xlu0 0
        %733 = vperm.xlu0 %732, %v693
        %v734 = vpop.permute.xlu0 %733
        %737 = vset.pattern.permute.xlu0 0
        %738 = vperm.xlu0 %737, %v694
        %v739 = vpop.permute.xlu0 %738
        %742 = vset.pattern.permute.xlu0 0
        %743 = vperm.xlu0 %742, %v695
        %v744 = vpop.permute.xlu0 %743
        %747 = vset.pattern.permute.xlu0 0
        %748 = vperm.xlu0 %747, %v696
        %v749 = vpop.permute.xlu0 %748
        %752 = vset.pattern.permute.xlu0 0
        %753 = vperm.xlu0 %752, %v697
        %v754 = vpop.permute.xlu0 %753
        %757 = vset.pattern.permute.xlu0 0
        %758 = vperm.xlu0 %757, %v698
        %v759 = vpop.permute.xlu0 %758
        %762 = vset.pattern.permute.xlu0 0
        %763 = vperm.xlu0 %762, %v699
        %v764 = vpop.permute.xlu0 %763
        %767 = vset.pattern.permute.xlu0 0
        %768 = vperm.xlu0 %767, %v700
        %v769 = vpop.permute.xlu0 %768
        %772 = vset.pattern.permute.xlu0 0
        %773 = vperm.xlu0 %772, %v701
        %v774 = vpop.permute.xlu0 %773
        %777 = vset.pattern.permute.xlu0 0
        %778 = vperm.xlu0 %777, %v702
        %v779 = vpop.permute.xlu0 %778
        %782 = vset.pattern.permute.xlu0 0
        %783 = vperm.xlu0 %782, %v703
        %v784 = vpop.permute.xlu0 %783
        %787 = vset.pattern.permute.xlu0 0
        %788 = vperm.xlu0 %787, %v704
        %v789 = vpop.permute.xlu0 %788
        %v792 = vlaneseq
        %v793 = vshrl.u32 %v792, 7
        %v794 = vsub.s32 0, %v793
        %v795 = vrot.slane %v705, %v794
        %v797 = vsub.f32 %v714, %v795
        %v798 = vsub.f32 %v719, %v795
        %v799 = vsub.f32 %v724, %v795
        %v800 = vsub.f32 %v729, %v795
        %v801 = vsub.f32 %v734, %v795
        %v802 = vsub.f32 %v739, %v795
        %v803 = vsub.f32 %v744, %v795
        %v804 = vsub.f32 %v749, %v795
        %v805 = vsub.f32 %v754, %v795
        %v806 = vsub.f32 %v759, %v795
        %v807 = vsub.f32 %v764, %v795
        %v808 = vsub.f32 %v769, %v795
        %v809 = vsub.f32 %v774, %v795
        %v810 = vsub.f32 %v779, %v795
        %v811 = vsub.f32 %v784, %v795
        %v812 = vsub.f32 %v789, %v795
        %v813 = vstv %s559
        %v814 = vmul.f32 %v797, %v813
        %v815 = vmul.f32 %v798, %v813
        %v816 = vmul.f32 %v799, %v813
        %v817 = vmul.f32 %v800, %v813
        %v818 = vmul.f32 %v801, %v813
        %v819 = vmul.f32 %v802, %v813
        %v820 = vmul.f32 %v803, %v813
        %v821 = vmul.f32 %v804, %v813
        %v822 = vmul.f32 %v805, %v813
        %v823 = vmul.f32 %v806, %v813
        %v824 = vmul.f32 %v807, %v813
        %v825 = vmul.f32 %v808, %v813
        %v826 = vmul.f32 %v809, %v813
        %v827 = vmul.f32 %v810, %v813
        %v828 = vmul.f32 %v811, %v813
        %v829 = vmul.f32 %v812, %v813
        %v830 = vsel %vm710, 1, 0
        %v831 = vlaneseq
        %v832 = vshrl.u32 %v831, 7
        %v833 = vsub.s32 0, %v832
        %v834 = vrot.slane %v830, %v833
        %vm835 = vcmp.eq.s32.totalorder %v834, 1
        %v836 = vsel %vm835, %v814, -1e+20
        %v837 = vsel %vm835, %v815, -1e+20
        %v838 = vsel %vm835, %v816, -1e+20
        %v839 = vsel %vm835, %v817, -1e+20
        %v840 = vsel %vm835, %v818, -1e+20
        %v841 = vsel %vm835, %v819, -1e+20
        %v842 = vsel %vm835, %v820, -1e+20
        %v843 = vsel %vm835, %v821, -1e+20
        %v844 = vsel %vm835, %v822, -1e+20
        %v845 = vsel %vm835, %v823, -1e+20
        %v846 = vsel %vm835, %v824, -1e+20
        %v847 = vsel %vm835, %v825, -1e+20
        %v848 = vsel %vm835, %v826, -1e+20
        %v849 = vsel %vm835, %v827, -1e+20
        %v850 = vsel %vm835, %v828, -1e+20
        %v851 = vsel %vm835, %v829, -1e+20
        %v852 = vld [vmem:[#allocation2] sm:$0xff]
        %v853 = vld [vmem:[#allocation2 + $0x8] sm:$0xff]
        %v854 = vld [vmem:[#allocation2 + $0x10] sm:$0xff]
        %v855 = vld [vmem:[#allocation2 + $0x18] sm:$0xff]
        %v856 = vld [vmem:[#allocation2 + $0x20] sm:$0xff]
        %v857 = vld [vmem:[#allocation2 + $0x28] sm:$0xff]
        %v858 = vld [vmem:[#allocation2 + $0x30] sm:$0xff]
        %v859 = vld [vmem:[#allocation2 + $0x38] sm:$0xff]
        %v860 = vld [vmem:[#allocation2 + $0x40] sm:$0xff]
        %v861 = vld [vmem:[#allocation2 + $0x48] sm:$0xff]
        %v862 = vld [vmem:[#allocation2 + $0x50] sm:$0xff]
        %v863 = vld [vmem:[#allocation2 + $0x58] sm:$0xff]
        %v864 = vld [vmem:[#allocation2 + $0x60] sm:$0xff]
        %v865 = vld [vmem:[#allocation2 + $0x68] sm:$0xff]
        %v866 = vld [vmem:[#allocation2 + $0x70] sm:$0xff]
        %v867 = vld [vmem:[#allocation2 + $0x78] sm:$0xff]
        %868 = vmax.xlane.f32.xlu0 %v836
        %v869 = vpop.xlane.xlu0 %868
        %870 = vmax.xlane.f32.xlu0 %v837
        %v871 = vpop.xlane.xlu0 %870
        %872 = vmax.xlane.f32.xlu0 %v838
        %v873 = vpop.xlane.xlu0 %872
        %874 = vmax.xlane.f32.xlu0 %v839
        %v875 = vpop.xlane.xlu0 %874
        %876 = vmax.xlane.f32.xlu0 %v840
        %v877 = vpop.xlane.xlu0 %876
        %878 = vmax.xlane.f32.xlu0 %v841
        %v879 = vpop.xlane.xlu0 %878
        %880 = vmax.xlane.f32.xlu0 %v842
        %v881 = vpop.xlane.xlu0 %880
        %882 = vmax.xlane.f32.xlu0 %v843
        %v883 = vpop.xlane.xlu0 %882
        %884 = vmax.xlane.f32.xlu0 %v844
        %v885 = vpop.xlane.xlu0 %884
        %886 = vmax.xlane.f32.xlu0 %v845
        %v887 = vpop.xlane.xlu0 %886
        %888 = vmax.xlane.f32.xlu0 %v846
        %v889 = vpop.xlane.xlu0 %888
        %890 = vmax.xlane.f32.xlu0 %v847
        %v891 = vpop.xlane.xlu0 %890
        %892 = vmax.xlane.f32.xlu0 %v848
        %v893 = vpop.xlane.xlu0 %892
        %894 = vmax.xlane.f32.xlu0 %v849
        %v895 = vpop.xlane.xlu0 %894
        %896 = vmax.xlane.f32.xlu0 %v850
        %v897 = vpop.xlane.xlu0 %896
        %898 = vmax.xlane.f32.xlu0 %v851
        %v899 = vpop.xlane.xlu0 %898
        %v900 = vmax.f32 %v852, %v869
        %v901 = vmax.f32 %v853, %v871
        %v902 = vmax.f32 %v854, %v873
        %v903 = vmax.f32 %v855, %v875
        %v904 = vmax.f32 %v856, %v877
        %v905 = vmax.f32 %v857, %v879
        %v906 = vmax.f32 %v858, %v881
        %v907 = vmax.f32 %v859, %v883
        %v908 = vmax.f32 %v860, %v885
        %v909 = vmax.f32 %v861, %v887
        %v910 = vmax.f32 %v862, %v889
        %v911 = vmax.f32 %v863, %v891
        %v912 = vmax.f32 %v864, %v893
        %v913 = vmax.f32 %v865, %v895
        %v914 = vmax.f32 %v866, %v897
        %v915 = vmax.f32 %v867, %v899
        %v916 = vsub.f32 %v852, %v900
        %v917 = vsub.f32 %v853, %v901
        %v918 = vsub.f32 %v854, %v902
        %v919 = vsub.f32 %v855, %v903
        %v920 = vsub.f32 %v856, %v904
        %v921 = vsub.f32 %v857, %v905
        %v922 = vsub.f32 %v858, %v906
        %v923 = vsub.f32 %v859, %v907
        %v924 = vsub.f32 %v860, %v908
        %v925 = vsub.f32 %v861, %v909
        %v926 = vsub.f32 %v862, %v910
        %v927 = vsub.f32 %v863, %v911
        %v928 = vsub.f32 %v864, %v912
        %v929 = vsub.f32 %v865, %v913
        %v930 = vsub.f32 %v866, %v914
        %v931 = vsub.f32 %v867, %v915
        %v932 = vmul.f32 %v916, 1.442695
        %v933 = vpow.pop %v932
        %v934 = vmul.f32 %v917, 1.442695
        %v935 = vpow.pop %v934
        %v936 = vmul.f32 %v918, 1.442695
        %v937 = vpow.pop %v936
        %v938 = vmul.f32 %v919, 1.442695
        %v939 = vpow.pop %v938
        %v940 = vmul.f32 %v920, 1.442695
        %v941 = vpow.pop %v940
        %v942 = vmul.f32 %v921, 1.442695
        %v943 = vpow.pop %v942
        %v944 = vmul.f32 %v922, 1.442695
        %v945 = vpow.pop %v944
        %v946 = vmul.f32 %v923, 1.442695
        %v947 = vpow.pop %v946
        %v948 = vmul.f32 %v924, 1.442695
        %v949 = vpow.pop %v948
        %v950 = vmul.f32 %v925, 1.442695
        %v951 = vpow.pop %v950
        %v952 = vmul.f32 %v926, 1.442695
        %v953 = vpow.pop %v952
        %v954 = vmul.f32 %v927, 1.442695
        %v955 = vpow.pop %v954
        %v956 = vmul.f32 %v928, 1.442695
        %v957 = vpow.pop %v956
        %v958 = vmul.f32 %v929, 1.442695
        %v959 = vpow.pop %v958
        %v960 = vmul.f32 %v930, 1.442695
        %v961 = vpow.pop %v960
        %v962 = vmul.f32 %v931, 1.442695
        %v963 = vpow.pop %v962
        %965 = vset.pattern.permute.xlu0 0
        %966 = vperm.xlu0 %965, %v900
        %v967 = vpop.permute.xlu0 %966
        %970 = vset.pattern.permute.xlu0 0
        %971 = vperm.xlu0 %970, %v901
        %v972 = vpop.permute.xlu0 %971
        %975 = vset.pattern.permute.xlu0 0
        %976 = vperm.xlu0 %975, %v902
        %v977 = vpop.permute.xlu0 %976
        %980 = vset.pattern.permute.xlu0 0
        %981 = vperm.xlu0 %980, %v903
        %v982 = vpop.permute.xlu0 %981
        %985 = vset.pattern.permute.xlu0 0
        %986 = vperm.xlu0 %985, %v904
        %v987 = vpop.permute.xlu0 %986
        %990 = vset.pattern.permute.xlu0 0
        %991 = vperm.xlu0 %990, %v905
        %v992 = vpop.permute.xlu0 %991
        %995 = vset.pattern.permute.xlu0 0
        %996 = vperm.xlu0 %995, %v906
        %v997 = vpop.permute.xlu0 %996
        %1000 = vset.pattern.permute.xlu0 0
        %1001 = vperm.xlu0 %1000, %v907
        %v1002 = vpop.permute.xlu0 %1001
        %1005 = vset.pattern.permute.xlu0 0
        %1006 = vperm.xlu0 %1005, %v908
        %v1007 = vpop.permute.xlu0 %1006
        %1010 = vset.pattern.permute.xlu0 0
        %1011 = vperm.xlu0 %1010, %v909
        %v1012 = vpop.permute.xlu0 %1011
        %1015 = vset.pattern.permute.xlu0 0
        %1016 = vperm.xlu0 %1015, %v910
        %v1017 = vpop.permute.xlu0 %1016
        %1020 = vset.pattern.permute.xlu0 0
        %1021 = vperm.xlu0 %1020, %v911
        %v1022 = vpop.permute.xlu0 %1021
        %1025 = vset.pattern.permute.xlu0 0
        %1026 = vperm.xlu0 %1025, %v912
        %v1027 = vpop.permute.xlu0 %1026
        %1030 = vset.pattern.permute.xlu0 0
        %1031 = vperm.xlu0 %1030, %v913
        %v1032 = vpop.permute.xlu0 %1031
        %1035 = vset.pattern.permute.xlu0 0
        %1036 = vperm.xlu0 %1035, %v914
        %v1037 = vpop.permute.xlu0 %1036
        %1040 = vset.pattern.permute.xlu0 0
        %1041 = vperm.xlu0 %1040, %v915
        %v1042 = vpop.permute.xlu0 %1041
        %v1044 = vsub.f32 %v836, %v967
        %v1045 = vsub.f32 %v837, %v972
        %v1046 = vsub.f32 %v838, %v977
        %v1047 = vsub.f32 %v839, %v982
        %v1048 = vsub.f32 %v840, %v987
        %v1049 = vsub.f32 %v841, %v992
        %v1050 = vsub.f32 %v842, %v997
        %v1051 = vsub.f32 %v843, %v1002
        %v1052 = vsub.f32 %v844, %v1007
        %v1053 = vsub.f32 %v845, %v1012
        %v1054 = vsub.f32 %v846, %v1017
        %v1055 = vsub.f32 %v847, %v1022
        %v1056 = vsub.f32 %v848, %v1027
        %v1057 = vsub.f32 %v849, %v1032
        %v1058 = vsub.f32 %v850, %v1037
        %v1059 = vsub.f32 %v851, %v1042
        %v1060 = vmul.f32 %v1044, 1.442695
        %v1061 = vpow.pop %v1060
        %v1062 = vmul.f32 %v1045, 1.442695
        %v1063 = vpow.pop %v1062
        %v1064 = vmul.f32 %v1046, 1.442695
        %v1065 = vpow.pop %v1064
        %v1066 = vmul.f32 %v1047, 1.442695
        %v1067 = vpow.pop %v1066
        %v1068 = vmul.f32 %v1048, 1.442695
        %v1069 = vpow.pop %v1068
        %v1070 = vmul.f32 %v1049, 1.442695
        %v1071 = vpow.pop %v1070
        %v1072 = vmul.f32 %v1050, 1.442695
        %v1073 = vpow.pop %v1072
        %v1074 = vmul.f32 %v1051, 1.442695
        %v1075 = vpow.pop %v1074
        %v1076 = vmul.f32 %v1052, 1.442695
        %v1077 = vpow.pop %v1076
        %v1078 = vmul.f32 %v1053, 1.442695
        %v1079 = vpow.pop %v1078
        %v1080 = vmul.f32 %v1054, 1.442695
        %v1081 = vpow.pop %v1080
        %v1082 = vmul.f32 %v1055, 1.442695
        %v1083 = vpow.pop %v1082
        %v1084 = vmul.f32 %v1056, 1.442695
        %v1085 = vpow.pop %v1084
        %v1086 = vmul.f32 %v1057, 1.442695
        %v1087 = vpow.pop %v1086
        %v1088 = vmul.f32 %v1058, 1.442695
        %v1089 = vpow.pop %v1088
        %v1090 = vmul.f32 %v1059, 1.442695
        %v1091 = vpow.pop %v1090
        %v1092 = vld [vmem:[%s524] sm:$0xff]
        %v1093 = vld [vmem:[%s524 + $0x8] sm:$0xff]
        %v1094 = vld [vmem:[%s524 + $0x10] sm:$0xff]
        %v1095 = vld [vmem:[%s524 + $0x18] sm:$0xff]
        %v1096 = vld [vmem:[%s524 + $0x20] sm:$0xff]
        %v1097 = vld [vmem:[%s524 + $0x28] sm:$0xff]
        %v1098 = vld [vmem:[%s524 + $0x30] sm:$0xff]
        %v1099 = vld [vmem:[%s524 + $0x38] sm:$0xff]
        %v1100 = vld [vmem:[%s524 + $0x40] sm:$0xff]
        %v1101 = vld [vmem:[%s524 + $0x48] sm:$0xff]
        %v1102 = vld [vmem:[%s524 + $0x50] sm:$0xff]
        %v1103 = vld [vmem:[%s524 + $0x58] sm:$0xff]
        %v1104 = vld [vmem:[%s524 + $0x60] sm:$0xff]
        %v1105 = vld [vmem:[%s524 + $0x68] sm:$0xff]
        %v1106 = vld [vmem:[%s524 + $0x70] sm:$0xff]
        %v1107 = vld [vmem:[%s524 + $0x78] sm:$0xff]
        %v1108 = vld [vmem:[%s535] sm:$0x1]
        %1110 = vset.pattern.permute.xlu0 0
        %1111 = vperm.xlu0 %1110, %v1092
        %v1112 = vpop.permute.xlu0 %1111
        %1115 = vset.pattern.permute.xlu0 0
        %1116 = vperm.xlu0 %1115, %v1093
        %v1117 = vpop.permute.xlu0 %1116
        %1120 = vset.pattern.permute.xlu0 0
        %1121 = vperm.xlu0 %1120, %v1094
        %v1122 = vpop.permute.xlu0 %1121
        %1125 = vset.pattern.permute.xlu0 0
        %1126 = vperm.xlu0 %1125, %v1095
        %v1127 = vpop.permute.xlu0 %1126
        %1130 = vset.pattern.permute.xlu0 0
        %1131 = vperm.xlu0 %1130, %v1096
        %v1132 = vpop.permute.xlu0 %1131
        %1135 = vset.pattern.permute.xlu0 0
        %1136 = vperm.xlu0 %1135, %v1097
        %v1137 = vpop.permute.xlu0 %1136
        %1140 = vset.pattern.permute.xlu0 0
        %1141 = vperm.xlu0 %1140, %v1098
        %v1142 = vpop.permute.xlu0 %1141
        %1145 = vset.pattern.permute.xlu0 0
        %1146 = vperm.xlu0 %1145, %v1099
        %v1147 = vpop.permute.xlu0 %1146
        %1150 = vset.pattern.permute.xlu0 0
        %1151 = vperm.xlu0 %1150, %v1100
        %v1152 = vpop.permute.xlu0 %1151
        %1155 = vset.pattern.permute.xlu0 0
        %1156 = vperm.xlu0 %1155, %v1101
        %v1157 = vpop.permute.xlu0 %1156
        %1160 = vset.pattern.permute.xlu0 0
        %1161 = vperm.xlu0 %1160, %v1102
        %v1162 = vpop.permute.xlu0 %1161
        %1165 = vset.pattern.permute.xlu0 0
        %1166 = vperm.xlu0 %1165, %v1103
        %v1167 = vpop.permute.xlu0 %1166
        %1170 = vset.pattern.permute.xlu0 0
        %1171 = vperm.xlu0 %1170, %v1104
        %v1172 = vpop.permute.xlu0 %1171
        %1175 = vset.pattern.permute.xlu0 0
        %1176 = vperm.xlu0 %1175, %v1105
        %v1177 = vpop.permute.xlu0 %1176
        %1180 = vset.pattern.permute.xlu0 0
        %1181 = vperm.xlu0 %1180, %v1106
        %v1182 = vpop.permute.xlu0 %1181
        %1185 = vset.pattern.permute.xlu0 0
        %1186 = vperm.xlu0 %1185, %v1107
        %v1187 = vpop.permute.xlu0 %1186
        %v1190 = vlaneseq
        %v1191 = vshrl.u32 %v1190, 7
        %v1192 = vsub.s32 0, %v1191
        %v1193 = vrot.slane %v1108, %v1192
        %v1195 = vsub.f32 %v1112, %v1193
        %v1196 = vsub.f32 %v1117, %v1193
        %v1197 = vsub.f32 %v1122, %v1193
        %v1198 = vsub.f32 %v1127, %v1193
        %v1199 = vsub.f32 %v1132, %v1193
        %v1200 = vsub.f32 %v1137, %v1193
        %v1201 = vsub.f32 %v1142, %v1193
        %v1202 = vsub.f32 %v1147, %v1193
        %v1203 = vsub.f32 %v1152, %v1193
        %v1204 = vsub.f32 %v1157, %v1193
        %v1205 = vsub.f32 %v1162, %v1193
        %v1206 = vsub.f32 %v1167, %v1193
        %v1207 = vsub.f32 %v1172, %v1193
        %v1208 = vsub.f32 %v1177, %v1193
        %v1209 = vsub.f32 %v1182, %v1193
        %v1210 = vsub.f32 %v1187, %v1193
        %v1211 = vmul.f32 %v1195, %v1195
        %v1212 = vmul.f32 %v1196, %v1196
        %v1213 = vmul.f32 %v1197, %v1197
        %v1214 = vmul.f32 %v1198, %v1198
        %v1215 = vmul.f32 %v1199, %v1199
        %v1216 = vmul.f32 %v1200, %v1200
        %v1217 = vmul.f32 %v1201, %v1201
        %v1218 = vmul.f32 %v1202, %v1202
        %v1219 = vmul.f32 %v1203, %v1203
        %v1220 = vmul.f32 %v1204, %v1204
        %v1221 = vmul.f32 %v1205, %v1205
        %v1222 = vmul.f32 %v1206, %v1206
        %v1223 = vmul.f32 %v1207, %v1207
        %v1224 = vmul.f32 %v1208, %v1208
        %v1225 = vmul.f32 %v1209, %v1209
        %v1226 = vmul.f32 %v1210, %v1210
        %s1227 = scalar_lea.vmem %s524, 128
        %v1228 = vld [vmem:[%s1227] sm:$0xff]
        %v1229 = vld [vmem:[%s1227 + $0x8] sm:$0xff]
        %v1230 = vld [vmem:[%s1227 + $0x10] sm:$0xff]
        %v1231 = vld [vmem:[%s1227 + $0x18] sm:$0xff]
        %v1232 = vld [vmem:[%s1227 + $0x20] sm:$0xff]
        %v1233 = vld [vmem:[%s1227 + $0x28] sm:$0xff]
        %v1234 = vld [vmem:[%s1227 + $0x30] sm:$0xff]
        %v1235 = vld [vmem:[%s1227 + $0x38] sm:$0xff]
        %v1236 = vld [vmem:[%s1227 + $0x40] sm:$0xff]
        %v1237 = vld [vmem:[%s1227 + $0x48] sm:$0xff]
        %v1238 = vld [vmem:[%s1227 + $0x50] sm:$0xff]
        %v1239 = vld [vmem:[%s1227 + $0x58] sm:$0xff]
        %v1240 = vld [vmem:[%s1227 + $0x60] sm:$0xff]
        %v1241 = vld [vmem:[%s1227 + $0x68] sm:$0xff]
        %v1242 = vld [vmem:[%s1227 + $0x70] sm:$0xff]
        %v1243 = vld [vmem:[%s1227 + $0x78] sm:$0xff]
        %s1244 = scalar_lea.vmem %s535, 1
        %v1245 = vld [vmem:[%s1244] sm:$0x1]
        %1247 = vset.pattern.permute.xlu0 0
        %1248 = vperm.xlu0 %1247, %v1228
        %v1249 = vpop.permute.xlu0 %1248
        %1252 = vset.pattern.permute.xlu0 0
        %1253 = vperm.xlu0 %1252, %v1229
        %v1254 = vpop.permute.xlu0 %1253
        %1257 = vset.pattern.permute.xlu0 0
        %1258 = vperm.xlu0 %1257, %v1230
        %v1259 = vpop.permute.xlu0 %1258
        %1262 = vset.pattern.permute.xlu0 0
        %1263 = vperm.xlu0 %1262, %v1231
        %v1264 = vpop.permute.xlu0 %1263
        %1267 = vset.pattern.permute.xlu0 0
        %1268 = vperm.xlu0 %1267, %v1232
        %v1269 = vpop.permute.xlu0 %1268
        %1272 = vset.pattern.permute.xlu0 0
        %1273 = vperm.xlu0 %1272, %v1233
        %v1274 = vpop.permute.xlu0 %1273
        %1277 = vset.pattern.permute.xlu0 0
        %1278 = vperm.xlu0 %1277, %v1234
        %v1279 = vpop.permute.xlu0 %1278
        %1282 = vset.pattern.permute.xlu0 0
        %1283 = vperm.xlu0 %1282, %v1235
        %v1284 = vpop.permute.xlu0 %1283
        %1287 = vset.pattern.permute.xlu0 0
        %1288 = vperm.xlu0 %1287, %v1236
        %v1289 = vpop.permute.xlu0 %1288
        %1292 = vset.pattern.permute.xlu0 0
        %1293 = vperm.xlu0 %1292, %v1237
        %v1294 = vpop.permute.xlu0 %1293
        %1297 = vset.pattern.permute.xlu0 0
        %1298 = vperm.xlu0 %1297, %v1238
        %v1299 = vpop.permute.xlu0 %1298
        %1302 = vset.pattern.permute.xlu0 0
        %1303 = vperm.xlu0 %1302, %v1239
        %v1304 = vpop.permute.xlu0 %1303
        %1307 = vset.pattern.permute.xlu0 0
        %1308 = vperm.xlu0 %1307, %v1240
        %v1309 = vpop.permute.xlu0 %1308
        %1312 = vset.pattern.permute.xlu0 0
        %1313 = vperm.xlu0 %1312, %v1241
        %v1314 = vpop.permute.xlu0 %1313
        %1317 = vset.pattern.permute.xlu0 0
        %1318 = vperm.xlu0 %1317, %v1242
        %v1319 = vpop.permute.xlu0 %1318
        %1322 = vset.pattern.permute.xlu0 0
        %1323 = vperm.xlu0 %1322, %v1243
        %v1324 = vpop.permute.xlu0 %1323
        %v1327 = vlaneseq
        %v1328 = vshrl.u32 %v1327, 7
        %v1329 = vsub.s32 0, %v1328
        %v1330 = vrot.slane %v1245, %v1329
        %v1332 = vsub.f32 %v1249, %v1330
        %v1333 = vsub.f32 %v1254, %v1330
        %v1334 = vsub.f32 %v1259, %v1330
        %v1335 = vsub.f32 %v1264, %v1330
        %v1336 = vsub.f32 %v1269, %v1330
        %v1337 = vsub.f32 %v1274, %v1330
        %v1338 = vsub.f32 %v1279, %v1330
        %v1339 = vsub.f32 %v1284, %v1330
        %v1340 = vsub.f32 %v1289, %v1330
        %v1341 = vsub.f32 %v1294, %v1330
        %v1342 = vsub.f32 %v1299, %v1330
        %v1343 = vsub.f32 %v1304, %v1330
        %v1344 = vsub.f32 %v1309, %v1330
        %v1345 = vsub.f32 %v1314, %v1330
        %v1346 = vsub.f32 %v1319, %v1330
        %v1347 = vsub.f32 %v1324, %v1330
        %v1348 = vmul.f32 %v1332, %v1332
        %v1349 = vmul.f32 %v1333, %v1333
        %v1350 = vmul.f32 %v1334, %v1334
        %v1351 = vmul.f32 %v1335, %v1335
        %v1352 = vmul.f32 %v1336, %v1336
        %v1353 = vmul.f32 %v1337, %v1337
        %v1354 = vmul.f32 %v1338, %v1338
        %v1355 = vmul.f32 %v1339, %v1339
        %v1356 = vmul.f32 %v1340, %v1340
        %v1357 = vmul.f32 %v1341, %v1341
        %v1358 = vmul.f32 %v1342, %v1342
        %v1359 = vmul.f32 %v1343, %v1343
        %v1360 = vmul.f32 %v1344, %v1344
        %v1361 = vmul.f32 %v1345, %v1345
        %v1362 = vmul.f32 %v1346, %v1346
        %v1363 = vmul.f32 %v1347, %v1347
        %v1364 = vadd.f32 %v1211, %v1348
        %v1365 = vadd.f32 %v1212, %v1349
        %v1366 = vadd.f32 %v1213, %v1350
        %v1367 = vadd.f32 %v1214, %v1351
        %v1368 = vadd.f32 %v1215, %v1352
        %v1369 = vadd.f32 %v1216, %v1353
        %v1370 = vadd.f32 %v1217, %v1354
        %v1371 = vadd.f32 %v1218, %v1355
        %v1372 = vadd.f32 %v1219, %v1356
        %v1373 = vadd.f32 %v1220, %v1357
        %v1374 = vadd.f32 %v1221, %v1358
        %v1375 = vadd.f32 %v1222, %v1359
        %v1376 = vadd.f32 %v1223, %v1360
        %v1377 = vadd.f32 %v1224, %v1361
        %v1378 = vadd.f32 %v1225, %v1362
        %v1379 = vadd.f32 %v1226, %v1363
        %v1380 = vstv %s557
        %v1381 = vmul.f32 %v1364, %v1380
        %v1382 = vmul.f32 %v1365, %v1380
        %v1383 = vmul.f32 %v1366, %v1380
        %v1384 = vmul.f32 %v1367, %v1380
        %v1385 = vmul.f32 %v1368, %v1380
        %v1386 = vmul.f32 %v1369, %v1380
        %v1387 = vmul.f32 %v1370, %v1380
        %v1388 = vmul.f32 %v1371, %v1380
        %v1389 = vmul.f32 %v1372, %v1380
        %v1390 = vmul.f32 %v1373, %v1380
        %v1391 = vmul.f32 %v1374, %v1380
        %v1392 = vmul.f32 %v1375, %v1380
        %v1393 = vmul.f32 %v1376, %v1380
        %v1394 = vmul.f32 %v1377, %v1380
        %v1395 = vmul.f32 %v1378, %v1380
        %v1396 = vmul.f32 %v1379, %v1380
        %v1397 = vmul.f32 %v1381, 1.442695
        %v1398 = vpow.pop %v1397
        %v1399 = vmul.f32 %v1382, 1.442695
        %v1400 = vpow.pop %v1399
        %v1401 = vmul.f32 %v1383, 1.442695
        %v1402 = vpow.pop %v1401
        %v1403 = vmul.f32 %v1384, 1.442695
        %v1404 = vpow.pop %v1403
        %v1405 = vmul.f32 %v1385, 1.442695
        %v1406 = vpow.pop %v1405
        %v1407 = vmul.f32 %v1386, 1.442695
        %v1408 = vpow.pop %v1407
        %v1409 = vmul.f32 %v1387, 1.442695
        %v1410 = vpow.pop %v1409
        %v1411 = vmul.f32 %v1388, 1.442695
        %v1412 = vpow.pop %v1411
        %v1413 = vmul.f32 %v1389, 1.442695
        %v1414 = vpow.pop %v1413
        %v1415 = vmul.f32 %v1390, 1.442695
        %v1416 = vpow.pop %v1415
        %v1417 = vmul.f32 %v1391, 1.442695
        %v1418 = vpow.pop %v1417
        %v1419 = vmul.f32 %v1392, 1.442695
        %v1420 = vpow.pop %v1419
        %v1421 = vmul.f32 %v1393, 1.442695
        %v1422 = vpow.pop %v1421
        %v1423 = vmul.f32 %v1394, 1.442695
        %v1424 = vpow.pop %v1423
        %v1425 = vmul.f32 %v1395, 1.442695
        %v1426 = vpow.pop %v1425
        %v1427 = vmul.f32 %v1396, 1.442695
        %v1428 = vpow.pop %v1427
        %v1429 = vld [vmem:[#allocation4] sm:$0xff]
        %v1430 = vld [vmem:[#allocation4 + $0x8] sm:$0xff]
        %v1431 = vld [vmem:[#allocation4 + $0x10] sm:$0xff]
        %v1432 = vld [vmem:[#allocation4 + $0x18] sm:$0xff]
        %v1433 = vld [vmem:[#allocation4 + $0x20] sm:$0xff]
        %v1434 = vld [vmem:[#allocation4 + $0x28] sm:$0xff]
        %v1435 = vld [vmem:[#allocation4 + $0x30] sm:$0xff]
        %v1436 = vld [vmem:[#allocation4 + $0x38] sm:$0xff]
        %v1437 = vld [vmem:[#allocation4 + $0x40] sm:$0xff]
        %v1438 = vld [vmem:[#allocation4 + $0x48] sm:$0xff]
        %v1439 = vld [vmem:[#allocation4 + $0x50] sm:$0xff]
        %v1440 = vld [vmem:[#allocation4 + $0x58] sm:$0xff]
        %v1441 = vld [vmem:[#allocation4 + $0x60] sm:$0xff]
        %v1442 = vld [vmem:[#allocation4 + $0x68] sm:$0xff]
        %v1443 = vld [vmem:[#allocation4 + $0x70] sm:$0xff]
        %v1444 = vld [vmem:[#allocation4 + $0x78] sm:$0xff]
        %v1445 = vmul.f32 %v1429, %v933
        %v1446 = vmul.f32 %v1430, %v935
        %v1447 = vmul.f32 %v1431, %v937
        %v1448 = vmul.f32 %v1432, %v939
        %v1449 = vmul.f32 %v1433, %v941
        %v1450 = vmul.f32 %v1434, %v943
        %v1451 = vmul.f32 %v1435, %v945
        %v1452 = vmul.f32 %v1436, %v947
        %v1453 = vmul.f32 %v1437, %v949
        %v1454 = vmul.f32 %v1438, %v951
        %v1455 = vmul.f32 %v1439, %v953
        %v1456 = vmul.f32 %v1440, %v955
        %v1457 = vmul.f32 %v1441, %v957
        %v1458 = vmul.f32 %v1442, %v959
        %v1459 = vmul.f32 %v1443, %v961
        %v1460 = vmul.f32 %v1444, %v963
        %1461 = vadd.xlane.f32.xlu0 %v1061
        %v1462 = vpop.xlane.xlu0 %1461
        %1463 = vadd.xlane.f32.xlu0 %v1063
        %v1464 = vpop.xlane.xlu0 %1463
        %1465 = vadd.xlane.f32.xlu0 %v1065
        %v1466 = vpop.xlane.xlu0 %1465
        %1467 = vadd.xlane.f32.xlu0 %v1067
        %v1468 = vpop.xlane.xlu0 %1467
        %1469 = vadd.xlane.f32.xlu0 %v1069
        %v1470 = vpop.xlane.xlu0 %1469
        %1471 = vadd.xlane.f32.xlu0 %v1071
        %v1472 = vpop.xlane.xlu0 %1471
        %1473 = vadd.xlane.f32.xlu0 %v1073
        %v1474 = vpop.xlane.xlu0 %1473
        %1475 = vadd.xlane.f32.xlu0 %v1075
        %v1476 = vpop.xlane.xlu0 %1475
        %1477 = vadd.xlane.f32.xlu0 %v1077
        %v1478 = vpop.xlane.xlu0 %1477
        %1479 = vadd.xlane.f32.xlu0 %v1079
        %v1480 = vpop.xlane.xlu0 %1479
        %1481 = vadd.xlane.f32.xlu0 %v1081
        %v1482 = vpop.xlane.xlu0 %1481
        %1483 = vadd.xlane.f32.xlu0 %v1083
        %v1484 = vpop.xlane.xlu0 %1483
        %1485 = vadd.xlane.f32.xlu0 %v1085
        %v1486 = vpop.xlane.xlu0 %1485
        %1487 = vadd.xlane.f32.xlu0 %v1087
        %v1488 = vpop.xlane.xlu0 %1487
        %1489 = vadd.xlane.f32.xlu0 %v1089
        %v1490 = vpop.xlane.xlu0 %1489
        %1491 = vadd.xlane.f32.xlu0 %v1091
        %v1492 = vpop.xlane.xlu0 %1491
        %v1493 = vadd.f32 %v1445, %v1462
        %v1494 = vadd.f32 %v1446, %v1464
        %v1495 = vadd.f32 %v1447, %v1466
        %v1496 = vadd.f32 %v1448, %v1468
        %v1497 = vadd.f32 %v1449, %v1470
        %v1498 = vadd.f32 %v1450, %v1472
        %v1499 = vadd.f32 %v1451, %v1474
        %v1500 = vadd.f32 %v1452, %v1476
        %v1501 = vadd.f32 %v1453, %v1478
        %v1502 = vadd.f32 %v1454, %v1480
        %v1503 = vadd.f32 %v1455, %v1482
        %v1504 = vadd.f32 %v1456, %v1484
        %v1505 = vadd.f32 %v1457, %v1486
        %v1506 = vadd.f32 %v1458, %v1488
        %v1507 = vadd.f32 %v1459, %v1490
        %v1508 = vadd.f32 %v1460, %v1492
        %vm1509 = vcmask 7168
        %1510 = vst.msk [vmem:[#allocation4] sm:$0xff] %vm1509, %v1493
        %1511 = vst.msk [vmem:[#allocation4 + $0x8] sm:$0xff] %vm1509, %v1494
        %1512 = vst.msk [vmem:[#allocation4 + $0x10] sm:$0xff] %vm1509, %v1495
        %1513 = vst.msk [vmem:[#allocation4 + $0x18] sm:$0xff] %vm1509, %v1496
        %1514 = vst.msk [vmem:[#allocation4 + $0x20] sm:$0xff] %vm1509, %v1497
        %1515 = vst.msk [vmem:[#allocation4 + $0x28] sm:$0xff] %vm1509, %v1498
        %1516 = vst.msk [vmem:[#allocation4 + $0x30] sm:$0xff] %vm1509, %v1499
        %1517 = vst.msk [vmem:[#allocation4 + $0x38] sm:$0xff] %vm1509, %v1500
        %1518 = vst.msk [vmem:[#allocation4 + $0x40] sm:$0xff] %vm1509, %v1501
        %1519 = vst.msk [vmem:[#allocation4 + $0x48] sm:$0xff] %vm1509, %v1502
        %1520 = vst.msk [vmem:[#allocation4 + $0x50] sm:$0xff] %vm1509, %v1503
        %1521 = vst.msk [vmem:[#allocation4 + $0x58] sm:$0xff] %vm1509, %v1504
        %1522 = vst.msk [vmem:[#allocation4 + $0x60] sm:$0xff] %vm1509, %v1505
        %1523 = vst.msk [vmem:[#allocation4 + $0x68] sm:$0xff] %vm1509, %v1506
        %1524 = vst.msk [vmem:[#allocation4 + $0x70] sm:$0xff] %vm1509, %v1507
        %1525 = vst.msk [vmem:[#allocation4 + $0x78] sm:$0xff] %vm1509, %v1508
        %v1526 = vld [vmem:[#allocation3] sm:$0xff]
        %v1527 = vld [vmem:[#allocation3 + $0x8] sm:$0xff]
        %v1528 = vld [vmem:[#allocation3 + $0x10] sm:$0xff]
        %v1529 = vld [vmem:[#allocation3 + $0x18] sm:$0xff]
        %v1530 = vld [vmem:[#allocation3 + $0x20] sm:$0xff]
        %v1531 = vld [vmem:[#allocation3 + $0x28] sm:$0xff]
        %v1532 = vld [vmem:[#allocation3 + $0x30] sm:$0xff]
        %v1533 = vld [vmem:[#allocation3 + $0x38] sm:$0xff]
        %v1534 = vld [vmem:[#allocation3 + $0x40] sm:$0xff]
        %v1535 = vld [vmem:[#allocation3 + $0x48] sm:$0xff]
        %v1536 = vld [vmem:[#allocation3 + $0x50] sm:$0xff]
        %v1537 = vld [vmem:[#allocation3 + $0x58] sm:$0xff]
        %v1538 = vld [vmem:[#allocation3 + $0x60] sm:$0xff]
        %v1539 = vld [vmem:[#allocation3 + $0x68] sm:$0xff]
        %v1540 = vld [vmem:[#allocation3 + $0x70] sm:$0xff]
        %v1541 = vld [vmem:[#allocation3 + $0x78] sm:$0xff]
        %v1542 = vmul.f32 %v1526, %v933
        %v1543 = vmul.f32 %v1527, %v935
        %v1544 = vmul.f32 %v1528, %v937
        %v1545 = vmul.f32 %v1529, %v939
        %v1546 = vmul.f32 %v1530, %v941
        %v1547 = vmul.f32 %v1531, %v943
        %v1548 = vmul.f32 %v1532, %v945
        %v1549 = vmul.f32 %v1533, %v947
        %v1550 = vmul.f32 %v1534, %v949
        %v1551 = vmul.f32 %v1535, %v951
        %v1552 = vmul.f32 %v1536, %v953
        %v1553 = vmul.f32 %v1537, %v955
        %v1554 = vmul.f32 %v1538, %v957
        %v1555 = vmul.f32 %v1539, %v959
        %v1556 = vmul.f32 %v1540, %v961
        %v1557 = vmul.f32 %v1541, %v963
        %v1558 = vmul.f32 %v1061, %v1398
        %v1559 = vmul.f32 %v1063, %v1400
        %v1560 = vmul.f32 %v1065, %v1402
        %v1561 = vmul.f32 %v1067, %v1404
        %v1562 = vmul.f32 %v1069, %v1406
        %v1563 = vmul.f32 %v1071, %v1408
        %v1564 = vmul.f32 %v1073, %v1410
        %v1565 = vmul.f32 %v1075, %v1412
        %v1566 = vmul.f32 %v1077, %v1414
        %v1567 = vmul.f32 %v1079, %v1416
        %v1568 = vmul.f32 %v1081, %v1418
        %v1569 = vmul.f32 %v1083, %v1420
        %v1570 = vmul.f32 %v1085, %v1422
        %v1571 = vmul.f32 %v1087, %v1424
        %v1572 = vmul.f32 %v1089, %v1426
        %v1573 = vmul.f32 %v1091, %v1428
        %1574 = vadd.xlane.f32.xlu0 %v1558
        %v1575 = vpop.xlane.xlu0 %1574
        %1576 = vadd.xlane.f32.xlu0 %v1559
        %v1577 = vpop.xlane.xlu0 %1576
        %1578 = vadd.xlane.f32.xlu0 %v1560
        %v1579 = vpop.xlane.xlu0 %1578
        %1580 = vadd.xlane.f32.xlu0 %v1561
        %v1581 = vpop.xlane.xlu0 %1580
        %1582 = vadd.xlane.f32.xlu0 %v1562
        %v1583 = vpop.xlane.xlu0 %1582
        %1584 = vadd.xlane.f32.xlu0 %v1563
        %v1585 = vpop.xlane.xlu0 %1584
        %1586 = vadd.xlane.f32.xlu0 %v1564
        %v1587 = vpop.xlane.xlu0 %1586
        %1588 = vadd.xlane.f32.xlu0 %v1565
        %v1589 = vpop.xlane.xlu0 %1588
        %1590 = vadd.xlane.f32.xlu0 %v1566
        %v1591 = vpop.xlane.xlu0 %1590
        %1592 = vadd.xlane.f32.xlu0 %v1567
        %v1593 = vpop.xlane.xlu0 %1592
        %1594 = vadd.xlane.f32.xlu0 %v1568
        %v1595 = vpop.xlane.xlu0 %1594
        %1596 = vadd.xlane.f32.xlu0 %v1569
        %v1597 = vpop.xlane.xlu0 %1596
        %1598 = vadd.xlane.f32.xlu0 %v1570
        %v1599 = vpop.xlane.xlu0 %1598
        %1600 = vadd.xlane.f32.xlu0 %v1571
        %v1601 = vpop.xlane.xlu0 %1600
        %1602 = vadd.xlane.f32.xlu0 %v1572
        %v1603 = vpop.xlane.xlu0 %1602
        %1604 = vadd.xlane.f32.xlu0 %v1573
        %v1605 = vpop.xlane.xlu0 %1604
        %v1606 = vadd.f32 %v1542, %v1575
        %v1607 = vadd.f32 %v1543, %v1577
        %v1608 = vadd.f32 %v1544, %v1579
        %v1609 = vadd.f32 %v1545, %v1581
        %v1610 = vadd.f32 %v1546, %v1583
        %v1611 = vadd.f32 %v1547, %v1585
        %v1612 = vadd.f32 %v1548, %v1587
        %v1613 = vadd.f32 %v1549, %v1589
        %v1614 = vadd.f32 %v1550, %v1591
        %v1615 = vadd.f32 %v1551, %v1593
        %v1616 = vadd.f32 %v1552, %v1595
        %v1617 = vadd.f32 %v1553, %v1597
        %v1618 = vadd.f32 %v1554, %v1599
        %v1619 = vadd.f32 %v1555, %v1601
        %v1620 = vadd.f32 %v1556, %v1603
        %v1621 = vadd.f32 %v1557, %v1605
        %1622 = vst.msk [vmem:[#allocation3] sm:$0xff] %vm1509, %v1606
        %1623 = vst.msk [vmem:[#allocation3 + $0x8] sm:$0xff] %vm1509, %v1607
        %1624 = vst.msk [vmem:[#allocation3 + $0x10] sm:$0xff] %vm1509, %v1608
        %1625 = vst.msk [vmem:[#allocation3 + $0x18] sm:$0xff] %vm1509, %v1609
        %1626 = vst.msk [vmem:[#allocation3 + $0x20] sm:$0xff] %vm1509, %v1610
        %1627 = vst.msk [vmem:[#allocation3 + $0x28] sm:$0xff] %vm1509, %v1611
        %1628 = vst.msk [vmem:[#allocation3 + $0x30] sm:$0xff] %vm1509, %v1612
        %1629 = vst.msk [vmem:[#allocation3 + $0x38] sm:$0xff] %vm1509, %v1613
        %1630 = vst.msk [vmem:[#allocation3 + $0x40] sm:$0xff] %vm1509, %v1614
        %1631 = vst.msk [vmem:[#allocation3 + $0x48] sm:$0xff] %vm1509, %v1615
        %1632 = vst.msk [vmem:[#allocation3 + $0x50] sm:$0xff] %vm1509, %v1616
        %1633 = vst.msk [vmem:[#allocation3 + $0x58] sm:$0xff] %vm1509, %v1617
        %1634 = vst.msk [vmem:[#allocation3 + $0x60] sm:$0xff] %vm1509, %v1618
        %1635 = vst.msk [vmem:[#allocation3 + $0x68] sm:$0xff] %vm1509, %v1619
        %1636 = vst.msk [vmem:[#allocation3 + $0x70] sm:$0xff] %vm1509, %v1620
        %1637 = vst.msk [vmem:[#allocation3 + $0x78] sm:$0xff] %vm1509, %v1621
        %1638 = vst.msk [vmem:[#allocation2] sm:$0xff] %vm1509, %v900
        %1639 = vst.msk [vmem:[#allocation2 + $0x8] sm:$0xff] %vm1509, %v901
        %1640 = vst.msk [vmem:[#allocation2 + $0x10] sm:$0xff] %vm1509, %v902
        %1641 = vst.msk [vmem:[#allocation2 + $0x18] sm:$0xff] %vm1509, %v903
        %1642 = vst.msk [vmem:[#allocation2 + $0x20] sm:$0xff] %vm1509, %v904
        %1643 = vst.msk [vmem:[#allocation2 + $0x28] sm:$0xff] %vm1509, %v905
        %1644 = vst.msk [vmem:[#allocation2 + $0x30] sm:$0xff] %vm1509, %v906
        %1645 = vst.msk [vmem:[#allocation2 + $0x38] sm:$0xff] %vm1509, %v907
        %1646 = vst.msk [vmem:[#allocation2 + $0x40] sm:$0xff] %vm1509, %v908
        %1647 = vst.msk [vmem:[#allocation2 + $0x48] sm:$0xff] %vm1509, %v909
        %1648 = vst.msk [vmem:[#allocation2 + $0x50] sm:$0xff] %vm1509, %v910
        %1649 = vst.msk [vmem:[#allocation2 + $0x58] sm:$0xff] %vm1509, %v911
        %1650 = vst.msk [vmem:[#allocation2 + $0x60] sm:$0xff] %vm1509, %v912
        %1651 = vst.msk [vmem:[#allocation2 + $0x68] sm:$0xff] %vm1509, %v913
        %1652 = vst.msk [vmem:[#allocation2 + $0x70] sm:$0xff] %vm1509, %v914
        %1653 = vst.msk [vmem:[#allocation2 + $0x78] sm:$0xff] %vm1509, %v915
        %v1654 = vstv %s562
        %v1655 = vmul.f32 %v797, %v1654
        %v1656 = vmul.f32 %v798, %v1654
        %v1657 = vmul.f32 %v799, %v1654
        %v1658 = vmul.f32 %v800, %v1654
        %v1659 = vmul.f32 %v801, %v1654
        %v1660 = vmul.f32 %v802, %v1654
        %v1661 = vmul.f32 %v803, %v1654
        %v1662 = vmul.f32 %v804, %v1654
        %v1663 = vmul.f32 %v805, %v1654
        %v1664 = vmul.f32 %v806, %v1654
        %v1665 = vmul.f32 %v807, %v1654
        %v1666 = vmul.f32 %v808, %v1654
        %v1667 = vmul.f32 %v809, %v1654
        %v1668 = vmul.f32 %v810, %v1654
        %v1669 = vmul.f32 %v811, %v1654
        %v1670 = vmul.f32 %v812, %v1654
        %v1671 = vmin.f32 %v1655, 0.0
        %v1672 = vmin.f32 %v1656, 0.0
        %v1673 = vmin.f32 %v1657, 0.0
        %v1674 = vmin.f32 %v1658, 0.0
        %v1675 = vmin.f32 %v1659, 0.0
        %v1676 = vmin.f32 %v1660, 0.0
        %v1677 = vmin.f32 %v1661, 0.0
        %v1678 = vmin.f32 %v1662, 0.0
        %v1679 = vmin.f32 %v1663, 0.0
        %v1680 = vmin.f32 %v1664, 0.0
        %v1681 = vmin.f32 %v1665, 0.0
        %v1682 = vmin.f32 %v1666, 0.0
        %v1683 = vmin.f32 %v1667, 0.0
        %v1684 = vmin.f32 %v1668, 0.0
        %v1685 = vmin.f32 %v1669, 0.0
        %v1686 = vmin.f32 %v1670, 0.0
        %v1687 = vmul.f32 %v1671, 1.442695
        %v1688 = vpow.pop %v1687
        %v1689 = vmul.f32 %v1672, 1.442695
        %v1690 = vpow.pop %v1689
        %v1691 = vmul.f32 %v1673, 1.442695
        %v1692 = vpow.pop %v1691
        %v1693 = vmul.f32 %v1674, 1.442695
        %v1694 = vpow.pop %v1693
        %v1695 = vmul.f32 %v1675, 1.442695
        %v1696 = vpow.pop %v1695
        %v1697 = vmul.f32 %v1676, 1.442695
        %v1698 = vpow.pop %v1697
        %v1699 = vmul.f32 %v1677, 1.442695
        %v1700 = vpow.pop %v1699
        %v1701 = vmul.f32 %v1678, 1.442695
        %v1702 = vpow.pop %v1701
        %v1703 = vmul.f32 %v1679, 1.442695
        %v1704 = vpow.pop %v1703
        %v1705 = vmul.f32 %v1680, 1.442695
        %v1706 = vpow.pop %v1705
        %v1707 = vmul.f32 %v1681, 1.442695
        %v1708 = vpow.pop %v1707
        %v1709 = vmul.f32 %v1682, 1.442695
        %v1710 = vpow.pop %v1709
        %v1711 = vmul.f32 %v1683, 1.442695
        %v1712 = vpow.pop %v1711
        %v1713 = vmul.f32 %v1684, 1.442695
        %v1714 = vpow.pop %v1713
        %v1715 = vmul.f32 %v1685, 1.442695
        %v1716 = vpow.pop %v1715
        %v1717 = vmul.f32 %v1686, 1.442695
        %v1718 = vpow.pop %v1717
        %v1719 = vsel %vm835, %v1688, 0.0
        %v1720 = vsel %vm835, %v1690, 0.0
        %v1721 = vsel %vm835, %v1692, 0.0
        %v1722 = vsel %vm835, %v1694, 0.0
        %v1723 = vsel %vm835, %v1696, 0.0
        %v1724 = vsel %vm835, %v1698, 0.0
        %v1725 = vsel %vm835, %v1700, 0.0
        %v1726 = vsel %vm835, %v1702, 0.0
        %v1727 = vsel %vm835, %v1704, 0.0
        %v1728 = vsel %vm835, %v1706, 0.0
        %v1729 = vsel %vm835, %v1708, 0.0
        %v1730 = vsel %vm835, %v1710, 0.0
        %v1731 = vsel %vm835, %v1712, 0.0
        %v1732 = vsel %vm835, %v1714, 0.0
        %v1733 = vsel %vm835, %v1716, 0.0
        %v1734 = vsel %vm835, %v1718, 0.0
        %v1735 = vld [vmem:[#allocation5] sm:$0xff]
        %v1736 = vld [vmem:[#allocation5 + $0x8] sm:$0xff]
        %v1737 = vld [vmem:[#allocation5 + $0x10] sm:$0xff]
        %v1738 = vld [vmem:[#allocation5 + $0x18] sm:$0xff]
        %v1739 = vld [vmem:[#allocation5 + $0x20] sm:$0xff]
        %v1740 = vld [vmem:[#allocation5 + $0x28] sm:$0xff]
        %v1741 = vld [vmem:[#allocation5 + $0x30] sm:$0xff]
        %v1742 = vld [vmem:[#allocation5 + $0x38] sm:$0xff]
        %v1743 = vld [vmem:[#allocation5 + $0x40] sm:$0xff]
        %v1744 = vld [vmem:[#allocation5 + $0x48] sm:$0xff]
        %v1745 = vld [vmem:[#allocation5 + $0x50] sm:$0xff]
        %v1746 = vld [vmem:[#allocation5 + $0x58] sm:$0xff]
        %v1747 = vld [vmem:[#allocation5 + $0x60] sm:$0xff]
        %v1748 = vld [vmem:[#allocation5 + $0x68] sm:$0xff]
        %v1749 = vld [vmem:[#allocation5 + $0x70] sm:$0xff]
        %v1750 = vld [vmem:[#allocation5 + $0x78] sm:$0xff]
        %1751 = vadd.xlane.f32.xlu0 %v1719
        %v1752 = vpop.xlane.xlu0 %1751
        %1753 = vadd.xlane.f32.xlu0 %v1720
        %v1754 = vpop.xlane.xlu0 %1753
        %1755 = vadd.xlane.f32.xlu0 %v1721
        %v1756 = vpop.xlane.xlu0 %1755
        %1757 = vadd.xlane.f32.xlu0 %v1722
        %v1758 = vpop.xlane.xlu0 %1757
        %1759 = vadd.xlane.f32.xlu0 %v1723
        %v1760 = vpop.xlane.xlu0 %1759
        %1761 = vadd.xlane.f32.xlu0 %v1724
        %v1762 = vpop.xlane.xlu0 %1761
        %1763 = vadd.xlane.f32.xlu0 %v1725
        %v1764 = vpop.xlane.xlu0 %1763
        %1765 = vadd.xlane.f32.xlu0 %v1726
        %v1766 = vpop.xlane.xlu0 %1765
        %1767 = vadd.xlane.f32.xlu0 %v1727
        %v1768 = vpop.xlane.xlu0 %1767
        %1769 = vadd.xlane.f32.xlu0 %v1728
        %v1770 = vpop.xlane.xlu0 %1769
        %1771 = vadd.xlane.f32.xlu0 %v1729
        %v1772 = vpop.xlane.xlu0 %1771
        %1773 = vadd.xlane.f32.xlu0 %v1730
        %v1774 = vpop.xlane.xlu0 %1773
        %1775 = vadd.xlane.f32.xlu0 %v1731
        %v1776 = vpop.xlane.xlu0 %1775
        %1777 = vadd.xlane.f32.xlu0 %v1732
        %v1778 = vpop.xlane.xlu0 %1777
        %1779 = vadd.xlane.f32.xlu0 %v1733
        %v1780 = vpop.xlane.xlu0 %1779
        %1781 = vadd.xlane.f32.xlu0 %v1734
        %v1782 = vpop.xlane.xlu0 %1781
        %v1783 = vadd.f32 %v1735, %v1752
        %v1784 = vadd.f32 %v1736, %v1754
        %v1785 = vadd.f32 %v1737, %v1756
        %v1786 = vadd.f32 %v1738, %v1758
        %v1787 = vadd.f32 %v1739, %v1760
        %v1788 = vadd.f32 %v1740, %v1762
        %v1789 = vadd.f32 %v1741, %v1764
        %v1790 = vadd.f32 %v1742, %v1766
        %v1791 = vadd.f32 %v1743, %v1768
        %v1792 = vadd.f32 %v1744, %v1770
        %v1793 = vadd.f32 %v1745, %v1772
        %v1794 = vadd.f32 %v1746, %v1774
        %v1795 = vadd.f32 %v1747, %v1776
        %v1796 = vadd.f32 %v1748, %v1778
        %v1797 = vadd.f32 %v1749, %v1780
        %v1798 = vadd.f32 %v1750, %v1782
        %1799 = vst.msk [vmem:[#allocation5] sm:$0xff] %vm1509, %v1783
        %1800 = vst.msk [vmem:[#allocation5 + $0x8] sm:$0xff] %vm1509, %v1784
        %1801 = vst.msk [vmem:[#allocation5 + $0x10] sm:$0xff] %vm1509, %v1785
        %1802 = vst.msk [vmem:[#allocation5 + $0x18] sm:$0xff] %vm1509, %v1786
        %1803 = vst.msk [vmem:[#allocation5 + $0x20] sm:$0xff] %vm1509, %v1787
        %1804 = vst.msk [vmem:[#allocation5 + $0x28] sm:$0xff] %vm1509, %v1788
        %1805 = vst.msk [vmem:[#allocation5 + $0x30] sm:$0xff] %vm1509, %v1789
        %1806 = vst.msk [vmem:[#allocation5 + $0x38] sm:$0xff] %vm1509, %v1790
        %1807 = vst.msk [vmem:[#allocation5 + $0x40] sm:$0xff] %vm1509, %v1791
        %1808 = vst.msk [vmem:[#allocation5 + $0x48] sm:$0xff] %vm1509, %v1792
        %1809 = vst.msk [vmem:[#allocation5 + $0x50] sm:$0xff] %vm1509, %v1793
        %1810 = vst.msk [vmem:[#allocation5 + $0x58] sm:$0xff] %vm1509, %v1794
        %1811 = vst.msk [vmem:[#allocation5 + $0x60] sm:$0xff] %vm1509, %v1795
        %1812 = vst.msk [vmem:[#allocation5 + $0x68] sm:$0xff] %vm1509, %v1796
        %1813 = vst.msk [vmem:[#allocation5 + $0x70] sm:$0xff] %vm1509, %v1797
        %1814 = vst.msk [vmem:[#allocation5 + $0x78] sm:$0xff] %vm1509, %v1798
      $region56: #{combined_spatiotemporal_forward.1} parent=43 // pred_fallthru
        _
      %p1815 = scmp.gt.s32.totalorder %s568, %s572
      // Predicated region
      $region57: #{combined_spatiotemporal_forward.1} parent=43 // pred_check
        %p1816 = pneg %p1815
      $region58: #{combined_spatiotemporal_forward.1} parent=43 // pred_check_branch
        %1818 = sbr.rel (%p1816) target = $region60
      $region59: #{combined_spatiotemporal_forward.1} parent=43 // pred_region
        %v1819 = vlaneseq
        %v1820 = vshrl.u32 %v1819, 7
        %v1821 = vadd.s32 %v1820, 8
        %v1822 = vadd.s32 %v1820, 16
        %v1823 = vadd.s32 %v1820, 24
        %v1824 = vadd.s32 %v1820, 32
        %v1825 = vadd.s32 %v1820, 40
        %v1826 = vadd.s32 %v1820, 48
        %v1827 = vadd.s32 %v1820, 56
        %v1828 = vadd.s32 %v1820, 64
        %v1829 = vadd.s32 %v1820, 72
        %v1830 = vadd.s32 %v1820, 80
        %v1831 = vadd.s32 %v1820, 88
        %v1832 = vadd.s32 %v1820, 96
        %v1833 = vadd.s32 %v1820, 104
        %v1834 = vadd.s32 %v1820, 112
        %v1835 = vadd.s32 %v1820, 120
        %v1836 = vlaneseq
        %v1837 = vand.u32 %v1836, 127
        %s1838 = smul.u32 %s553, 128
        %s1839 = ssub.s32 %s572, %s1838
        %v1840 = vsub.s32 %v1837, %v1820
        %v1841 = vsub.s32 %v1837, %v1821
        %v1842 = vsub.s32 %v1837, %v1822
        %v1843 = vsub.s32 %v1837, %v1823
        %v1844 = vsub.s32 %v1837, %v1824
        %v1845 = vsub.s32 %v1837, %v1825
        %v1846 = vsub.s32 %v1837, %v1826
        %v1847 = vsub.s32 %v1837, %v1827
        %v1848 = vsub.s32 %v1837, %v1828
        %v1849 = vsub.s32 %v1837, %v1829
        %v1850 = vsub.s32 %v1837, %v1830
        %v1851 = vsub.s32 %v1837, %v1831
        %v1852 = vsub.s32 %v1837, %v1832
        %v1853 = vsub.s32 %v1837, %v1833
        %v1854 = vsub.s32 %v1837, %v1834
        %v1855 = vsub.s32 %v1837, %v1835
        %v1856 = vstv %s1839
        %vm1857 = vcmp.lt.s32.totalorder %v1840, %v1856
        %vm1858 = vcmp.lt.s32.totalorder %v1841, %v1856
        %vm1859 = vcmp.lt.s32.totalorder %v1842, %v1856
        %vm1860 = vcmp.lt.s32.totalorder %v1843, %v1856
        %vm1861 = vcmp.lt.s32.totalorder %v1844, %v1856
        %vm1862 = vcmp.lt.s32.totalorder %v1845, %v1856
        %vm1863 = vcmp.lt.s32.totalorder %v1846, %v1856
        %vm1864 = vcmp.lt.s32.totalorder %v1847, %v1856
        %vm1865 = vcmp.lt.s32.totalorder %v1848, %v1856
        %vm1866 = vcmp.lt.s32.totalorder %v1849, %v1856
        %vm1867 = vcmp.lt.s32.totalorder %v1850, %v1856
        %vm1868 = vcmp.lt.s32.totalorder %v1851, %v1856
        %vm1869 = vcmp.lt.s32.totalorder %v1852, %v1856
        %vm1870 = vcmp.lt.s32.totalorder %v1853, %v1856
        %vm1871 = vcmp.lt.s32.totalorder %v1854, %v1856
        %vm1872 = vcmp.lt.s32.totalorder %v1855, %v1856
        %vm1873 = vcmp.gt.f32.partialorder %v706, 0.5
        %v1874 = vsel %vm1873, 1, 0
        %v1875 = vlaneseq
        %v1876 = vshrl.u32 %v1875, 7
        %v1877 = vsub.s32 0, %v1876
        %v1878 = vrot.slane %v1874, %v1877
        %vm1879 = vcmp.eq.s32.totalorder %v1878, 1
        %vm1880 = vmand %vm1857, %vm1879
        %vm1881 = vmand %vm1858, %vm1879
        %vm1882 = vmand %vm1859, %vm1879
        %vm1883 = vmand %vm1860, %vm1879
        %vm1884 = vmand %vm1861, %vm1879
        %vm1885 = vmand %vm1862, %vm1879
        %vm1886 = vmand %vm1863, %vm1879
        %vm1887 = vmand %vm1864, %vm1879
        %vm1888 = vmand %vm1865, %vm1879
        %vm1889 = vmand %vm1866, %vm1879
        %vm1890 = vmand %vm1867, %vm1879
        %vm1891 = vmand %vm1868, %vm1879
        %vm1892 = vmand %vm1869, %vm1879
        %vm1893 = vmand %vm1870, %vm1879
        %vm1894 = vmand %vm1871, %vm1879
        %vm1895 = vmand %vm1872, %vm1879
        %1897 = vset.pattern.permute.xlu0 0
        %1898 = vperm.xlu0 %1897, %v689
        %v1899 = vpop.permute.xlu0 %1898
        %1902 = vset.pattern.permute.xlu0 0
        %1903 = vperm.xlu0 %1902, %v690
        %v1904 = vpop.permute.xlu0 %1903
        %1907 = vset.pattern.permute.xlu0 0
        %1908 = vperm.xlu0 %1907, %v691
        %v1909 = vpop.permute.xlu0 %1908
        %1912 = vset.pattern.permute.xlu0 0
        %1913 = vperm.xlu0 %1912, %v692
        %v1914 = vpop.permute.xlu0 %1913
        %1917 = vset.pattern.permute.xlu0 0
        %1918 = vperm.xlu0 %1917, %v693
        %v1919 = vpop.permute.xlu0 %1918
        %1922 = vset.pattern.permute.xlu0 0
        %1923 = vperm.xlu0 %1922, %v694
        %v1924 = vpop.permute.xlu0 %1923
        %1927 = vset.pattern.permute.xlu0 0
        %1928 = vperm.xlu0 %1927, %v695
        %v1929 = vpop.permute.xlu0 %1928
        %1932 = vset.pattern.permute.xlu0 0
        %1933 = vperm.xlu0 %1932, %v696
        %v1934 = vpop.permute.xlu0 %1933
        %1937 = vset.pattern.permute.xlu0 0
        %1938 = vperm.xlu0 %1937, %v697
        %v1939 = vpop.permute.xlu0 %1938
        %1942 = vset.pattern.permute.xlu0 0
        %1943 = vperm.xlu0 %1942, %v698
        %v1944 = vpop.permute.xlu0 %1943
        %1947 = vset.pattern.permute.xlu0 0
        %1948 = vperm.xlu0 %1947, %v699
        %v1949 = vpop.permute.xlu0 %1948
        %1952 = vset.pattern.permute.xlu0 0
        %1953 = vperm.xlu0 %1952, %v700
        %v1954 = vpop.permute.xlu0 %1953
        %1957 = vset.pattern.permute.xlu0 0
        %1958 = vperm.xlu0 %1957, %v701
        %v1959 = vpop.permute.xlu0 %1958
        %1962 = vset.pattern.permute.xlu0 0
        %1963 = vperm.xlu0 %1962, %v702
        %v1964 = vpop.permute.xlu0 %1963
        %1967 = vset.pattern.permute.xlu0 0
        %1968 = vperm.xlu0 %1967, %v703
        %v1969 = vpop.permute.xlu0 %1968
        %1972 = vset.pattern.permute.xlu0 0
        %1973 = vperm.xlu0 %1972, %v704
        %v1974 = vpop.permute.xlu0 %1973
        %v1977 = vlaneseq
        %v1978 = vshrl.u32 %v1977, 7
        %v1979 = vsub.s32 0, %v1978
        %v1980 = vrot.slane %v705, %v1979
        %v1982 = vsub.f32 %v1899, %v1980
        %v1983 = vsub.f32 %v1904, %v1980
        %v1984 = vsub.f32 %v1909, %v1980
        %v1985 = vsub.f32 %v1914, %v1980
        %v1986 = vsub.f32 %v1919, %v1980
        %v1987 = vsub.f32 %v1924, %v1980
        %v1988 = vsub.f32 %v1929, %v1980
        %v1989 = vsub.f32 %v1934, %v1980
        %v1990 = vsub.f32 %v1939, %v1980
        %v1991 = vsub.f32 %v1944, %v1980
        %v1992 = vsub.f32 %v1949, %v1980
        %v1993 = vsub.f32 %v1954, %v1980
        %v1994 = vsub.f32 %v1959, %v1980
        %v1995 = vsub.f32 %v1964, %v1980
        %v1996 = vsub.f32 %v1969, %v1980
        %v1997 = vsub.f32 %v1974, %v1980
        %v1998 = vstv %s559
        %v1999 = vmul.f32 %v1982, %v1998
        %v2000 = vmul.f32 %v1983, %v1998
        %v2001 = vmul.f32 %v1984, %v1998
        %v2002 = vmul.f32 %v1985, %v1998
        %v2003 = vmul.f32 %v1986, %v1998
        %v2004 = vmul.f32 %v1987, %v1998
        %v2005 = vmul.f32 %v1988, %v1998
        %v2006 = vmul.f32 %v1989, %v1998
        %v2007 = vmul.f32 %v1990, %v1998
        %v2008 = vmul.f32 %v1991, %v1998
        %v2009 = vmul.f32 %v1992, %v1998
        %v2010 = vmul.f32 %v1993, %v1998
        %v2011 = vmul.f32 %v1994, %v1998
        %v2012 = vmul.f32 %v1995, %v1998
        %v2013 = vmul.f32 %v1996, %v1998
        %v2014 = vmul.f32 %v1997, %v1998
        %v2015 = vsel %vm1880, %v1999, -1e+20
        %v2016 = vsel %vm1881, %v2000, -1e+20
        %v2017 = vsel %vm1882, %v2001, -1e+20
        %v2018 = vsel %vm1883, %v2002, -1e+20
        %v2019 = vsel %vm1884, %v2003, -1e+20
        %v2020 = vsel %vm1885, %v2004, -1e+20
        %v2021 = vsel %vm1886, %v2005, -1e+20
        %v2022 = vsel %vm1887, %v2006, -1e+20
        %v2023 = vsel %vm1888, %v2007, -1e+20
        %v2024 = vsel %vm1889, %v2008, -1e+20
        %v2025 = vsel %vm1890, %v2009, -1e+20
        %v2026 = vsel %vm1891, %v2010, -1e+20
        %v2027 = vsel %vm1892, %v2011, -1e+20
        %v2028 = vsel %vm1893, %v2012, -1e+20
        %v2029 = vsel %vm1894, %v2013, -1e+20
        %v2030 = vsel %vm1895, %v2014, -1e+20
        %v2031 = vld [vmem:[#allocation2] sm:$0xff]
        %v2032 = vld [vmem:[#allocation2 + $0x8] sm:$0xff]
        %v2033 = vld [vmem:[#allocation2 + $0x10] sm:$0xff]
        %v2034 = vld [vmem:[#allocation2 + $0x18] sm:$0xff]
        %v2035 = vld [vmem:[#allocation2 + $0x20] sm:$0xff]
        %v2036 = vld [vmem:[#allocation2 + $0x28] sm:$0xff]
        %v2037 = vld [vmem:[#allocation2 + $0x30] sm:$0xff]
        %v2038 = vld [vmem:[#allocation2 + $0x38] sm:$0xff]
        %v2039 = vld [vmem:[#allocation2 + $0x40] sm:$0xff]
        %v2040 = vld [vmem:[#allocation2 + $0x48] sm:$0xff]
        %v2041 = vld [vmem:[#allocation2 + $0x50] sm:$0xff]
        %v2042 = vld [vmem:[#allocation2 + $0x58] sm:$0xff]
        %v2043 = vld [vmem:[#allocation2 + $0x60] sm:$0xff]
        %v2044 = vld [vmem:[#allocation2 + $0x68] sm:$0xff]
        %v2045 = vld [vmem:[#allocation2 + $0x70] sm:$0xff]
        %v2046 = vld [vmem:[#allocation2 + $0x78] sm:$0xff]
        %2047 = vmax.xlane.f32.xlu0 %v2015
        %v2048 = vpop.xlane.xlu0 %2047
        %2049 = vmax.xlane.f32.xlu0 %v2016
        %v2050 = vpop.xlane.xlu0 %2049
        %2051 = vmax.xlane.f32.xlu0 %v2017
        %v2052 = vpop.xlane.xlu0 %2051
        %2053 = vmax.xlane.f32.xlu0 %v2018
        %v2054 = vpop.xlane.xlu0 %2053
        %2055 = vmax.xlane.f32.xlu0 %v2019
        %v2056 = vpop.xlane.xlu0 %2055
        %2057 = vmax.xlane.f32.xlu0 %v2020
        %v2058 = vpop.xlane.xlu0 %2057
        %2059 = vmax.xlane.f32.xlu0 %v2021
        %v2060 = vpop.xlane.xlu0 %2059
        %2061 = vmax.xlane.f32.xlu0 %v2022
        %v2062 = vpop.xlane.xlu0 %2061
        %2063 = vmax.xlane.f32.xlu0 %v2023
        %v2064 = vpop.xlane.xlu0 %2063
        %2065 = vmax.xlane.f32.xlu0 %v2024
        %v2066 = vpop.xlane.xlu0 %2065
        %2067 = vmax.xlane.f32.xlu0 %v2025
        %v2068 = vpop.xlane.xlu0 %2067
        %2069 = vmax.xlane.f32.xlu0 %v2026
        %v2070 = vpop.xlane.xlu0 %2069
        %2071 = vmax.xlane.f32.xlu0 %v2027
        %v2072 = vpop.xlane.xlu0 %2071
        %2073 = vmax.xlane.f32.xlu0 %v2028
        %v2074 = vpop.xlane.xlu0 %2073
        %2075 = vmax.xlane.f32.xlu0 %v2029
        %v2076 = vpop.xlane.xlu0 %2075
        %2077 = vmax.xlane.f32.xlu0 %v2030
        %v2078 = vpop.xlane.xlu0 %2077
        %v2079 = vmax.f32 %v2031, %v2048
        %v2080 = vmax.f32 %v2032, %v2050
        %v2081 = vmax.f32 %v2033, %v2052
        %v2082 = vmax.f32 %v2034, %v2054
        %v2083 = vmax.f32 %v2035, %v2056
        %v2084 = vmax.f32 %v2036, %v2058
        %v2085 = vmax.f32 %v2037, %v2060
        %v2086 = vmax.f32 %v2038, %v2062
        %v2087 = vmax.f32 %v2039, %v2064
        %v2088 = vmax.f32 %v2040, %v2066
        %v2089 = vmax.f32 %v2041, %v2068
        %v2090 = vmax.f32 %v2042, %v2070
        %v2091 = vmax.f32 %v2043, %v2072
        %v2092 = vmax.f32 %v2044, %v2074
        %v2093 = vmax.f32 %v2045, %v2076
        %v2094 = vmax.f32 %v2046, %v2078
        %v2095 = vsub.f32 %v2031, %v2079
        %v2096 = vsub.f32 %v2032, %v2080
        %v2097 = vsub.f32 %v2033, %v2081
        %v2098 = vsub.f32 %v2034, %v2082
        %v2099 = vsub.f32 %v2035, %v2083
        %v2100 = vsub.f32 %v2036, %v2084
        %v2101 = vsub.f32 %v2037, %v2085
        %v2102 = vsub.f32 %v2038, %v2086
        %v2103 = vsub.f32 %v2039, %v2087
        %v2104 = vsub.f32 %v2040, %v2088
        %v2105 = vsub.f32 %v2041, %v2089
        %v2106 = vsub.f32 %v2042, %v2090
        %v2107 = vsub.f32 %v2043, %v2091
        %v2108 = vsub.f32 %v2044, %v2092
        %v2109 = vsub.f32 %v2045, %v2093
        %v2110 = vsub.f32 %v2046, %v2094
        %v2111 = vmul.f32 %v2095, 1.442695
        %v2112 = vpow.pop %v2111
        %v2113 = vmul.f32 %v2096, 1.442695
        %v2114 = vpow.pop %v2113
        %v2115 = vmul.f32 %v2097, 1.442695
        %v2116 = vpow.pop %v2115
        %v2117 = vmul.f32 %v2098, 1.442695
        %v2118 = vpow.pop %v2117
        %v2119 = vmul.f32 %v2099, 1.442695
        %v2120 = vpow.pop %v2119
        %v2121 = vmul.f32 %v2100, 1.442695
        %v2122 = vpow.pop %v2121
        %v2123 = vmul.f32 %v2101, 1.442695
        %v2124 = vpow.pop %v2123
        %v2125 = vmul.f32 %v2102, 1.442695
        %v2126 = vpow.pop %v2125
        %v2127 = vmul.f32 %v2103, 1.442695
        %v2128 = vpow.pop %v2127
        %v2129 = vmul.f32 %v2104, 1.442695
        %v2130 = vpow.pop %v2129
        %v2131 = vmul.f32 %v2105, 1.442695
        %v2132 = vpow.pop %v2131
        %v2133 = vmul.f32 %v2106, 1.442695
        %v2134 = vpow.pop %v2133
        %v2135 = vmul.f32 %v2107, 1.442695
        %v2136 = vpow.pop %v2135
        %v2137 = vmul.f32 %v2108, 1.442695
        %v2138 = vpow.pop %v2137
        %v2139 = vmul.f32 %v2109, 1.442695
        %v2140 = vpow.pop %v2139
        %v2141 = vmul.f32 %v2110, 1.442695
        %v2142 = vpow.pop %v2141
        %2144 = vset.pattern.permute.xlu0 0
        %2145 = vperm.xlu0 %2144, %v2079
        %v2146 = vpop.permute.xlu0 %2145
        %2149 = vset.pattern.permute.xlu0 0
        %2150 = vperm.xlu0 %2149, %v2080
        %v2151 = vpop.permute.xlu0 %2150
        %2154 = vset.pattern.permute.xlu0 0
        %2155 = vperm.xlu0 %2154, %v2081
        %v2156 = vpop.permute.xlu0 %2155
        %2159 = vset.pattern.permute.xlu0 0
        %2160 = vperm.xlu0 %2159, %v2082
        %v2161 = vpop.permute.xlu0 %2160
        %2164 = vset.pattern.permute.xlu0 0
        %2165 = vperm.xlu0 %2164, %v2083
        %v2166 = vpop.permute.xlu0 %2165
        %2169 = vset.pattern.permute.xlu0 0
        %2170 = vperm.xlu0 %2169, %v2084
        %v2171 = vpop.permute.xlu0 %2170
        %2174 = vset.pattern.permute.xlu0 0
        %2175 = vperm.xlu0 %2174, %v2085
        %v2176 = vpop.permute.xlu0 %2175
        %2179 = vset.pattern.permute.xlu0 0
        %2180 = vperm.xlu0 %2179, %v2086
        %v2181 = vpop.permute.xlu0 %2180
        %2184 = vset.pattern.permute.xlu0 0
        %2185 = vperm.xlu0 %2184, %v2087
        %v2186 = vpop.permute.xlu0 %2185
        %2189 = vset.pattern.permute.xlu0 0
        %2190 = vperm.xlu0 %2189, %v2088
        %v2191 = vpop.permute.xlu0 %2190
        %2194 = vset.pattern.permute.xlu0 0
        %2195 = vperm.xlu0 %2194, %v2089
        %v2196 = vpop.permute.xlu0 %2195
        %2199 = vset.pattern.permute.xlu0 0
        %2200 = vperm.xlu0 %2199, %v2090
        %v2201 = vpop.permute.xlu0 %2200
        %2204 = vset.pattern.permute.xlu0 0
        %2205 = vperm.xlu0 %2204, %v2091
        %v2206 = vpop.permute.xlu0 %2205
        %2209 = vset.pattern.permute.xlu0 0
        %2210 = vperm.xlu0 %2209, %v2092
        %v2211 = vpop.permute.xlu0 %2210
        %2214 = vset.pattern.permute.xlu0 0
        %2215 = vperm.xlu0 %2214, %v2093
        %v2216 = vpop.permute.xlu0 %2215
        %2219 = vset.pattern.permute.xlu0 0
        %2220 = vperm.xlu0 %2219, %v2094
        %v2221 = vpop.permute.xlu0 %2220
        %v2223 = vsub.f32 %v2015, %v2146
        %v2224 = vsub.f32 %v2016, %v2151
        %v2225 = vsub.f32 %v2017, %v2156
        %v2226 = vsub.f32 %v2018, %v2161
        %v2227 = vsub.f32 %v2019, %v2166
        %v2228 = vsub.f32 %v2020, %v2171
        %v2229 = vsub.f32 %v2021, %v2176
        %v2230 = vsub.f32 %v2022, %v2181
        %v2231 = vsub.f32 %v2023, %v2186
        %v2232 = vsub.f32 %v2024, %v2191
        %v2233 = vsub.f32 %v2025, %v2196
        %v2234 = vsub.f32 %v2026, %v2201
        %v2235 = vsub.f32 %v2027, %v2206
        %v2236 = vsub.f32 %v2028, %v2211
        %v2237 = vsub.f32 %v2029, %v2216
        %v2238 = vsub.f32 %v2030, %v2221
        %v2239 = vmul.f32 %v2223, 1.442695
        %v2240 = vpow.pop %v2239
        %v2241 = vmul.f32 %v2224, 1.442695
        %v2242 = vpow.pop %v2241
        %v2243 = vmul.f32 %v2225, 1.442695
        %v2244 = vpow.pop %v2243
        %v2245 = vmul.f32 %v2226, 1.442695
        %v2246 = vpow.pop %v2245
        %v2247 = vmul.f32 %v2227, 1.442695
        %v2248 = vpow.pop %v2247
        %v2249 = vmul.f32 %v2228, 1.442695
        %v2250 = vpow.pop %v2249
        %v2251 = vmul.f32 %v2229, 1.442695
        %v2252 = vpow.pop %v2251
        %v2253 = vmul.f32 %v2230, 1.442695
        %v2254 = vpow.pop %v2253
        %v2255 = vmul.f32 %v2231, 1.442695
        %v2256 = vpow.pop %v2255
        %v2257 = vmul.f32 %v2232, 1.442695
        %v2258 = vpow.pop %v2257
        %v2259 = vmul.f32 %v2233, 1.442695
        %v2260 = vpow.pop %v2259
        %v2261 = vmul.f32 %v2234, 1.442695
        %v2262 = vpow.pop %v2261
        %v2263 = vmul.f32 %v2235, 1.442695
        %v2264 = vpow.pop %v2263
        %v2265 = vmul.f32 %v2236, 1.442695
        %v2266 = vpow.pop %v2265
        %v2267 = vmul.f32 %v2237, 1.442695
        %v2268 = vpow.pop %v2267
        %v2269 = vmul.f32 %v2238, 1.442695
        %v2270 = vpow.pop %v2269
        %v2271 = vld [vmem:[%s524] sm:$0xff]
        %v2272 = vld [vmem:[%s524 + $0x8] sm:$0xff]
        %v2273 = vld [vmem:[%s524 + $0x10] sm:$0xff]
        %v2274 = vld [vmem:[%s524 + $0x18] sm:$0xff]
        %v2275 = vld [vmem:[%s524 + $0x20] sm:$0xff]
        %v2276 = vld [vmem:[%s524 + $0x28] sm:$0xff]
        %v2277 = vld [vmem:[%s524 + $0x30] sm:$0xff]
        %v2278 = vld [vmem:[%s524 + $0x38] sm:$0xff]
        %v2279 = vld [vmem:[%s524 + $0x40] sm:$0xff]
        %v2280 = vld [vmem:[%s524 + $0x48] sm:$0xff]
        %v2281 = vld [vmem:[%s524 + $0x50] sm:$0xff]
        %v2282 = vld [vmem:[%s524 + $0x58] sm:$0xff]
        %v2283 = vld [vmem:[%s524 + $0x60] sm:$0xff]
        %v2284 = vld [vmem:[%s524 + $0x68] sm:$0xff]
        %v2285 = vld [vmem:[%s524 + $0x70] sm:$0xff]
        %v2286 = vld [vmem:[%s524 + $0x78] sm:$0xff]
        %v2287 = vld [vmem:[%s535] sm:$0x1]
        %2289 = vset.pattern.permute.xlu0 0
        %2290 = vperm.xlu0 %2289, %v2271
        %v2291 = vpop.permute.xlu0 %2290
        %2294 = vset.pattern.permute.xlu0 0
        %2295 = vperm.xlu0 %2294, %v2272
        %v2296 = vpop.permute.xlu0 %2295
        %2299 = vset.pattern.permute.xlu0 0
        %2300 = vperm.xlu0 %2299, %v2273
        %v2301 = vpop.permute.xlu0 %2300
        %2304 = vset.pattern.permute.xlu0 0
        %2305 = vperm.xlu0 %2304, %v2274
        %v2306 = vpop.permute.xlu0 %2305
        %2309 = vset.pattern.permute.xlu0 0
        %2310 = vperm.xlu0 %2309, %v2275
        %v2311 = vpop.permute.xlu0 %2310
        %2314 = vset.pattern.permute.xlu0 0
        %2315 = vperm.xlu0 %2314, %v2276
        %v2316 = vpop.permute.xlu0 %2315
        %2319 = vset.pattern.permute.xlu0 0
        %2320 = vperm.xlu0 %2319, %v2277
        %v2321 = vpop.permute.xlu0 %2320
        %2324 = vset.pattern.permute.xlu0 0
        %2325 = vperm.xlu0 %2324, %v2278
        %v2326 = vpop.permute.xlu0 %2325
        %2329 = vset.pattern.permute.xlu0 0
        %2330 = vperm.xlu0 %2329, %v2279
        %v2331 = vpop.permute.xlu0 %2330
        %2334 = vset.pattern.permute.xlu0 0
        %2335 = vperm.xlu0 %2334, %v2280
        %v2336 = vpop.permute.xlu0 %2335
        %2339 = vset.pattern.permute.xlu0 0
        %2340 = vperm.xlu0 %2339, %v2281
        %v2341 = vpop.permute.xlu0 %2340
        %2344 = vset.pattern.permute.xlu0 0
        %2345 = vperm.xlu0 %2344, %v2282
        %v2346 = vpop.permute.xlu0 %2345
        %2349 = vset.pattern.permute.xlu0 0
        %2350 = vperm.xlu0 %2349, %v2283
        %v2351 = vpop.permute.xlu0 %2350
        %2354 = vset.pattern.permute.xlu0 0
        %2355 = vperm.xlu0 %2354, %v2284
        %v2356 = vpop.permute.xlu0 %2355
        %2359 = vset.pattern.permute.xlu0 0
        %2360 = vperm.xlu0 %2359, %v2285
        %v2361 = vpop.permute.xlu0 %2360
        %2364 = vset.pattern.permute.xlu0 0
        %2365 = vperm.xlu0 %2364, %v2286
        %v2366 = vpop.permute.xlu0 %2365
        %v2369 = vlaneseq
        %v2370 = vshrl.u32 %v2369, 7
        %v2371 = vsub.s32 0, %v2370
        %v2372 = vrot.slane %v2287, %v2371
        %v2374 = vsub.f32 %v2291, %v2372
        %v2375 = vsub.f32 %v2296, %v2372
        %v2376 = vsub.f32 %v2301, %v2372
        %v2377 = vsub.f32 %v2306, %v2372
        %v2378 = vsub.f32 %v2311, %v2372
        %v2379 = vsub.f32 %v2316, %v2372
        %v2380 = vsub.f32 %v2321, %v2372
        %v2381 = vsub.f32 %v2326, %v2372
        %v2382 = vsub.f32 %v2331, %v2372
        %v2383 = vsub.f32 %v2336, %v2372
        %v2384 = vsub.f32 %v2341, %v2372
        %v2385 = vsub.f32 %v2346, %v2372
        %v2386 = vsub.f32 %v2351, %v2372
        %v2387 = vsub.f32 %v2356, %v2372
        %v2388 = vsub.f32 %v2361, %v2372
        %v2389 = vsub.f32 %v2366, %v2372
        %v2390 = vmul.f32 %v2374, %v2374
        %v2391 = vmul.f32 %v2375, %v2375
        %v2392 = vmul.f32 %v2376, %v2376
        %v2393 = vmul.f32 %v2377, %v2377
        %v2394 = vmul.f32 %v2378, %v2378
        %v2395 = vmul.f32 %v2379, %v2379
        %v2396 = vmul.f32 %v2380, %v2380
        %v2397 = vmul.f32 %v2381, %v2381
        %v2398 = vmul.f32 %v2382, %v2382
        %v2399 = vmul.f32 %v2383, %v2383
        %v2400 = vmul.f32 %v2384, %v2384
        %v2401 = vmul.f32 %v2385, %v2385
        %v2402 = vmul.f32 %v2386, %v2386
        %v2403 = vmul.f32 %v2387, %v2387
        %v2404 = vmul.f32 %v2388, %v2388
        %v2405 = vmul.f32 %v2389, %v2389
        %s2406 = scalar_lea.vmem %s524, 128
        %v2407 = vld [vmem:[%s2406] sm:$0xff]
        %v2408 = vld [vmem:[%s2406 + $0x8] sm:$0xff]
        %v2409 = vld [vmem:[%s2406 + $0x10] sm:$0xff]
        %v2410 = vld [vmem:[%s2406 + $0x18] sm:$0xff]
        %v2411 = vld [vmem:[%s2406 + $0x20] sm:$0xff]
        %v2412 = vld [vmem:[%s2406 + $0x28] sm:$0xff]
        %v2413 = vld [vmem:[%s2406 + $0x30] sm:$0xff]
        %v2414 = vld [vmem:[%s2406 + $0x38] sm:$0xff]
        %v2415 = vld [vmem:[%s2406 + $0x40] sm:$0xff]
        %v2416 = vld [vmem:[%s2406 + $0x48] sm:$0xff]
        %v2417 = vld [vmem:[%s2406 + $0x50] sm:$0xff]
        %v2418 = vld [vmem:[%s2406 + $0x58] sm:$0xff]
        %v2419 = vld [vmem:[%s2406 + $0x60] sm:$0xff]
        %v2420 = vld [vmem:[%s2406 + $0x68] sm:$0xff]
        %v2421 = vld [vmem:[%s2406 + $0x70] sm:$0xff]
        %v2422 = vld [vmem:[%s2406 + $0x78] sm:$0xff]
        %s2423 = scalar_lea.vmem %s535, 1
        %v2424 = vld [vmem:[%s2423] sm:$0x1]
        %2426 = vset.pattern.permute.xlu0 0
        %2427 = vperm.xlu0 %2426, %v2407
        %v2428 = vpop.permute.xlu0 %2427
        %2431 = vset.pattern.permute.xlu0 0
        %2432 = vperm.xlu0 %2431, %v2408
        %v2433 = vpop.permute.xlu0 %2432
        %2436 = vset.pattern.permute.xlu0 0
        %2437 = vperm.xlu0 %2436, %v2409
        %v2438 = vpop.permute.xlu0 %2437
        %2441 = vset.pattern.permute.xlu0 0
        %2442 = vperm.xlu0 %2441, %v2410
        %v2443 = vpop.permute.xlu0 %2442
        %2446 = vset.pattern.permute.xlu0 0
        %2447 = vperm.xlu0 %2446, %v2411
        %v2448 = vpop.permute.xlu0 %2447
        %2451 = vset.pattern.permute.xlu0 0
        %2452 = vperm.xlu0 %2451, %v2412
        %v2453 = vpop.permute.xlu0 %2452
        %2456 = vset.pattern.permute.xlu0 0
        %2457 = vperm.xlu0 %2456, %v2413
        %v2458 = vpop.permute.xlu0 %2457
        %2461 = vset.pattern.permute.xlu0 0
        %2462 = vperm.xlu0 %2461, %v2414
        %v2463 = vpop.permute.xlu0 %2462
        %2466 = vset.pattern.permute.xlu0 0
        %2467 = vperm.xlu0 %2466, %v2415
        %v2468 = vpop.permute.xlu0 %2467
        %2471 = vset.pattern.permute.xlu0 0
        %2472 = vperm.xlu0 %2471, %v2416
        %v2473 = vpop.permute.xlu0 %2472
        %2476 = vset.pattern.permute.xlu0 0
        %2477 = vperm.xlu0 %2476, %v2417
        %v2478 = vpop.permute.xlu0 %2477
        %2481 = vset.pattern.permute.xlu0 0
        %2482 = vperm.xlu0 %2481, %v2418
        %v2483 = vpop.permute.xlu0 %2482
        %2486 = vset.pattern.permute.xlu0 0
        %2487 = vperm.xlu0 %2486, %v2419
        %v2488 = vpop.permute.xlu0 %2487
        %2491 = vset.pattern.permute.xlu0 0
        %2492 = vperm.xlu0 %2491, %v2420
        %v2493 = vpop.permute.xlu0 %2492
        %2496 = vset.pattern.permute.xlu0 0
        %2497 = vperm.xlu0 %2496, %v2421
        %v2498 = vpop.permute.xlu0 %2497
        %2501 = vset.pattern.permute.xlu0 0
        %2502 = vperm.xlu0 %2501, %v2422
        %v2503 = vpop.permute.xlu0 %2502
        %v2506 = vlaneseq
        %v2507 = vshrl.u32 %v2506, 7
        %v2508 = vsub.s32 0, %v2507
        %v2509 = vrot.slane %v2424, %v2508
        %v2511 = vsub.f32 %v2428, %v2509
        %v2512 = vsub.f32 %v2433, %v2509
        %v2513 = vsub.f32 %v2438, %v2509
        %v2514 = vsub.f32 %v2443, %v2509
        %v2515 = vsub.f32 %v2448, %v2509
        %v2516 = vsub.f32 %v2453, %v2509
        %v2517 = vsub.f32 %v2458, %v2509
        %v2518 = vsub.f32 %v2463, %v2509
        %v2519 = vsub.f32 %v2468, %v2509
        %v2520 = vsub.f32 %v2473, %v2509
        %v2521 = vsub.f32 %v2478, %v2509
        %v2522 = vsub.f32 %v2483, %v2509
        %v2523 = vsub.f32 %v2488, %v2509
        %v2524 = vsub.f32 %v2493, %v2509
        %v2525 = vsub.f32 %v2498, %v2509
        %v2526 = vsub.f32 %v2503, %v2509
        %v2527 = vmul.f32 %v2511, %v2511
        %v2528 = vmul.f32 %v2512, %v2512
        %v2529 = vmul.f32 %v2513, %v2513
        %v2530 = vmul.f32 %v2514, %v2514
        %v2531 = vmul.f32 %v2515, %v2515
        %v2532 = vmul.f32 %v2516, %v2516
        %v2533 = vmul.f32 %v2517, %v2517
        %v2534 = vmul.f32 %v2518, %v2518
        %v2535 = vmul.f32 %v2519, %v2519
        %v2536 = vmul.f32 %v2520, %v2520
        %v2537 = vmul.f32 %v2521, %v2521
        %v2538 = vmul.f32 %v2522, %v2522
        %v2539 = vmul.f32 %v2523, %v2523
        %v2540 = vmul.f32 %v2524, %v2524
        %v2541 = vmul.f32 %v2525, %v2525
        %v2542 = vmul.f32 %v2526, %v2526
        %v2543 = vadd.f32 %v2390, %v2527
        %v2544 = vadd.f32 %v2391, %v2528
        %v2545 = vadd.f32 %v2392, %v2529
        %v2546 = vadd.f32 %v2393, %v2530
        %v2547 = vadd.f32 %v2394, %v2531
        %v2548 = vadd.f32 %v2395, %v2532
        %v2549 = vadd.f32 %v2396, %v2533
        %v2550 = vadd.f32 %v2397, %v2534
        %v2551 = vadd.f32 %v2398, %v2535
        %v2552 = vadd.f32 %v2399, %v2536
        %v2553 = vadd.f32 %v2400, %v2537
        %v2554 = vadd.f32 %v2401, %v2538
        %v2555 = vadd.f32 %v2402, %v2539
        %v2556 = vadd.f32 %v2403, %v2540
        %v2557 = vadd.f32 %v2404, %v2541
        %v2558 = vadd.f32 %v2405, %v2542
        %v2559 = vstv %s557
        %v2560 = vmul.f32 %v2543, %v2559
        %v2561 = vmul.f32 %v2544, %v2559
        %v2562 = vmul.f32 %v2545, %v2559
        %v2563 = vmul.f32 %v2546, %v2559
        %v2564 = vmul.f32 %v2547, %v2559
        %v2565 = vmul.f32 %v2548, %v2559
        %v2566 = vmul.f32 %v2549, %v2559
        %v2567 = vmul.f32 %v2550, %v2559
        %v2568 = vmul.f32 %v2551, %v2559
        %v2569 = vmul.f32 %v2552, %v2559
        %v2570 = vmul.f32 %v2553, %v2559
        %v2571 = vmul.f32 %v2554, %v2559
        %v2572 = vmul.f32 %v2555, %v2559
        %v2573 = vmul.f32 %v2556, %v2559
        %v2574 = vmul.f32 %v2557, %v2559
        %v2575 = vmul.f32 %v2558, %v2559
        %v2576 = vmul.f32 %v2560, 1.442695
        %v2577 = vpow.pop %v2576
        %v2578 = vmul.f32 %v2561, 1.442695
        %v2579 = vpow.pop %v2578
        %v2580 = vmul.f32 %v2562, 1.442695
        %v2581 = vpow.pop %v2580
        %v2582 = vmul.f32 %v2563, 1.442695
        %v2583 = vpow.pop %v2582
        %v2584 = vmul.f32 %v2564, 1.442695
        %v2585 = vpow.pop %v2584
        %v2586 = vmul.f32 %v2565, 1.442695
        %v2587 = vpow.pop %v2586
        %v2588 = vmul.f32 %v2566, 1.442695
        %v2589 = vpow.pop %v2588
        %v2590 = vmul.f32 %v2567, 1.442695
        %v2591 = vpow.pop %v2590
        %v2592 = vmul.f32 %v2568, 1.442695
        %v2593 = vpow.pop %v2592
        %v2594 = vmul.f32 %v2569, 1.442695
        %v2595 = vpow.pop %v2594
        %v2596 = vmul.f32 %v2570, 1.442695
        %v2597 = vpow.pop %v2596
        %v2598 = vmul.f32 %v2571, 1.442695
        %v2599 = vpow.pop %v2598
        %v2600 = vmul.f32 %v2572, 1.442695
        %v2601 = vpow.pop %v2600
        %v2602 = vmul.f32 %v2573, 1.442695
        %v2603 = vpow.pop %v2602
        %v2604 = vmul.f32 %v2574, 1.442695
        %v2605 = vpow.pop %v2604
        %v2606 = vmul.f32 %v2575, 1.442695
        %v2607 = vpow.pop %v2606
        %v2608 = vld [vmem:[#allocation4] sm:$0xff]
        %v2609 = vld [vmem:[#allocation4 + $0x8] sm:$0xff]
        %v2610 = vld [vmem:[#allocation4 + $0x10] sm:$0xff]
        %v2611 = vld [vmem:[#allocation4 + $0x18] sm:$0xff]
        %v2612 = vld [vmem:[#allocation4 + $0x20] sm:$0xff]
        %v2613 = vld [vmem:[#allocation4 + $0x28] sm:$0xff]
        %v2614 = vld [vmem:[#allocation4 + $0x30] sm:$0xff]
        %v2615 = vld [vmem:[#allocation4 + $0x38] sm:$0xff]
        %v2616 = vld [vmem:[#allocation4 + $0x40] sm:$0xff]
        %v2617 = vld [vmem:[#allocation4 + $0x48] sm:$0xff]
        %v2618 = vld [vmem:[#allocation4 + $0x50] sm:$0xff]
        %v2619 = vld [vmem:[#allocation4 + $0x58] sm:$0xff]
        %v2620 = vld [vmem:[#allocation4 + $0x60] sm:$0xff]
        %v2621 = vld [vmem:[#allocation4 + $0x68] sm:$0xff]
        %v2622 = vld [vmem:[#allocation4 + $0x70] sm:$0xff]
        %v2623 = vld [vmem:[#allocation4 + $0x78] sm:$0xff]
        %v2624 = vmul.f32 %v2608, %v2112
        %v2625 = vmul.f32 %v2609, %v2114
        %v2626 = vmul.f32 %v2610, %v2116
        %v2627 = vmul.f32 %v2611, %v2118
        %v2628 = vmul.f32 %v2612, %v2120
        %v2629 = vmul.f32 %v2613, %v2122
        %v2630 = vmul.f32 %v2614, %v2124
        %v2631 = vmul.f32 %v2615, %v2126
        %v2632 = vmul.f32 %v2616, %v2128
        %v2633 = vmul.f32 %v2617, %v2130
        %v2634 = vmul.f32 %v2618, %v2132
        %v2635 = vmul.f32 %v2619, %v2134
        %v2636 = vmul.f32 %v2620, %v2136
        %v2637 = vmul.f32 %v2621, %v2138
        %v2638 = vmul.f32 %v2622, %v2140
        %v2639 = vmul.f32 %v2623, %v2142
        %2640 = vadd.xlane.f32.xlu0 %v2240
        %v2641 = vpop.xlane.xlu0 %2640
        %2642 = vadd.xlane.f32.xlu0 %v2242
        %v2643 = vpop.xlane.xlu0 %2642
        %2644 = vadd.xlane.f32.xlu0 %v2244
        %v2645 = vpop.xlane.xlu0 %2644
        %2646 = vadd.xlane.f32.xlu0 %v2246
        %v2647 = vpop.xlane.xlu0 %2646
        %2648 = vadd.xlane.f32.xlu0 %v2248
        %v2649 = vpop.xlane.xlu0 %2648
        %2650 = vadd.xlane.f32.xlu0 %v2250
        %v2651 = vpop.xlane.xlu0 %2650
        %2652 = vadd.xlane.f32.xlu0 %v2252
        %v2653 = vpop.xlane.xlu0 %2652
        %2654 = vadd.xlane.f32.xlu0 %v2254
        %v2655 = vpop.xlane.xlu0 %2654
        %2656 = vadd.xlane.f32.xlu0 %v2256
        %v2657 = vpop.xlane.xlu0 %2656
        %2658 = vadd.xlane.f32.xlu0 %v2258
        %v2659 = vpop.xlane.xlu0 %2658
        %2660 = vadd.xlane.f32.xlu0 %v2260
        %v2661 = vpop.xlane.xlu0 %2660
        %2662 = vadd.xlane.f32.xlu0 %v2262
        %v2663 = vpop.xlane.xlu0 %2662
        %2664 = vadd.xlane.f32.xlu0 %v2264
        %v2665 = vpop.xlane.xlu0 %2664
        %2666 = vadd.xlane.f32.xlu0 %v2266
        %v2667 = vpop.xlane.xlu0 %2666
        %2668 = vadd.xlane.f32.xlu0 %v2268
        %v2669 = vpop.xlane.xlu0 %2668
        %2670 = vadd.xlane.f32.xlu0 %v2270
        %v2671 = vpop.xlane.xlu0 %2670
        %v2672 = vadd.f32 %v2624, %v2641
        %v2673 = vadd.f32 %v2625, %v2643
        %v2674 = vadd.f32 %v2626, %v2645
        %v2675 = vadd.f32 %v2627, %v2647
        %v2676 = vadd.f32 %v2628, %v2649
        %v2677 = vadd.f32 %v2629, %v2651
        %v2678 = vadd.f32 %v2630, %v2653
        %v2679 = vadd.f32 %v2631, %v2655
        %v2680 = vadd.f32 %v2632, %v2657
        %v2681 = vadd.f32 %v2633, %v2659
        %v2682 = vadd.f32 %v2634, %v2661
        %v2683 = vadd.f32 %v2635, %v2663
        %v2684 = vadd.f32 %v2636, %v2665
        %v2685 = vadd.f32 %v2637, %v2667
        %v2686 = vadd.f32 %v2638, %v2669
        %v2687 = vadd.f32 %v2639, %v2671
        %vm2688 = vcmask 7168
        %2689 = vst.msk [vmem:[#allocation4] sm:$0xff] %vm2688, %v2672
        %2690 = vst.msk [vmem:[#allocation4 + $0x8] sm:$0xff] %vm2688, %v2673
        %2691 = vst.msk [vmem:[#allocation4 + $0x10] sm:$0xff] %vm2688, %v2674
        %2692 = vst.msk [vmem:[#allocation4 + $0x18] sm:$0xff] %vm2688, %v2675
        %2693 = vst.msk [vmem:[#allocation4 + $0x20] sm:$0xff] %vm2688, %v2676
        %2694 = vst.msk [vmem:[#allocation4 + $0x28] sm:$0xff] %vm2688, %v2677
        %2695 = vst.msk [vmem:[#allocation4 + $0x30] sm:$0xff] %vm2688, %v2678
        %2696 = vst.msk [vmem:[#allocation4 + $0x38] sm:$0xff] %vm2688, %v2679
        %2697 = vst.msk [vmem:[#allocation4 + $0x40] sm:$0xff] %vm2688, %v2680
        %2698 = vst.msk [vmem:[#allocation4 + $0x48] sm:$0xff] %vm2688, %v2681
        %2699 = vst.msk [vmem:[#allocation4 + $0x50] sm:$0xff] %vm2688, %v2682
        %2700 = vst.msk [vmem:[#allocation4 + $0x58] sm:$0xff] %vm2688, %v2683
        %2701 = vst.msk [vmem:[#allocation4 + $0x60] sm:$0xff] %vm2688, %v2684
        %2702 = vst.msk [vmem:[#allocation4 + $0x68] sm:$0xff] %vm2688, %v2685
        %2703 = vst.msk [vmem:[#allocation4 + $0x70] sm:$0xff] %vm2688, %v2686
        %2704 = vst.msk [vmem:[#allocation4 + $0x78] sm:$0xff] %vm2688, %v2687
        %v2705 = vld [vmem:[#allocation3] sm:$0xff]
        %v2706 = vld [vmem:[#allocation3 + $0x8] sm:$0xff]
        %v2707 = vld [vmem:[#allocation3 + $0x10] sm:$0xff]
        %v2708 = vld [vmem:[#allocation3 + $0x18] sm:$0xff]
        %v2709 = vld [vmem:[#allocation3 + $0x20] sm:$0xff]
        %v2710 = vld [vmem:[#allocation3 + $0x28] sm:$0xff]
        %v2711 = vld [vmem:[#allocation3 + $0x30] sm:$0xff]
        %v2712 = vld [vmem:[#allocation3 + $0x38] sm:$0xff]
        %v2713 = vld [vmem:[#allocation3 + $0x40] sm:$0xff]
        %v2714 = vld [vmem:[#allocation3 + $0x48] sm:$0xff]
        %v2715 = vld [vmem:[#allocation3 + $0x50] sm:$0xff]
        %v2716 = vld [vmem:[#allocation3 + $0x58] sm:$0xff]
        %v2717 = vld [vmem:[#allocation3 + $0x60] sm:$0xff]
        %v2718 = vld [vmem:[#allocation3 + $0x68] sm:$0xff]
        %v2719 = vld [vmem:[#allocation3 + $0x70] sm:$0xff]
        %v2720 = vld [vmem:[#allocation3 + $0x78] sm:$0xff]
        %v2721 = vmul.f32 %v2705, %v2112
        %v2722 = vmul.f32 %v2706, %v2114
        %v2723 = vmul.f32 %v2707, %v2116
        %v2724 = vmul.f32 %v2708, %v2118
        %v2725 = vmul.f32 %v2709, %v2120
        %v2726 = vmul.f32 %v2710, %v2122
        %v2727 = vmul.f32 %v2711, %v2124
        %v2728 = vmul.f32 %v2712, %v2126
        %v2729 = vmul.f32 %v2713, %v2128
        %v2730 = vmul.f32 %v2714, %v2130
        %v2731 = vmul.f32 %v2715, %v2132
        %v2732 = vmul.f32 %v2716, %v2134
        %v2733 = vmul.f32 %v2717, %v2136
        %v2734 = vmul.f32 %v2718, %v2138
        %v2735 = vmul.f32 %v2719, %v2140
        %v2736 = vmul.f32 %v2720, %v2142
        %v2737 = vmul.f32 %v2240, %v2577
        %v2738 = vmul.f32 %v2242, %v2579
        %v2739 = vmul.f32 %v2244, %v2581
        %v2740 = vmul.f32 %v2246, %v2583
        %v2741 = vmul.f32 %v2248, %v2585
        %v2742 = vmul.f32 %v2250, %v2587
        %v2743 = vmul.f32 %v2252, %v2589
        %v2744 = vmul.f32 %v2254, %v2591
        %v2745 = vmul.f32 %v2256, %v2593
        %v2746 = vmul.f32 %v2258, %v2595
        %v2747 = vmul.f32 %v2260, %v2597
        %v2748 = vmul.f32 %v2262, %v2599
        %v2749 = vmul.f32 %v2264, %v2601
        %v2750 = vmul.f32 %v2266, %v2603
        %v2751 = vmul.f32 %v2268, %v2605
        %v2752 = vmul.f32 %v2270, %v2607
        %2753 = vadd.xlane.f32.xlu0 %v2737
        %v2754 = vpop.xlane.xlu0 %2753
        %2755 = vadd.xlane.f32.xlu0 %v2738
        %v2756 = vpop.xlane.xlu0 %2755
        %2757 = vadd.xlane.f32.xlu0 %v2739
        %v2758 = vpop.xlane.xlu0 %2757
        %2759 = vadd.xlane.f32.xlu0 %v2740
        %v2760 = vpop.xlane.xlu0 %2759
        %2761 = vadd.xlane.f32.xlu0 %v2741
        %v2762 = vpop.xlane.xlu0 %2761
        %2763 = vadd.xlane.f32.xlu0 %v2742
        %v2764 = vpop.xlane.xlu0 %2763
        %2765 = vadd.xlane.f32.xlu0 %v2743
        %v2766 = vpop.xlane.xlu0 %2765
        %2767 = vadd.xlane.f32.xlu0 %v2744
        %v2768 = vpop.xlane.xlu0 %2767
        %2769 = vadd.xlane.f32.xlu0 %v2745
        %v2770 = vpop.xlane.xlu0 %2769
        %2771 = vadd.xlane.f32.xlu0 %v2746
        %v2772 = vpop.xlane.xlu0 %2771
        %2773 = vadd.xlane.f32.xlu0 %v2747
        %v2774 = vpop.xlane.xlu0 %2773
        %2775 = vadd.xlane.f32.xlu0 %v2748
        %v2776 = vpop.xlane.xlu0 %2775
        %2777 = vadd.xlane.f32.xlu0 %v2749
        %v2778 = vpop.xlane.xlu0 %2777
        %2779 = vadd.xlane.f32.xlu0 %v2750
        %v2780 = vpop.xlane.xlu0 %2779
        %2781 = vadd.xlane.f32.xlu0 %v2751
        %v2782 = vpop.xlane.xlu0 %2781
        %2783 = vadd.xlane.f32.xlu0 %v2752
        %v2784 = vpop.xlane.xlu0 %2783
        %v2785 = vadd.f32 %v2721, %v2754
        %v2786 = vadd.f32 %v2722, %v2756
        %v2787 = vadd.f32 %v2723, %v2758
        %v2788 = vadd.f32 %v2724, %v2760
        %v2789 = vadd.f32 %v2725, %v2762
        %v2790 = vadd.f32 %v2726, %v2764
        %v2791 = vadd.f32 %v2727, %v2766
        %v2792 = vadd.f32 %v2728, %v2768
        %v2793 = vadd.f32 %v2729, %v2770
        %v2794 = vadd.f32 %v2730, %v2772
        %v2795 = vadd.f32 %v2731, %v2774
        %v2796 = vadd.f32 %v2732, %v2776
        %v2797 = vadd.f32 %v2733, %v2778
        %v2798 = vadd.f32 %v2734, %v2780
        %v2799 = vadd.f32 %v2735, %v2782
        %v2800 = vadd.f32 %v2736, %v2784
        %2801 = vst.msk [vmem:[#allocation3] sm:$0xff] %vm2688, %v2785
        %2802 = vst.msk [vmem:[#allocation3 + $0x8] sm:$0xff] %vm2688, %v2786
        %2803 = vst.msk [vmem:[#allocation3 + $0x10] sm:$0xff] %vm2688, %v2787
        %2804 = vst.msk [vmem:[#allocation3 + $0x18] sm:$0xff] %vm2688, %v2788
        %2805 = vst.msk [vmem:[#allocation3 + $0x20] sm:$0xff] %vm2688, %v2789
        %2806 = vst.msk [vmem:[#allocation3 + $0x28] sm:$0xff] %vm2688, %v2790
        %2807 = vst.msk [vmem:[#allocation3 + $0x30] sm:$0xff] %vm2688, %v2791
        %2808 = vst.msk [vmem:[#allocation3 + $0x38] sm:$0xff] %vm2688, %v2792
        %2809 = vst.msk [vmem:[#allocation3 + $0x40] sm:$0xff] %vm2688, %v2793
        %2810 = vst.msk [vmem:[#allocation3 + $0x48] sm:$0xff] %vm2688, %v2794
        %2811 = vst.msk [vmem:[#allocation3 + $0x50] sm:$0xff] %vm2688, %v2795
        %2812 = vst.msk [vmem:[#allocation3 + $0x58] sm:$0xff] %vm2688, %v2796
        %2813 = vst.msk [vmem:[#allocation3 + $0x60] sm:$0xff] %vm2688, %v2797
        %2814 = vst.msk [vmem:[#allocation3 + $0x68] sm:$0xff] %vm2688, %v2798
        %2815 = vst.msk [vmem:[#allocation3 + $0x70] sm:$0xff] %vm2688, %v2799
        %2816 = vst.msk [vmem:[#allocation3 + $0x78] sm:$0xff] %vm2688, %v2800
        %2817 = vst.msk [vmem:[#allocation2] sm:$0xff] %vm2688, %v2079
        %2818 = vst.msk [vmem:[#allocation2 + $0x8] sm:$0xff] %vm2688, %v2080
        %2819 = vst.msk [vmem:[#allocation2 + $0x10] sm:$0xff] %vm2688, %v2081
        %2820 = vst.msk [vmem:[#allocation2 + $0x18] sm:$0xff] %vm2688, %v2082
        %2821 = vst.msk [vmem:[#allocation2 + $0x20] sm:$0xff] %vm2688, %v2083
        %2822 = vst.msk [vmem:[#allocation2 + $0x28] sm:$0xff] %vm2688, %v2084
        %2823 = vst.msk [vmem:[#allocation2 + $0x30] sm:$0xff] %vm2688, %v2085
        %2824 = vst.msk [vmem:[#allocation2 + $0x38] sm:$0xff] %vm2688, %v2086
        %2825 = vst.msk [vmem:[#allocation2 + $0x40] sm:$0xff] %vm2688, %v2087
        %2826 = vst.msk [vmem:[#allocation2 + $0x48] sm:$0xff] %vm2688, %v2088
        %2827 = vst.msk [vmem:[#allocation2 + $0x50] sm:$0xff] %vm2688, %v2089
        %2828 = vst.msk [vmem:[#allocation2 + $0x58] sm:$0xff] %vm2688, %v2090
        %2829 = vst.msk [vmem:[#allocation2 + $0x60] sm:$0xff] %vm2688, %v2091
        %2830 = vst.msk [vmem:[#allocation2 + $0x68] sm:$0xff] %vm2688, %v2092
        %2831 = vst.msk [vmem:[#allocation2 + $0x70] sm:$0xff] %vm2688, %v2093
        %2832 = vst.msk [vmem:[#allocation2 + $0x78] sm:$0xff] %vm2688, %v2094
        %v2833 = vstv %s562
        %v2834 = vmul.f32 %v1982, %v2833
        %v2835 = vmul.f32 %v1983, %v2833
        %v2836 = vmul.f32 %v1984, %v2833
        %v2837 = vmul.f32 %v1985, %v2833
        %v2838 = vmul.f32 %v1986, %v2833
        %v2839 = vmul.f32 %v1987, %v2833
        %v2840 = vmul.f32 %v1988, %v2833
        %v2841 = vmul.f32 %v1989, %v2833
        %v2842 = vmul.f32 %v1990, %v2833
        %v2843 = vmul.f32 %v1991, %v2833
        %v2844 = vmul.f32 %v1992, %v2833
        %v2845 = vmul.f32 %v1993, %v2833
        %v2846 = vmul.f32 %v1994, %v2833
        %v2847 = vmul.f32 %v1995, %v2833
        %v2848 = vmul.f32 %v1996, %v2833
        %v2849 = vmul.f32 %v1997, %v2833
        %v2850 = vmin.f32 %v2834, 0.0
        %v2851 = vmin.f32 %v2835, 0.0
        %v2852 = vmin.f32 %v2836, 0.0
        %v2853 = vmin.f32 %v2837, 0.0
        %v2854 = vmin.f32 %v2838, 0.0
        %v2855 = vmin.f32 %v2839, 0.0
        %v2856 = vmin.f32 %v2840, 0.0
        %v2857 = vmin.f32 %v2841, 0.0
        %v2858 = vmin.f32 %v2842, 0.0
        %v2859 = vmin.f32 %v2843, 0.0
        %v2860 = vmin.f32 %v2844, 0.0
        %v2861 = vmin.f32 %v2845, 0.0
        %v2862 = vmin.f32 %v2846, 0.0
        %v2863 = vmin.f32 %v2847, 0.0
        %v2864 = vmin.f32 %v2848, 0.0
        %v2865 = vmin.f32 %v2849, 0.0
        %v2866 = vmul.f32 %v2850, 1.442695
        %v2867 = vpow.pop %v2866
        %v2868 = vmul.f32 %v2851, 1.442695
        %v2869 = vpow.pop %v2868
        %v2870 = vmul.f32 %v2852, 1.442695
        %v2871 = vpow.pop %v2870
        %v2872 = vmul.f32 %v2853, 1.442695
        %v2873 = vpow.pop %v2872
        %v2874 = vmul.f32 %v2854, 1.442695
        %v2875 = vpow.pop %v2874
        %v2876 = vmul.f32 %v2855, 1.442695
        %v2877 = vpow.pop %v2876
        %v2878 = vmul.f32 %v2856, 1.442695
        %v2879 = vpow.pop %v2878
        %v2880 = vmul.f32 %v2857, 1.442695
        %v2881 = vpow.pop %v2880
        %v2882 = vmul.f32 %v2858, 1.442695
        %v2883 = vpow.pop %v2882
        %v2884 = vmul.f32 %v2859, 1.442695
        %v2885 = vpow.pop %v2884
        %v2886 = vmul.f32 %v2860, 1.442695
        %v2887 = vpow.pop %v2886
        %v2888 = vmul.f32 %v2861, 1.442695
        %v2889 = vpow.pop %v2888
        %v2890 = vmul.f32 %v2862, 1.442695
        %v2891 = vpow.pop %v2890
        %v2892 = vmul.f32 %v2863, 1.442695
        %v2893 = vpow.pop %v2892
        %v2894 = vmul.f32 %v2864, 1.442695
        %v2895 = vpow.pop %v2894
        %v2896 = vmul.f32 %v2865, 1.442695
        %v2897 = vpow.pop %v2896
        %v2898 = vsel %vm1880, %v2867, 0.0
        %v2899 = vsel %vm1881, %v2869, 0.0
        %v2900 = vsel %vm1882, %v2871, 0.0
        %v2901 = vsel %vm1883, %v2873, 0.0
        %v2902 = vsel %vm1884, %v2875, 0.0
        %v2903 = vsel %vm1885, %v2877, 0.0
        %v2904 = vsel %vm1886, %v2879, 0.0
        %v2905 = vsel %vm1887, %v2881, 0.0
        %v2906 = vsel %vm1888, %v2883, 0.0
        %v2907 = vsel %vm1889, %v2885, 0.0
        %v2908 = vsel %vm1890, %v2887, 0.0
        %v2909 = vsel %vm1891, %v2889, 0.0
        %v2910 = vsel %vm1892, %v2891, 0.0
        %v2911 = vsel %vm1893, %v2893, 0.0
        %v2912 = vsel %vm1894, %v2895, 0.0
        %v2913 = vsel %vm1895, %v2897, 0.0
        %v2914 = vld [vmem:[#allocation5] sm:$0xff]
        %v2915 = vld [vmem:[#allocation5 + $0x8] sm:$0xff]
        %v2916 = vld [vmem:[#allocation5 + $0x10] sm:$0xff]
        %v2917 = vld [vmem:[#allocation5 + $0x18] sm:$0xff]
        %v2918 = vld [vmem:[#allocation5 + $0x20] sm:$0xff]
        %v2919 = vld [vmem:[#allocation5 + $0x28] sm:$0xff]
        %v2920 = vld [vmem:[#allocation5 + $0x30] sm:$0xff]
        %v2921 = vld [vmem:[#allocation5 + $0x38] sm:$0xff]
        %v2922 = vld [vmem:[#allocation5 + $0x40] sm:$0xff]
        %v2923 = vld [vmem:[#allocation5 + $0x48] sm:$0xff]
        %v2924 = vld [vmem:[#allocation5 + $0x50] sm:$0xff]
        %v2925 = vld [vmem:[#allocation5 + $0x58] sm:$0xff]
        %v2926 = vld [vmem:[#allocation5 + $0x60] sm:$0xff]
        %v2927 = vld [vmem:[#allocation5 + $0x68] sm:$0xff]
        %v2928 = vld [vmem:[#allocation5 + $0x70] sm:$0xff]
        %v2929 = vld [vmem:[#allocation5 + $0x78] sm:$0xff]
        %2930 = vadd.xlane.f32.xlu0 %v2898
        %v2931 = vpop.xlane.xlu0 %2930
        %2932 = vadd.xlane.f32.xlu0 %v2899
        %v2933 = vpop.xlane.xlu0 %2932
        %2934 = vadd.xlane.f32.xlu0 %v2900
        %v2935 = vpop.xlane.xlu0 %2934
        %2936 = vadd.xlane.f32.xlu0 %v2901
        %v2937 = vpop.xlane.xlu0 %2936
        %2938 = vadd.xlane.f32.xlu0 %v2902
        %v2939 = vpop.xlane.xlu0 %2938
        %2940 = vadd.xlane.f32.xlu0 %v2903
        %v2941 = vpop.xlane.xlu0 %2940
        %2942 = vadd.xlane.f32.xlu0 %v2904
        %v2943 = vpop.xlane.xlu0 %2942
        %2944 = vadd.xlane.f32.xlu0 %v2905
        %v2945 = vpop.xlane.xlu0 %2944
        %2946 = vadd.xlane.f32.xlu0 %v2906
        %v2947 = vpop.xlane.xlu0 %2946
        %2948 = vadd.xlane.f32.xlu0 %v2907
        %v2949 = vpop.xlane.xlu0 %2948
        %2950 = vadd.xlane.f32.xlu0 %v2908
        %v2951 = vpop.xlane.xlu0 %2950
        %2952 = vadd.xlane.f32.xlu0 %v2909
        %v2953 = vpop.xlane.xlu0 %2952
        %2954 = vadd.xlane.f32.xlu0 %v2910
        %v2955 = vpop.xlane.xlu0 %2954
        %2956 = vadd.xlane.f32.xlu0 %v2911
        %v2957 = vpop.xlane.xlu0 %2956
        %2958 = vadd.xlane.f32.xlu0 %v2912
        %v2959 = vpop.xlane.xlu0 %2958
        %2960 = vadd.xlane.f32.xlu0 %v2913
        %v2961 = vpop.xlane.xlu0 %2960
        %v2962 = vadd.f32 %v2914, %v2931
        %v2963 = vadd.f32 %v2915, %v2933
        %v2964 = vadd.f32 %v2916, %v2935
        %v2965 = vadd.f32 %v2917, %v2937
        %v2966 = vadd.f32 %v2918, %v2939
        %v2967 = vadd.f32 %v2919, %v2941
        %v2968 = vadd.f32 %v2920, %v2943
        %v2969 = vadd.f32 %v2921, %v2945
        %v2970 = vadd.f32 %v2922, %v2947
        %v2971 = vadd.f32 %v2923, %v2949
        %v2972 = vadd.f32 %v2924, %v2951
        %v2973 = vadd.f32 %v2925, %v2953
        %v2974 = vadd.f32 %v2926, %v2955
        %v2975 = vadd.f32 %v2927, %v2957
        %v2976 = vadd.f32 %v2928, %v2959
        %v2977 = vadd.f32 %v2929, %v2961
        %2978 = vst.msk [vmem:[#allocation5] sm:$0xff] %vm2688, %v2962
        %2979 = vst.msk [vmem:[#allocation5 + $0x8] sm:$0xff] %vm2688, %v2963
        %2980 = vst.msk [vmem:[#allocation5 + $0x10] sm:$0xff] %vm2688, %v2964
        %2981 = vst.msk [vmem:[#allocation5 + $0x18] sm:$0xff] %vm2688, %v2965
        %2982 = vst.msk [vmem:[#allocation5 + $0x20] sm:$0xff] %vm2688, %v2966
        %2983 = vst.msk [vmem:[#allocation5 + $0x28] sm:$0xff] %vm2688, %v2967
        %2984 = vst.msk [vmem:[#allocation5 + $0x30] sm:$0xff] %vm2688, %v2968
        %2985 = vst.msk [vmem:[#allocation5 + $0x38] sm:$0xff] %vm2688, %v2969
        %2986 = vst.msk [vmem:[#allocation5 + $0x40] sm:$0xff] %vm2688, %v2970
        %2987 = vst.msk [vmem:[#allocation5 + $0x48] sm:$0xff] %vm2688, %v2971
        %2988 = vst.msk [vmem:[#allocation5 + $0x50] sm:$0xff] %vm2688, %v2972
        %2989 = vst.msk [vmem:[#allocation5 + $0x58] sm:$0xff] %vm2688, %v2973
        %2990 = vst.msk [vmem:[#allocation5 + $0x60] sm:$0xff] %vm2688, %v2974
        %2991 = vst.msk [vmem:[#allocation5 + $0x68] sm:$0xff] %vm2688, %v2975
        %2992 = vst.msk [vmem:[#allocation5 + $0x70] sm:$0xff] %vm2688, %v2976
        %2993 = vst.msk [vmem:[#allocation5 + $0x78] sm:$0xff] %vm2688, %v2977
      $region60: #{combined_spatiotemporal_forward.1} parent=43 // pred_fallthru
        _
      // Predicated region
      $region61: #{combined_spatiotemporal_forward.1} parent=43 // pred_check
        %p2994 = pneg %p571
      $region62: #{combined_spatiotemporal_forward.1} parent=43 // pred_check_branch
        %2996 = sbr.rel (%p2994) target = $region64
      $region63: #{combined_spatiotemporal_forward.1} parent=43 // pred_region
        %v2997 = vld [vmem:[%s503] sm:$0xff]
        %v2998 = vld [vmem:[%s503 + $0x8] sm:$0xff]
        %v2999 = vld [vmem:[%s503 + $0x10] sm:$0xff]
        %v3000 = vld [vmem:[%s503 + $0x18] sm:$0xff]
        %v3001 = vld [vmem:[%s503 + $0x20] sm:$0xff]
        %v3002 = vld [vmem:[%s503 + $0x28] sm:$0xff]
        %v3003 = vld [vmem:[%s503 + $0x30] sm:$0xff]
        %v3004 = vld [vmem:[%s503 + $0x38] sm:$0xff]
        %v3005 = vld [vmem:[%s503 + $0x40] sm:$0xff]
        %v3006 = vld [vmem:[%s503 + $0x48] sm:$0xff]
        %v3007 = vld [vmem:[%s503 + $0x50] sm:$0xff]
        %v3008 = vld [vmem:[%s503 + $0x58] sm:$0xff]
        %v3009 = vld [vmem:[%s503 + $0x60] sm:$0xff]
        %v3010 = vld [vmem:[%s503 + $0x68] sm:$0xff]
        %v3011 = vld [vmem:[%s503 + $0x70] sm:$0xff]
        %v3012 = vld [vmem:[%s503 + $0x78] sm:$0xff]
        %v3013 = vlaneseq
        %v3014 = vshrl.u32 %v3013, 7
        %v3015 = vadd.s32 %v3014, 8
        %v3016 = vadd.s32 %v3014, 16
        %v3017 = vadd.s32 %v3014, 24
        %v3018 = vadd.s32 %v3014, 32
        %v3019 = vadd.s32 %v3014, 40
        %v3020 = vadd.s32 %v3014, 48
        %v3021 = vadd.s32 %v3014, 56
        %v3022 = vadd.s32 %v3014, 64
        %v3023 = vadd.s32 %v3014, 72
        %v3024 = vadd.s32 %v3014, 80
        %v3025 = vadd.s32 %v3014, 88
        %v3026 = vadd.s32 %v3014, 96
        %v3027 = vadd.s32 %v3014, 104
        %v3028 = vadd.s32 %v3014, 112
        %v3029 = vadd.s32 %v3014, 120
        %v3030 = vstv %s572
        %v3031 = vadd.s32 %v3030, %v3014
        %v3032 = vadd.s32 %v3030, %v3015
        %v3033 = vadd.s32 %v3030, %v3016
        %v3034 = vadd.s32 %v3030, %v3017
        %v3035 = vadd.s32 %v3030, %v3018
        %v3036 = vadd.s32 %v3030, %v3019
        %v3037 = vadd.s32 %v3030, %v3020
        %v3038 = vadd.s32 %v3030, %v3021
        %v3039 = vadd.s32 %v3030, %v3022
        %v3040 = vadd.s32 %v3030, %v3023
        %v3041 = vadd.s32 %v3030, %v3024
        %v3042 = vadd.s32 %v3030, %v3025
        %v3043 = vadd.s32 %v3030, %v3026
        %v3044 = vadd.s32 %v3030, %v3027
        %v3045 = vadd.s32 %v3030, %v3028
        %v3046 = vadd.s32 %v3030, %v3029
        %vm3047 = vcmp.gt.f32.partialorder %v2997, 0.5
        %vm3048 = vcmp.gt.f32.partialorder %v2998, 0.5
        %vm3049 = vcmp.gt.f32.partialorder %v2999, 0.5
        %vm3050 = vcmp.gt.f32.partialorder %v3000, 0.5
        %vm3051 = vcmp.gt.f32.partialorder %v3001, 0.5
        %vm3052 = vcmp.gt.f32.partialorder %v3002, 0.5
        %vm3053 = vcmp.gt.f32.partialorder %v3003, 0.5
        %vm3054 = vcmp.gt.f32.partialorder %v3004, 0.5
        %vm3055 = vcmp.gt.f32.partialorder %v3005, 0.5
        %vm3056 = vcmp.gt.f32.partialorder %v3006, 0.5
        %vm3057 = vcmp.gt.f32.partialorder %v3007, 0.5
        %vm3058 = vcmp.gt.f32.partialorder %v3008, 0.5
        %vm3059 = vcmp.gt.f32.partialorder %v3009, 0.5
        %vm3060 = vcmp.gt.f32.partialorder %v3010, 0.5
        %vm3061 = vcmp.gt.f32.partialorder %v3011, 0.5
        %vm3062 = vcmp.gt.f32.partialorder %v3012, 0.5
        %vm3063 = vcmp.ge.s32.totalorder %v3031, 1
        %vm3064 = vcmp.ge.s32.totalorder %v3032, 1
        %vm3065 = vcmp.ge.s32.totalorder %v3033, 1
        %vm3066 = vcmp.ge.s32.totalorder %v3034, 1
        %vm3067 = vcmp.ge.s32.totalorder %v3035, 1
        %vm3068 = vcmp.ge.s32.totalorder %v3036, 1
        %vm3069 = vcmp.ge.s32.totalorder %v3037, 1
        %vm3070 = vcmp.ge.s32.totalorder %v3038, 1
        %vm3071 = vcmp.ge.s32.totalorder %v3039, 1
        %vm3072 = vcmp.ge.s32.totalorder %v3040, 1
        %vm3073 = vcmp.ge.s32.totalorder %v3041, 1
        %vm3074 = vcmp.ge.s32.totalorder %v3042, 1
        %vm3075 = vcmp.ge.s32.totalorder %v3043, 1
        %vm3076 = vcmp.ge.s32.totalorder %v3044, 1
        %vm3077 = vcmp.ge.s32.totalorder %v3045, 1
        %vm3078 = vcmp.ge.s32.totalorder %v3046, 1
        %vm3079 = vmand %vm3047, %vm3063
        %vm3080 = vmand %vm3048, %vm3064
        %vm3081 = vmand %vm3049, %vm3065
        %vm3082 = vmand %vm3050, %vm3066
        %vm3083 = vmand %vm3051, %vm3067
        %vm3084 = vmand %vm3052, %vm3068
        %vm3085 = vmand %vm3053, %vm3069
        %vm3086 = vmand %vm3054, %vm3070
        %vm3087 = vmand %vm3055, %vm3071
        %vm3088 = vmand %vm3056, %vm3072
        %vm3089 = vmand %vm3057, %vm3073
        %vm3090 = vmand %vm3058, %vm3074
        %vm3091 = vmand %vm3059, %vm3075
        %vm3092 = vmand %vm3060, %vm3076
        %vm3093 = vmand %vm3061, %vm3077
        %vm3094 = vmand %vm3062, %vm3078
        %v3095 = vld [vmem:[#allocation3] sm:$0xff]
        %v3096 = vld [vmem:[#allocation3 + $0x8] sm:$0xff]
        %v3097 = vld [vmem:[#allocation3 + $0x10] sm:$0xff]
        %v3098 = vld [vmem:[#allocation3 + $0x18] sm:$0xff]
        %v3099 = vld [vmem:[#allocation3 + $0x20] sm:$0xff]
        %v3100 = vld [vmem:[#allocation3 + $0x28] sm:$0xff]
        %v3101 = vld [vmem:[#allocation3 + $0x30] sm:$0xff]
        %v3102 = vld [vmem:[#allocation3 + $0x38] sm:$0xff]
        %v3103 = vld [vmem:[#allocation3 + $0x40] sm:$0xff]
        %v3104 = vld [vmem:[#allocation3 + $0x48] sm:$0xff]
        %v3105 = vld [vmem:[#allocation3 + $0x50] sm:$0xff]
        %v3106 = vld [vmem:[#allocation3 + $0x58] sm:$0xff]
        %v3107 = vld [vmem:[#allocation3 + $0x60] sm:$0xff]
        %v3108 = vld [vmem:[#allocation3 + $0x68] sm:$0xff]
        %v3109 = vld [vmem:[#allocation3 + $0x70] sm:$0xff]
        %v3110 = vld [vmem:[#allocation3 + $0x78] sm:$0xff]
        %v3111 = vmax.f32 %v3095, 1e-37
        %v3112 = vmax.f32 %v3096, 1e-37
        %v3113 = vmax.f32 %v3097, 1e-37
        %v3114 = vmax.f32 %v3098, 1e-37
        %v3115 = vmax.f32 %v3099, 1e-37
        %v3116 = vmax.f32 %v3100, 1e-37
        %v3117 = vmax.f32 %v3101, 1e-37
        %v3118 = vmax.f32 %v3102, 1e-37
        %v3119 = vmax.f32 %v3103, 1e-37
        %v3120 = vmax.f32 %v3104, 1e-37
        %v3121 = vmax.f32 %v3105, 1e-37
        %v3122 = vmax.f32 %v3106, 1e-37
        %v3123 = vmax.f32 %v3107, 1e-37
        %v3124 = vmax.f32 %v3108, 1e-37
        %v3125 = vmax.f32 %v3109, 1e-37
        %v3126 = vmax.f32 %v3110, 1e-37
        %v3127 = vlog2.pop %v3111
        %v3128 = vmul.f32 %v3127, 0.6931472
        %v3129 = vlog2.pop %v3112
        %v3130 = vmul.f32 %v3129, 0.6931472
        %v3131 = vlog2.pop %v3113
        %v3132 = vmul.f32 %v3131, 0.6931472
        %v3133 = vlog2.pop %v3114
        %v3134 = vmul.f32 %v3133, 0.6931472
        %v3135 = vlog2.pop %v3115
        %v3136 = vmul.f32 %v3135, 0.6931472
        %v3137 = vlog2.pop %v3116
        %v3138 = vmul.f32 %v3137, 0.6931472
        %v3139 = vlog2.pop %v3117
        %v3140 = vmul.f32 %v3139, 0.6931472
        %v3141 = vlog2.pop %v3118
        %v3142 = vmul.f32 %v3141, 0.6931472
        %v3143 = vlog2.pop %v3119
        %v3144 = vmul.f32 %v3143, 0.6931472
        %v3145 = vlog2.pop %v3120
        %v3146 = vmul.f32 %v3145, 0.6931472
        %v3147 = vlog2.pop %v3121
        %v3148 = vmul.f32 %v3147, 0.6931472
        %v3149 = vlog2.pop %v3122
        %v3150 = vmul.f32 %v3149, 0.6931472
        %v3151 = vlog2.pop %v3123
        %v3152 = vmul.f32 %v3151, 0.6931472
        %v3153 = vlog2.pop %v3124
        %v3154 = vmul.f32 %v3153, 0.6931472
        %v3155 = vlog2.pop %v3125
        %v3156 = vmul.f32 %v3155, 0.6931472
        %v3157 = vlog2.pop %v3126
        %v3158 = vmul.f32 %v3157, 0.6931472
        %v3159 = vld [vmem:[#allocation4] sm:$0xff]
        %v3160 = vld [vmem:[#allocation4 + $0x8] sm:$0xff]
        %v3161 = vld [vmem:[#allocation4 + $0x10] sm:$0xff]
        %v3162 = vld [vmem:[#allocation4 + $0x18] sm:$0xff]
        %v3163 = vld [vmem:[#allocation4 + $0x20] sm:$0xff]
        %v3164 = vld [vmem:[#allocation4 + $0x28] sm:$0xff]
        %v3165 = vld [vmem:[#allocation4 + $0x30] sm:$0xff]
        %v3166 = vld [vmem:[#allocation4 + $0x38] sm:$0xff]
        %v3167 = vld [vmem:[#allocation4 + $0x40] sm:$0xff]
        %v3168 = vld [vmem:[#allocation4 + $0x48] sm:$0xff]
        %v3169 = vld [vmem:[#allocation4 + $0x50] sm:$0xff]
        %v3170 = vld [vmem:[#allocation4 + $0x58] sm:$0xff]
        %v3171 = vld [vmem:[#allocation4 + $0x60] sm:$0xff]
        %v3172 = vld [vmem:[#allocation4 + $0x68] sm:$0xff]
        %v3173 = vld [vmem:[#allocation4 + $0x70] sm:$0xff]
        %v3174 = vld [vmem:[#allocation4 + $0x78] sm:$0xff]
        %v3175 = vlog2.pop %v3159
        %v3176 = vmul.f32 %v3175, 0.6931472
        %v3177 = vlog2.pop %v3160
        %v3178 = vmul.f32 %v3177, 0.6931472
        %v3179 = vlog2.pop %v3161
        %v3180 = vmul.f32 %v3179, 0.6931472
        %v3181 = vlog2.pop %v3162
        %v3182 = vmul.f32 %v3181, 0.6931472
        %v3183 = vlog2.pop %v3163
        %v3184 = vmul.f32 %v3183, 0.6931472
        %v3185 = vlog2.pop %v3164
        %v3186 = vmul.f32 %v3185, 0.6931472
        %v3187 = vlog2.pop %v3165
        %v3188 = vmul.f32 %v3187, 0.6931472
        %v3189 = vlog2.pop %v3166
        %v3190 = vmul.f32 %v3189, 0.6931472
        %v3191 = vlog2.pop %v3167
        %v3192 = vmul.f32 %v3191, 0.6931472
        %v3193 = vlog2.pop %v3168
        %v3194 = vmul.f32 %v3193, 0.6931472
        %v3195 = vlog2.pop %v3169
        %v3196 = vmul.f32 %v3195, 0.6931472
        %v3197 = vlog2.pop %v3170
        %v3198 = vmul.f32 %v3197, 0.6931472
        %v3199 = vlog2.pop %v3171
        %v3200 = vmul.f32 %v3199, 0.6931472
        %v3201 = vlog2.pop %v3172
        %v3202 = vmul.f32 %v3201, 0.6931472
        %v3203 = vlog2.pop %v3173
        %v3204 = vmul.f32 %v3203, 0.6931472
        %v3205 = vlog2.pop %v3174
        %v3206 = vmul.f32 %v3205, 0.6931472
        %v3207 = vsub.f32 %v3128, %v3176
        %v3208 = vsub.f32 %v3130, %v3178
        %v3209 = vsub.f32 %v3132, %v3180
        %v3210 = vsub.f32 %v3134, %v3182
        %v3211 = vsub.f32 %v3136, %v3184
        %v3212 = vsub.f32 %v3138, %v3186
        %v3213 = vsub.f32 %v3140, %v3188
        %v3214 = vsub.f32 %v3142, %v3190
        %v3215 = vsub.f32 %v3144, %v3192
        %v3216 = vsub.f32 %v3146, %v3194
        %v3217 = vsub.f32 %v3148, %v3196
        %v3218 = vsub.f32 %v3150, %v3198
        %v3219 = vsub.f32 %v3152, %v3200
        %v3220 = vsub.f32 %v3154, %v3202
        %v3221 = vsub.f32 %v3156, %v3204
        %v3222 = vsub.f32 %v3158, %v3206
        %v3223 = vstv %s558
        %v3224 = vsub.f32 %v3207, %v3223
        %v3225 = vsub.f32 %v3208, %v3223
        %v3226 = vsub.f32 %v3209, %v3223
        %v3227 = vsub.f32 %v3210, %v3223
        %v3228 = vsub.f32 %v3211, %v3223
        %v3229 = vsub.f32 %v3212, %v3223
        %v3230 = vsub.f32 %v3213, %v3223
        %v3231 = vsub.f32 %v3214, %v3223
        %v3232 = vsub.f32 %v3215, %v3223
        %v3233 = vsub.f32 %v3216, %v3223
        %v3234 = vsub.f32 %v3217, %v3223
        %v3235 = vsub.f32 %v3218, %v3223
        %v3236 = vsub.f32 %v3219, %v3223
        %v3237 = vsub.f32 %v3220, %v3223
        %v3238 = vsub.f32 %v3221, %v3223
        %v3239 = vsub.f32 %v3222, %v3223
        %v3240 = vld [vmem:[%s542] sm:$0x1]
        %v3241 = vsel %vm3079, %v3224, 0.0
        %v3242 = vsel %vm3080, %v3225, 0.0
        %v3243 = vsel %vm3081, %v3226, 0.0
        %v3244 = vsel %vm3082, %v3227, 0.0
        %v3245 = vsel %vm3083, %v3228, 0.0
        %v3246 = vsel %vm3084, %v3229, 0.0
        %v3247 = vsel %vm3085, %v3230, 0.0
        %v3248 = vsel %vm3086, %v3231, 0.0
        %v3249 = vsel %vm3087, %v3232, 0.0
        %v3250 = vsel %vm3088, %v3233, 0.0
        %v3251 = vsel %vm3089, %v3234, 0.0
        %v3252 = vsel %vm3090, %v3235, 0.0
        %v3253 = vsel %vm3091, %v3236, 0.0
        %v3254 = vsel %vm3092, %v3237, 0.0
        %v3255 = vsel %vm3093, %v3238, 0.0
        %v3256 = vsel %vm3094, %v3239, 0.0
        %vm3257 = vcmask 7168
        %v3258 = vsel %vm3257, %v3241, 0.0
        %v3259 = vsel %vm3257, %v3242, 0.0
        %v3260 = vadd.f32 %v3258, %v3259
        %v3261 = vsel %vm3257, %v3243, 0.0
        %v3262 = vadd.f32 %v3260, %v3261
        %v3263 = vsel %vm3257, %v3244, 0.0
        %v3264 = vadd.f32 %v3262, %v3263
        %v3265 = vsel %vm3257, %v3245, 0.0
        %v3266 = vadd.f32 %v3264, %v3265
        %v3267 = vsel %vm3257, %v3246, 0.0
        %v3268 = vadd.f32 %v3266, %v3267
        %v3269 = vsel %vm3257, %v3247, 0.0
        %v3270 = vadd.f32 %v3268, %v3269
        %v3271 = vsel %vm3257, %v3248, 0.0
        %v3272 = vadd.f32 %v3270, %v3271
        %v3273 = vsel %vm3257, %v3249, 0.0
        %v3274 = vadd.f32 %v3272, %v3273
        %v3275 = vsel %vm3257, %v3250, 0.0
        %v3276 = vadd.f32 %v3274, %v3275
        %v3277 = vsel %vm3257, %v3251, 0.0
        %v3278 = vadd.f32 %v3276, %v3277
        %v3279 = vsel %vm3257, %v3252, 0.0
        %v3280 = vadd.f32 %v3278, %v3279
        %v3281 = vsel %vm3257, %v3253, 0.0
        %v3282 = vadd.f32 %v3280, %v3281
        %v3283 = vsel %vm3257, %v3254, 0.0
        %v3284 = vadd.f32 %v3282, %v3283
        %v3285 = vsel %vm3257, %v3255, 0.0
        %v3286 = vadd.f32 %v3284, %v3285
        %v3287 = vsel %vm3257, %v3256, 0.0
        %v3288 = vadd.f32 %v3286, %v3287
        %v3289 = vrot.slane %v3288, 4
        %v3290 = vadd.f32 %v3288, %v3289
        %v3291 = vrot.slane %v3290, 2
        %v3292 = vadd.f32 %v3290, %v3291
        %v3293 = vrot.slane %v3292, 1
        %v3294 = vadd.f32 %v3292, %v3293
        %v3295 = vadd.f32 %v3240, %v3294
        %vm3296 = vcmask 0
        %3297 = vst.msk [vmem:[%s542] sm:$0x1] %vm3296, %v3295
        %v3298 = vld [vmem:[#allocation5] sm:$0xff]
        %v3299 = vld [vmem:[#allocation5 + $0x8] sm:$0xff]
        %v3300 = vld [vmem:[#allocation5 + $0x10] sm:$0xff]
        %v3301 = vld [vmem:[#allocation5 + $0x18] sm:$0xff]
        %v3302 = vld [vmem:[#allocation5 + $0x20] sm:$0xff]
        %v3303 = vld [vmem:[#allocation5 + $0x28] sm:$0xff]
        %v3304 = vld [vmem:[#allocation5 + $0x30] sm:$0xff]
        %v3305 = vld [vmem:[#allocation5 + $0x38] sm:$0xff]
        %v3306 = vld [vmem:[#allocation5 + $0x40] sm:$0xff]
        %v3307 = vld [vmem:[#allocation5 + $0x48] sm:$0xff]
        %v3308 = vld [vmem:[#allocation5 + $0x50] sm:$0xff]
        %v3309 = vld [vmem:[#allocation5 + $0x58] sm:$0xff]
        %v3310 = vld [vmem:[#allocation5 + $0x60] sm:$0xff]
        %v3311 = vld [vmem:[#allocation5 + $0x68] sm:$0xff]
        %v3312 = vld [vmem:[#allocation5 + $0x70] sm:$0xff]
        %v3313 = vld [vmem:[#allocation5 + $0x78] sm:$0xff]
        %v3314 = vstv %s563
        %v3315 = vmul.f32 %v3314, %v3298
        %v3316 = vmul.f32 %v3314, %v3299
        %v3317 = vmul.f32 %v3314, %v3300
        %v3318 = vmul.f32 %v3314, %v3301
        %v3319 = vmul.f32 %v3314, %v3302
        %v3320 = vmul.f32 %v3314, %v3303
        %v3321 = vmul.f32 %v3314, %v3304
        %v3322 = vmul.f32 %v3314, %v3305
        %v3323 = vmul.f32 %v3314, %v3306
        %v3324 = vmul.f32 %v3314, %v3307
        %v3325 = vmul.f32 %v3314, %v3308
        %v3326 = vmul.f32 %v3314, %v3309
        %v3327 = vmul.f32 %v3314, %v3310
        %v3328 = vmul.f32 %v3314, %v3311
        %v3329 = vmul.f32 %v3314, %v3312
        %v3330 = vmul.f32 %v3314, %v3313
        %v3331 = vstv %s560
        %v3332 = vadd.f32 %v3331, %v3315
        %v3333 = vadd.f32 %v3331, %v3316
        %v3334 = vadd.f32 %v3331, %v3317
        %v3335 = vadd.f32 %v3331, %v3318
        %v3336 = vadd.f32 %v3331, %v3319
        %v3337 = vadd.f32 %v3331, %v3320
        %v3338 = vadd.f32 %v3331, %v3321
        %v3339 = vadd.f32 %v3331, %v3322
        %v3340 = vadd.f32 %v3331, %v3323
        %v3341 = vadd.f32 %v3331, %v3324
        %v3342 = vadd.f32 %v3331, %v3325
        %v3343 = vadd.f32 %v3331, %v3326
        %v3344 = vadd.f32 %v3331, %v3327
        %v3345 = vadd.f32 %v3331, %v3328
        %v3346 = vadd.f32 %v3331, %v3329
        %v3347 = vadd.f32 %v3331, %v3330
        %v3348 = vadd.f32 %v3332, 1e-08
        %v3349 = vadd.f32 %v3333, 1e-08
        %v3350 = vadd.f32 %v3334, 1e-08
        %v3351 = vadd.f32 %v3335, 1e-08
        %v3352 = vadd.f32 %v3336, 1e-08
        %v3353 = vadd.f32 %v3337, 1e-08
        %v3354 = vadd.f32 %v3338, 1e-08
        %v3355 = vadd.f32 %v3339, 1e-08
        %v3356 = vadd.f32 %v3340, 1e-08
        %v3357 = vadd.f32 %v3341, 1e-08
        %v3358 = vadd.f32 %v3342, 1e-08
        %v3359 = vadd.f32 %v3343, 1e-08
        %v3360 = vadd.f32 %v3344, 1e-08
        %v3361 = vadd.f32 %v3345, 1e-08
        %v3362 = vadd.f32 %v3346, 1e-08
        %v3363 = vadd.f32 %v3347, 1e-08
        %v3364 = vlog2.pop %v3348
        %v3365 = vmul.f32 %v3364, 0.6931472
        %v3366 = vlog2.pop %v3349
        %v3367 = vmul.f32 %v3366, 0.6931472
        %v3368 = vlog2.pop %v3350
        %v3369 = vmul.f32 %v3368, 0.6931472
        %v3370 = vlog2.pop %v3351
        %v3371 = vmul.f32 %v3370, 0.6931472
        %v3372 = vlog2.pop %v3352
        %v3373 = vmul.f32 %v3372, 0.6931472
        %v3374 = vlog2.pop %v3353
        %v3375 = vmul.f32 %v3374, 0.6931472
        %v3376 = vlog2.pop %v3354
        %v3377 = vmul.f32 %v3376, 0.6931472
        %v3378 = vlog2.pop %v3355
        %v3379 = vmul.f32 %v3378, 0.6931472
        %v3380 = vlog2.pop %v3356
        %v3381 = vmul.f32 %v3380, 0.6931472
        %v3382 = vlog2.pop %v3357
        %v3383 = vmul.f32 %v3382, 0.6931472
        %v3384 = vlog2.pop %v3358
        %v3385 = vmul.f32 %v3384, 0.6931472
        %v3386 = vlog2.pop %v3359
        %v3387 = vmul.f32 %v3386, 0.6931472
        %v3388 = vlog2.pop %v3360
        %v3389 = vmul.f32 %v3388, 0.6931472
        %v3390 = vlog2.pop %v3361
        %v3391 = vmul.f32 %v3390, 0.6931472
        %v3392 = vlog2.pop %v3362
        %v3393 = vmul.f32 %v3392, 0.6931472
        %v3394 = vlog2.pop %v3363
        %v3395 = vmul.f32 %v3394, 0.6931472
        %v3396 = vmul.f32 %v3365, %v2997
        %v3397 = vmul.f32 %v3367, %v2998
        %v3398 = vmul.f32 %v3369, %v2999
        %v3399 = vmul.f32 %v3371, %v3000
        %v3400 = vmul.f32 %v3373, %v3001
        %v3401 = vmul.f32 %v3375, %v3002
        %v3402 = vmul.f32 %v3377, %v3003
        %v3403 = vmul.f32 %v3379, %v3004
        %v3404 = vmul.f32 %v3381, %v3005
        %v3405 = vmul.f32 %v3383, %v3006
        %v3406 = vmul.f32 %v3385, %v3007
        %v3407 = vmul.f32 %v3387, %v3008
        %v3408 = vmul.f32 %v3389, %v3009
        %v3409 = vmul.f32 %v3391, %v3010
        %v3410 = vmul.f32 %v3393, %v3011
        %v3411 = vmul.f32 %v3395, %v3012
        %v3412 = vsel %vm3257, %v3396, 0.0
        %v3413 = vsel %vm3257, %v3397, 0.0
        %v3414 = vadd.f32 %v3412, %v3413
        %v3415 = vsel %vm3257, %v3398, 0.0
        %v3416 = vadd.f32 %v3414, %v3415
        %v3417 = vsel %vm3257, %v3399, 0.0
        %v3418 = vadd.f32 %v3416, %v3417
        %v3419 = vsel %vm3257, %v3400, 0.0
        %v3420 = vadd.f32 %v3418, %v3419
        %v3421 = vsel %vm3257, %v3401, 0.0
        %v3422 = vadd.f32 %v3420, %v3421
        %v3423 = vsel %vm3257, %v3402, 0.0
        %v3424 = vadd.f32 %v3422, %v3423
        %v3425 = vsel %vm3257, %v3403, 0.0
        %v3426 = vadd.f32 %v3424, %v3425
        %v3427 = vsel %vm3257, %v3404, 0.0
        %v3428 = vadd.f32 %v3426, %v3427
        %v3429 = vsel %vm3257, %v3405, 0.0
        %v3430 = vadd.f32 %v3428, %v3429
        %v3431 = vsel %vm3257, %v3406, 0.0
        %v3432 = vadd.f32 %v3430, %v3431
        %v3433 = vsel %vm3257, %v3407, 0.0
        %v3434 = vadd.f32 %v3432, %v3433
        %v3435 = vsel %vm3257, %v3408, 0.0
        %v3436 = vadd.f32 %v3434, %v3435
        %v3437 = vsel %vm3257, %v3409, 0.0
        %v3438 = vadd.f32 %v3436, %v3437
        %v3439 = vsel %vm3257, %v3410, 0.0
        %v3440 = vadd.f32 %v3438, %v3439
        %v3441 = vsel %vm3257, %v3411, 0.0
        %v3442 = vadd.f32 %v3440, %v3441
        %v3443 = vrot.slane %v3442, 4
        %v3444 = vadd.f32 %v3442, %v3443
        %v3445 = vrot.slane %v3444, 2
        %v3446 = vadd.f32 %v3444, %v3445
        %v3447 = vrot.slane %v3446, 1
        %v3448 = vadd.f32 %v3446, %v3447
        %v3449 = vstv %s565
        %v3450 = vsub.f32 %v3449, %v689
        %v3451 = vsub.f32 %v3449, %v690
        %v3452 = vsub.f32 %v3449, %v691
        %v3453 = vsub.f32 %v3449, %v692
        %v3454 = vsub.f32 %v3449, %v693
        %v3455 = vsub.f32 %v3449, %v694
        %v3456 = vsub.f32 %v3449, %v695
        %v3457 = vsub.f32 %v3449, %v696
        %v3458 = vsub.f32 %v3449, %v697
        %v3459 = vsub.f32 %v3449, %v698
        %v3460 = vsub.f32 %v3449, %v699
        %v3461 = vsub.f32 %v3449, %v700
        %v3462 = vsub.f32 %v3449, %v701
        %v3463 = vsub.f32 %v3449, %v702
        %v3464 = vsub.f32 %v3449, %v703
        %v3465 = vsub.f32 %v3449, %v704
        %v3466 = vstv %s562
        %v3467 = vmul.f32 %v3450, %v3466
        %v3468 = vmul.f32 %v3451, %v3466
        %v3469 = vmul.f32 %v3452, %v3466
        %v3470 = vmul.f32 %v3453, %v3466
        %v3471 = vmul.f32 %v3454, %v3466
        %v3472 = vmul.f32 %v3455, %v3466
        %v3473 = vmul.f32 %v3456, %v3466
        %v3474 = vmul.f32 %v3457, %v3466
        %v3475 = vmul.f32 %v3458, %v3466
        %v3476 = vmul.f32 %v3459, %v3466
        %v3477 = vmul.f32 %v3460, %v3466
        %v3478 = vmul.f32 %v3461, %v3466
        %v3479 = vmul.f32 %v3462, %v3466
        %v3480 = vmul.f32 %v3463, %v3466
        %v3481 = vmul.f32 %v3464, %v3466
        %v3482 = vmul.f32 %v3465, %v3466
        %v3483 = vmin.f32 %v3467, 0.0
        %v3484 = vmin.f32 %v3468, 0.0
        %v3485 = vmin.f32 %v3469, 0.0
        %v3486 = vmin.f32 %v3470, 0.0
        %v3487 = vmin.f32 %v3471, 0.0
        %v3488 = vmin.f32 %v3472, 0.0
        %v3489 = vmin.f32 %v3473, 0.0
        %v3490 = vmin.f32 %v3474, 0.0
        %v3491 = vmin.f32 %v3475, 0.0
        %v3492 = vmin.f32 %v3476, 0.0
        %v3493 = vmin.f32 %v3477, 0.0
        %v3494 = vmin.f32 %v3478, 0.0
        %v3495 = vmin.f32 %v3479, 0.0
        %v3496 = vmin.f32 %v3480, 0.0
        %v3497 = vmin.f32 %v3481, 0.0
        %v3498 = vmin.f32 %v3482, 0.0
        %v3499 = vmul.f32 %v3483, %v2997
        %v3500 = vmul.f32 %v3484, %v2998
        %v3501 = vmul.f32 %v3485, %v2999
        %v3502 = vmul.f32 %v3486, %v3000
        %v3503 = vmul.f32 %v3487, %v3001
        %v3504 = vmul.f32 %v3488, %v3002
        %v3505 = vmul.f32 %v3489, %v3003
        %v3506 = vmul.f32 %v3490, %v3004
        %v3507 = vmul.f32 %v3491, %v3005
        %v3508 = vmul.f32 %v3492, %v3006
        %v3509 = vmul.f32 %v3493, %v3007
        %v3510 = vmul.f32 %v3494, %v3008
        %v3511 = vmul.f32 %v3495, %v3009
        %v3512 = vmul.f32 %v3496, %v3010
        %v3513 = vmul.f32 %v3497, %v3011
        %v3514 = vmul.f32 %v3498, %v3012
        %v3515 = vmul.f32 %v3499, 1.442695
        %v3516 = vpow.pop %v3515
        %v3517 = vmul.f32 %v3500, 1.442695
        %v3518 = vpow.pop %v3517
        %v3519 = vmul.f32 %v3501, 1.442695
        %v3520 = vpow.pop %v3519
        %v3521 = vmul.f32 %v3502, 1.442695
        %v3522 = vpow.pop %v3521
        %v3523 = vmul.f32 %v3503, 1.442695
        %v3524 = vpow.pop %v3523
        %v3525 = vmul.f32 %v3504, 1.442695
        %v3526 = vpow.pop %v3525
        %v3527 = vmul.f32 %v3505, 1.442695
        %v3528 = vpow.pop %v3527
        %v3529 = vmul.f32 %v3506, 1.442695
        %v3530 = vpow.pop %v3529
        %v3531 = vmul.f32 %v3507, 1.442695
        %v3532 = vpow.pop %v3531
        %v3533 = vmul.f32 %v3508, 1.442695
        %v3534 = vpow.pop %v3533
        %v3535 = vmul.f32 %v3509, 1.442695
        %v3536 = vpow.pop %v3535
        %v3537 = vmul.f32 %v3510, 1.442695
        %v3538 = vpow.pop %v3537
        %v3539 = vmul.f32 %v3511, 1.442695
        %v3540 = vpow.pop %v3539
        %v3541 = vmul.f32 %v3512, 1.442695
        %v3542 = vpow.pop %v3541
        %v3543 = vmul.f32 %v3513, 1.442695
        %v3544 = vpow.pop %v3543
        %v3545 = vmul.f32 %v3514, 1.442695
        %v3546 = vpow.pop %v3545
        %v3547 = vsub.f32 1.0, %v3516
        %v3548 = vsub.f32 1.0, %v3518
        %v3549 = vsub.f32 1.0, %v3520
        %v3550 = vsub.f32 1.0, %v3522
        %v3551 = vsub.f32 1.0, %v3524
        %v3552 = vsub.f32 1.0, %v3526
        %v3553 = vsub.f32 1.0, %v3528
        %v3554 = vsub.f32 1.0, %v3530
        %v3555 = vsub.f32 1.0, %v3532
        %v3556 = vsub.f32 1.0, %v3534
        %v3557 = vsub.f32 1.0, %v3536
        %v3558 = vsub.f32 1.0, %v3538
        %v3559 = vsub.f32 1.0, %v3540
        %v3560 = vsub.f32 1.0, %v3542
        %v3561 = vsub.f32 1.0, %v3544
        %v3562 = vsub.f32 1.0, %v3546
        %v3563 = vsel %vm3257, %v3547, 0.0
        %v3564 = vsel %vm3257, %v3548, 0.0
        %v3565 = vadd.f32 %v3563, %v3564
        %v3566 = vsel %vm3257, %v3549, 0.0
        %v3567 = vadd.f32 %v3565, %v3566
        %v3568 = vsel %vm3257, %v3550, 0.0
        %v3569 = vadd.f32 %v3567, %v3568
        %v3570 = vsel %vm3257, %v3551, 0.0
        %v3571 = vadd.f32 %v3569, %v3570
        %v3572 = vsel %vm3257, %v3552, 0.0
        %v3573 = vadd.f32 %v3571, %v3572
        %v3574 = vsel %vm3257, %v3553, 0.0
        %v3575 = vadd.f32 %v3573, %v3574
        %v3576 = vsel %vm3257, %v3554, 0.0
        %v3577 = vadd.f32 %v3575, %v3576
        %v3578 = vsel %vm3257, %v3555, 0.0
        %v3579 = vadd.f32 %v3577, %v3578
        %v3580 = vsel %vm3257, %v3556, 0.0
        %v3581 = vadd.f32 %v3579, %v3580
        %v3582 = vsel %vm3257, %v3557, 0.0
        %v3583 = vadd.f32 %v3581, %v3582
        %v3584 = vsel %vm3257, %v3558, 0.0
        %v3585 = vadd.f32 %v3583, %v3584
        %v3586 = vsel %vm3257, %v3559, 0.0
        %v3587 = vadd.f32 %v3585, %v3586
        %v3588 = vsel %vm3257, %v3560, 0.0
        %v3589 = vadd.f32 %v3587, %v3588
        %v3590 = vsel %vm3257, %v3561, 0.0
        %v3591 = vadd.f32 %v3589, %v3590
        %v3592 = vsel %vm3257, %v3562, 0.0
        %v3593 = vadd.f32 %v3591, %v3592
        %v3594 = vrot.slane %v3593, 4
        %v3595 = vadd.f32 %v3593, %v3594
        %v3596 = vrot.slane %v3595, 2
        %v3597 = vadd.f32 %v3595, %v3596
        %v3598 = vrot.slane %v3597, 1
        %v3599 = vadd.f32 %v3597, %v3598
        %v3600 = vld [vmem:[%s549] sm:$0x1]
        %v3601 = vstv %s561
        %v3602 = vmul.f32 %v3601, %v3599
        %v3603 = vsub.f32 %v3448, %v3602
        %v3604 = vadd.f32 %v3600, %v3603
        %3605 = vst.msk [vmem:[%s549] sm:$0x1] %vm3296, %v3604
      $region64: #{combined_spatiotemporal_forward.1} parent=43 // pred_fallthru
        _
      %s3606 = sld [smem:[#allocation10 + %s45]]
      %s3607 = sadd.s32 %s44, %s3606
      %p3608 = scmp.lt.s32.totalorder %s3607, 1
      %s3609 = scalar_select %p3608, %s3607, 1
      %s3610 = scalar_lea.vmem %s11, %s3609
      %s3611 = sld [smem:[#allocation10 + %s45]]
      %s3612 = sadd.s32 %s44, %s3611
      %p3613 = scmp.lt.s32.totalorder %s3612, 1
      %s3614 = scalar_select %p3613, %s3612, 1
      %s3615 = scalar_lea.vmem %s12, %s3614
      // Predicated region
      $region65: #{combined_spatiotemporal_forward.1} parent=43 // pred_check
        %p3616 = pneg %p254
      $region66: #{combined_spatiotemporal_forward.1} parent=43 // pred_check_branch
        %3618 = sbr.rel (%p3616) target = $region68
      $region67: #{combined_spatiotemporal_forward.1} parent=43 // pred_region
        %s3619 = sld [smem:[#allocation10 + %s45]]
        %s3620 = sadd.s32 %s44, %s3619
      $region68: #{combined_spatiotemporal_forward.1} parent=43 // pred_fallthru
        _
      // Predicated region
      $region69: #{combined_spatiotemporal_forward.1} parent=43 // pred_check
        %p3621 = pneg %p284
      $region70: #{combined_spatiotemporal_forward.1} parent=43 // pred_check_branch
        %3623 = sbr.rel (%p3621) target = $region72
      $region71: #{combined_spatiotemporal_forward.1} parent=43 // pred_region
        %s3624 = sld [smem:[#allocation10 + %s45]]
        %s3625 = sadd.s32 %s44, %s3624
      $region72: #{combined_spatiotemporal_forward.1} parent=43 // pred_fallthru
        _
    $region44: #{combined_spatiotemporal_forward.1} parent=5 // pred_fallthru
      _
    %p3626 = scmp.le.s32.totalorder 2, %s35
    // Predicated region
    $region73: #{combined_spatiotemporal_forward.1} parent=5 // pred_check
      %p3627 = pneg %p3626
    $region74: #{combined_spatiotemporal_forward.1} parent=5 // pred_check_branch
      %3629 = sbr.rel (%p3627) target = $region76
    $region75: #{combined_spatiotemporal_forward.1} parent=5 // pred_region
      %s3630 = ssub.s32 %s35, 2
      // Predicated region
      $region77: #{combined_spatiotemporal_forward.1} parent=75 // pred_check
        %p3631 = pneg %p260
      $region78: #{combined_spatiotemporal_forward.1} parent=75 // pred_check_branch
        %3633 = sbr.rel (%p3631) target = $region80
      $region79: #{combined_spatiotemporal_forward.1} parent=75 // pred_region
        %s3634 = sld [smem:[#allocation10 + %s47]]
        %s3635 = sadd.s32 %s46, %s3634
        %p3636 = scmp.lt.s32.totalorder %s3635, 1
        %s3637 = scalar_select %p3636, %s3635, 1
        %s3638 = scalar_lea.vmem %s11, %s3637
      $region80: #{combined_spatiotemporal_forward.1} parent=75 // pred_fallthru
        _
      // Predicated region
      $region81: #{combined_spatiotemporal_forward.1} parent=75 // pred_check
        %p3639 = pneg %p290
      $region82: #{combined_spatiotemporal_forward.1} parent=75 // pred_check_branch
        %3641 = sbr.rel (%p3639) target = $region84
      $region83: #{combined_spatiotemporal_forward.1} parent=75 // pred_region
        %s3642 = sld [smem:[#allocation10 + %s47]]
        %s3643 = sadd.s32 %s46, %s3642
        %p3644 = scmp.lt.s32.totalorder %s3643, 1
        %s3645 = scalar_select %p3644, %s3643, 1
        %s3646 = scalar_lea.vmem %s12, %s3645
      $region84: #{combined_spatiotemporal_forward.1} parent=75 // pred_fallthru
        _
    $region76: #{combined_spatiotemporal_forward.1} parent=5 // pred_fallthru
      _
  $region6: #{combined_spatiotemporal_forward.1} parent=0 // loop_footer
    %s39 = sadd.s32 1, %s35
  $region7: #{combined_spatiotemporal_forward.1} parent=0 // loop_footer_branch
    %34 = sbr.rel target = $region3
  $region8: #{combined_spatiotemporal_forward.1} parent=0 // loop_exit
    _

</llo_original>
